<compile_context>
chip_gen: v7x
topology: tpu7x:2x2x1
jax: 0.10.0
libtpu: 0.0.40
codegen_flags: <defaults>
</compile_context>

<pallas_src>
import functools

import jax
import jax.numpy as jnp
from jax.experimental import pallas as pl
from jax.experimental.pallas import tpu as pltpu

LRELU_SLOPE = 0.2
BN_EPS = 1e-5

# MXU operands are kept f32 so the strict rtol=1e-3 check against the f32 reference
# passes on every TPU generation.  On v6e/v7x flip this to cast the dot operands to
# bf16 (accumulation and all epilogue/BN math stay f32) for higher MXU rate.
USE_BF16_MXU = False


def _mxu_in(x):
    return x.astype(jnp.bfloat16) if USE_BF16_MXU else x


# --------------------------- Pallas kernels ---------------------------------


def _conv_bias_act_kernel(x_ref, w_ref, b_ref, o_ref, *, activation):
    acc = jnp.dot(_mxu_in(x_ref[...]), _mxu_in(w_ref[...]),
                  preferred_element_type=jnp.float32)
    acc = acc + b_ref[...]
    if activation == "lrelu":
        acc = jnp.where(acc > 0, acc, LRELU_SLOPE * acc)
    else:  # sigmoid
        acc = 1.0 / (1.0 + jnp.exp(-acc))
    o_ref[...] = acc.astype(o_ref.dtype)


def conv_bias_act(patches, w2d, bias, activation):
    """Fused conv-as-matmul + bias + activation.  patches:(M,K) f32, w2d:(K,C)."""
    M, K = patches.shape
    C = w2d.shape[1]
    # 2-way M split so both TensorCores get work on v7x for the big layer; the
    # tiny layers stay a single full-array step (no padding, no masked-store waste).
    split = 2 if (M >= 1024 and M % 16 == 0) else 1
    tm = M // split
    kernel = functools.partial(_conv_bias_act_kernel, activation=activation)
    return pl.pallas_call(
        kernel,
        out_shape=jax.ShapeDtypeStruct((M, C), jnp.float32),
        grid=(split,),
        in_specs=[pl.BlockSpec((tm, K), lambda i: (i, 0)),
                  pl.BlockSpec((K, C), lambda i: (0, 0)),
                  pl.BlockSpec((1, C), lambda i: (0, 0))],
        out_specs=pl.BlockSpec((tm, C), lambda i: (i, 0)),
        compiler_params=pltpu.CompilerParams(dimension_semantics=("parallel",)),
    )(patches, w2d, bias.reshape(1, C))


def _conv_bn_lrelu_kernel(x_ref, w_ref, g_ref, b_ref, o_ref):
    # Conv-as-matmul; the whole (M, C) activation stays resident in vregs/VMEM.
    acc = jnp.dot(_mxu_in(x_ref[...]), _mxu_in(w_ref[...]),
                  preferred_element_type=jnp.float32)            # (M, C) f32
    m = acc.shape[0]
    mean = jnp.sum(acc, axis=0, keepdims=True) * (1.0 / m)        # (1, C)
    cen = acc - mean
    var = jnp.sum(cen * cen, axis=0, keepdims=True) * (1.0 / m)   # biased, two-pass
    scale = g_ref[...] * jax.lax.rsqrt(var + BN_EPS)
    y = cen * scale + b_ref[...]
    o_ref[...] = jnp.where(y > 0, y, LRELU_SLOPE * y).astype(o_ref.dtype)


def conv_bn_lrelu(patches, w2d, gamma, beta):
    """Fused conv(no bias) + BatchNorm(batch stats) + LeakyReLU, single invocation.

    No grid: every operand is passed as a whole-array VMEM block (largest input is
    ~256 KiB), so conv output, BN reduction and the affine+LeakyReLU epilogue never
    touch HBM in between."""
    M, K = patches.shape
    C = w2d.shape[1]
    return pl.pallas_call(
        _conv_bn_lrelu_kernel,
        out_shape=jax.ShapeDtypeStruct((M, C), jnp.float32),
    )(patches, w2d, gamma.reshape(1, C), beta.reshape(1, C))


# ------------------------------- Glue ----------------------------------------


def im2col(x_nhwc, k, stride, pad):
    """x: (N,H,W,C) -> ((N*Ho*Wo, k*k*C), (N, Ho, Wo)); column order = (kh, kw, Cin)."""
    N, H, W, C = x_nhwc.shape
    if pad > 0:
        x_nhwc = jnp.pad(x_nhwc, ((0, 0), (pad, pad), (pad, pad), (0, 0)))
    Hp, Wp = H + 2 * pad, W + 2 * pad
    Ho = (Hp - k) // stride + 1
    Wo = (Wp - k) // stride + 1
    cols = []
    for kh in range(k):
        for kw in range(k):
            cols.append(x_nhwc[:, kh:kh + stride * Ho:stride,
                               kw:kw + stride * Wo:stride, :])
    patches = jnp.stack(cols, axis=3)                     # (N, Ho, Wo, k*k, C)
    return patches.reshape(N * Ho * Wo, k * k * C), (N, Ho, Wo)


def torch_weight_to_2d(w_oihw):
    Cout, Cin, kh, kw = w_oihw.shape
    return jnp.transpose(w_oihw, (2, 3, 1, 0)).reshape(kh * kw * Cin, Cout)


def discriminator_forward(x_nchw, params):
    x = jnp.transpose(x_nchw, (0, 2, 3, 1)).astype(jnp.float32)   # -> NHWC

    # Block 1: Conv(bias) + LeakyReLU(0.2)
    p, (N, Ho, Wo) = im2col(x, 4, 2, 1)
    y = conv_bias_act(p, torch_weight_to_2d(params["w1"]), params["b1"], "lrelu")
    x = y.reshape(N, Ho, Wo, -1)

    # Blocks 2-4: Conv(no bias) + BatchNorm(batch stats) + LeakyReLU(0.2), one kernel each
    for name in ("2", "3", "4"):
        w2d = torch_weight_to_2d(params["w" + name])
        C = w2d.shape[1]
        p, (N, Ho, Wo) = im2col(x, 4, 2, 1)
        y = conv_bn_lrelu(p, w2d, params["g" + name], params["be" + name])
        x = y.reshape(N, Ho, Wo, C)

    # Block 5: Conv(bias, pad=0) + Sigmoid
    p, (N, Ho, Wo) = im2col(x, 4, 2, 0)
    y = conv_bias_act(p, torch_weight_to_2d(params["w5"]), params["b5"], "sigmoid")
    out = y.reshape(N, Ho, Wo, 1)
    return jnp.transpose(out, (0, 3, 1, 2))               # back to NCHW


# ----------------------- Pure-JAX reference (check) ---------------------------


def ref_forward(x, params):
    lrelu = lambda v: jnp.where(v > 0, v, LRELU_SLOPE * v)

    def conv(x, w, b, stride, pad):
        y = jax.lax.conv_general_dilated(
            x, w, (stride, stride), [(pad, pad), (pad, pad)],
            dimension_numbers=("NCHW", "OIHW", "NCHW"))
        if b is not None:
            y = y + b[None, :, None, None]
        return y

    def bn(x, g, b):
        mean = jnp.mean(x, axis=(0, 2, 3), keepdims=True)
        var = jnp.var(x, axis=(0, 2, 3), keepdims=True)
        xn = (x - mean) / jnp.sqrt(var + BN_EPS)
        return xn * g[None, :, None, None] + b[None, :, None, None]

    y = lrelu(conv(x, params["w1"], params["b1"], 2, 1))
    for name in ("2", "3", "4"):
        y = lrelu(bn(conv(y, params["w" + name], None, 2, 1),
                     params["g" + name], params["be" + name]))
    y = conv(y, params["w5"], params["b5"], 2, 0)
    return 1.0 / (1.0 + jnp.exp(-y))


# --------------------------------- Main ---------------------------------------

if __name__ == "__main__":
    channels_image, features_d = 3, 8
    N, H, W = 2, 64, 64
    fd = features_d

    key = jax.random.PRNGKey(0)
    ks = jax.random.split(key, 8)
    params = {
        "w1": 0.02 * jax.random.normal(ks[0], (fd, channels_image, 4, 4), jnp.float32),
        "b1": jnp.zeros((fd,), jnp.float32),
        "w2": 0.02 * jax.random.normal(ks[1], (fd * 2, fd, 4, 4), jnp.float32),
        "g2": jnp.ones((fd * 2,), jnp.float32), "be2": jnp.zeros((fd * 2,), jnp.float32),
        "w3": 0.02 * jax.random.normal(ks[2], (fd * 4, fd * 2, 4, 4), jnp.float32),
        "g3": jnp.ones((fd * 4,), jnp.float32), "be3": jnp.zeros((fd * 4,), jnp.float32),
        "w4": 0.02 * jax.random.normal(ks[3], (fd * 8, fd * 4, 4, 4), jnp.float32),
        "g4": jnp.ones((fd * 8,), jnp.float32), "be4": jnp.zeros((fd * 8,), jnp.float32),
        "w5": 0.02 * jax.random.normal(ks[4], (1, fd * 8, 4, 4), jnp.float32),
        "b5": jnp.zeros((1,), jnp.float32),
    }
    x = jax.random.normal(ks[5], (N, channels_image, H, W), jnp.float32)

    out = jax.jit(discriminator_forward)(x, params)
    out = jax.block_until_ready(out)
    assert out.shape == (N, 1, 1, 1), out.shape

    ref = ref_forward(x, params)
    assert jnp.allclose(out, ref, rtol=1e-3, atol=1e-4)
    print("KERNEL_OK")
</pallas_src>

<mosaic_0001>
module attributes {stable_mosaic.version = 11 : i64} {
  func.func @_conv_bias_act_kernel(%arg0: i32, %arg1: memref<1024x48xf32, #tpu.memory_space<vmem>>, %arg2: memref<48x8xf32, #tpu.memory_space<vmem>>, %arg3: memref<1x8xf32, #tpu.memory_space<vmem>>, %arg4: memref<1024x8xf32, #tpu.memory_space<vmem>>) attributes {dimension_semantics = [#tpu.dimension_semantics<parallel>], iteration_bounds = array<i64: 2>, scalar_prefetch = 0 : i64, scratch_operands = 0 : i64, tpu.core_type = #tpu.core_type<tc>, window_params = [{transform_indices = @transform_0, window_bounds = array<i64: 1024, 48>}, {pipeline_mode = #tpu.pipeline_mode<synchronous>, transform_indices = @transform_1, window_bounds = array<i64: 48, 8>}, {pipeline_mode = #tpu.pipeline_mode<synchronous>, transform_indices = @transform_2, window_bounds = array<i64: 1, 8>}, {transform_indices = @transform_3, window_bounds = array<i64: 1024, 8>}]} {
    %c0 = arith.constant 0 : index
    %c0_0 = arith.constant 0 : index
    %0 = vector.load %arg1[%c0, %c0_0] : memref<1024x48xf32, #tpu.memory_space<vmem>>, vector<1024x48xf32>
    %c0_1 = arith.constant 0 : index
    %c0_2 = arith.constant 0 : index
    %1 = vector.load %arg2[%c0_1, %c0_2] : memref<48x8xf32, #tpu.memory_space<vmem>>, vector<48x8xf32>
    %cst = arith.constant dense<0.000000e+00> : vector<1024x8xf32>
    %2 = tpu.matmul %0, %1, %cst {dimension_numbers = #tpu.dot_dimension_numbers<[1], [0], [0], [1], [0, 0, 1, 1], [], []>} : vector<1024x48xf32>, vector<48x8xf32>, vector<1024x8xf32> -> vector<1024x8xf32>
    %c0_3 = arith.constant 0 : index
    %c0_4 = arith.constant 0 : index
    %3 = vector.load %arg3[%c0_3, %c0_4] : memref<1x8xf32, #tpu.memory_space<vmem>>, vector<1x8xf32>
    %4 = vector.broadcast %3 : vector<1x8xf32> to vector<1024x8xf32>
    %5 = arith.addf %2, %4 : vector<1024x8xf32>
    %cst_5 = arith.constant 0.000000e+00 : f32
    %6 = vector.broadcast %cst_5 : f32 to vector<1024x8xf32>
    %7 = arith.cmpf ogt, %5, %6 : vector<1024x8xf32>
    %cst_6 = arith.constant 2.000000e-01 : f32
    %8 = vector.broadcast %cst_6 : f32 to vector<1024x8xf32>
    %9 = arith.mulf %8, %5 : vector<1024x8xf32>
    %10 = arith.select %7, %5, %9 : vector<1024x8xi1>, vector<1024x8xf32>
    %c0_7 = arith.constant 0 : index
    %c0_8 = arith.constant 0 : index
    %11 = vector.load %arg4[%c0_7, %c0_8] : memref<1024x8xf32, #tpu.memory_space<vmem>>, vector<1024x8xf32>
    tpu.vector_store %arg4[%c0_7, %c0_8], %10 {strides = array<i32>} : memref<1024x8xf32, #tpu.memory_space<vmem>>, vector<1024x8xf32>,
    return
  }
  func.func @transform_0(%arg0: i32) -> (i32, i32) {
    %c0_i32 = arith.constant 0 : i32
    %c0_i32_0 = arith.constant 0 : i32
    return %arg0, %c0_i32 : i32, i32
  }
  func.func @transform_1(%arg0: i32) -> (i32, i32) {
    %c0_i32 = arith.constant 0 : i32
    %c0_i32_0 = arith.constant 0 : i32
    %c0_i32_1 = arith.constant 0 : i32
    return %c0_i32, %c0_i32_0 : i32, i32
  }
  func.func @transform_2(%arg0: i32) -> (i32, i32) {
    %c0_i32 = arith.constant 0 : i32
    %c0_i32_0 = arith.constant 0 : i32
    %c0_i32_1 = arith.constant 0 : i32
    return %c0_i32, %c0_i32_0 : i32, i32
  }
  func.func @transform_3(%arg0: i32) -> (i32, i32) {
    %c0_i32 = arith.constant 0 : i32
    %c0_i32_0 = arith.constant 0 : i32
    return %arg0, %c0_i32 : i32, i32
  }
}

module attributes {stable_mosaic.version = 11 : i64} {
  func.func @_conv_bn_lrelu_kernel(%arg0: memref<512x128xf32, #tpu.memory_space<vmem>>, %arg1: memref<128x16xf32, #tpu.memory_space<vmem>>, %arg2: memref<1x16xf32, #tpu.memory_space<vmem>>, %arg3: memref<1x16xf32, #tpu.memory_space<vmem>>, %arg4: memref<512x16xf32, #tpu.memory_space<vmem>>) attributes {dimension_semantics = [], scalar_prefetch = 0 : i64, scratch_operands = 0 : i64, tpu.core_type = #tpu.core_type<tc>} {
    %c0 = arith.constant 0 : index
    %c0_0 = arith.constant 0 : index
    %0 = vector.load %arg0[%c0, %c0_0] : memref<512x128xf32, #tpu.memory_space<vmem>>, vector<512x128xf32>
    %c0_1 = arith.constant 0 : index
    %c0_2 = arith.constant 0 : index
    %1 = vector.load %arg1[%c0_1, %c0_2] : memref<128x16xf32, #tpu.memory_space<vmem>>, vector<128x16xf32>
    %cst = arith.constant dense<0.000000e+00> : vector<512x16xf32>
    %2 = tpu.matmul %0, %1, %cst {dimension_numbers = #tpu.dot_dimension_numbers<[1], [0], [0], [1], [0, 0, 1, 1], [], []>} : vector<512x128xf32>, vector<128x16xf32>, vector<512x16xf32> -> vector<512x16xf32>
    %cst_3 = arith.constant dense<0.000000e+00> : vector<16xf32>
    %3 = vector.multi_reduction <add>, %2, %cst_3 [0] : vector<512x16xf32> to vector<16xf32>
    %4 = vector.shape_cast %3 : vector<16xf32> to vector<1x16xf32>
    %cst_4 = arith.constant 0.001953125 : f32
    %5 = vector.broadcast %cst_4 : f32 to vector<1x16xf32>
    %6 = arith.mulf %4, %5 : vector<1x16xf32>
    %7 = vector.broadcast %6 : vector<1x16xf32> to vector<512x16xf32>
    %8 = arith.subf %2, %7 : vector<512x16xf32>
    %9 = arith.mulf %8, %8 : vector<512x16xf32>
    %cst_5 = arith.constant dense<0.000000e+00> : vector<16xf32>
    %10 = vector.multi_reduction <add>, %9, %cst_5 [0] : vector<512x16xf32> to vector<16xf32>
    %11 = vector.shape_cast %10 : vector<16xf32> to vector<1x16xf32>
    %cst_6 = arith.constant 0.001953125 : f32
    %12 = vector.broadcast %cst_6 : f32 to vector<1x16xf32>
    %13 = arith.mulf %11, %12 : vector<1x16xf32>
    %c0_7 = arith.constant 0 : index
    %c0_8 = arith.constant 0 : index
    %14 = vector.load %arg2[%c0_7, %c0_8] : memref<1x16xf32, #tpu.memory_space<vmem>>, vector<1x16xf32>
    %cst_9 = arith.constant 9.99999974E-6 : f32
    %15 = vector.broadcast %cst_9 : f32 to vector<1x16xf32>
    %16 = arith.addf %13, %15 : vector<1x16xf32>
    %17 = math.rsqrt %16 : vector<1x16xf32>
    %18 = arith.mulf %14, %17 : vector<1x16xf32>
    %19 = vector.broadcast %18 : vector<1x16xf32> to vector<512x16xf32>
    %20 = arith.mulf %8, %19 : vector<512x16xf32>
    %c0_10 = arith.constant 0 : index
    %c0_11 = arith.constant 0 : index
    %21 = vector.load %arg3[%c0_10, %c0_11] : memref<1x16xf32, #tpu.memory_space<vmem>>, vector<1x16xf32>
    %22 = vector.broadcast %21 : vector<1x16xf32> to vector<512x16xf32>
    %23 = arith.addf %20, %22 : vector<512x16xf32>
    %cst_12 = arith.constant 0.000000e+00 : f32
    %24 = vector.broadcast %cst_12 : f32 to vector<512x16xf32>
    %25 = arith.cmpf ogt, %23, %24 : vector<512x16xf32>
    %cst_13 = arith.constant 2.000000e-01 : f32
    %26 = vector.broadcast %cst_13 : f32 to vector<512x16xf32>
    %27 = arith.mulf %26, %23 : vector<512x16xf32>
    %28 = arith.select %25, %23, %27 : vector<512x16xi1>, vector<512x16xf32>
    %c0_14 = arith.constant 0 : index
    %c0_15 = arith.constant 0 : index
    %29 = vector.load %arg4[%c0_14, %c0_15] : memref<512x16xf32, #tpu.memory_space<vmem>>, vector<512x16xf32>
    tpu.vector_store %arg4[%c0_14, %c0_15], %28 {strides = array<i32>} : memref<512x16xf32, #tpu.memory_space<vmem>>, vector<512x16xf32>,
    return
  }
}

module attributes {stable_mosaic.version = 11 : i64} {
  func.func @_conv_bn_lrelu_kernel(%arg0: memref<128x256xf32, #tpu.memory_space<vmem>>, %arg1: memref<256x32xf32, #tpu.memory_space<vmem>>, %arg2: memref<1x32xf32, #tpu.memory_space<vmem>>, %arg3: memref<1x32xf32, #tpu.memory_space<vmem>>, %arg4: memref<128x32xf32, #tpu.memory_space<vmem>>) attributes {dimension_semantics = [], scalar_prefetch = 0 : i64, scratch_operands = 0 : i64, tpu.core_type = #tpu.core_type<tc>} {
    %c0 = arith.constant 0 : index
    %c0_0 = arith.constant 0 : index
    %0 = vector.load %arg0[%c0, %c0_0] : memref<128x256xf32, #tpu.memory_space<vmem>>, vector<128x256xf32>
    %c0_1 = arith.constant 0 : index
    %c0_2 = arith.constant 0 : index
    %1 = vector.load %arg1[%c0_1, %c0_2] : memref<256x32xf32, #tpu.memory_space<vmem>>, vector<256x32xf32>
    %cst = arith.constant dense<0.000000e+00> : vector<128x32xf32>
    %2 = tpu.matmul %0, %1, %cst {dimension_numbers = #tpu.dot_dimension_numbers<[1], [0], [0], [1], [0, 0, 1, 1], [], []>} : vector<128x256xf32>, vector<256x32xf32>, vector<128x32xf32> -> vector<128x32xf32>
    %cst_3 = arith.constant dense<0.000000e+00> : vector<32xf32>
    %3 = vector.multi_reduction <add>, %2, %cst_3 [0] : vector<128x32xf32> to vector<32xf32>
    %4 = vector.shape_cast %3 : vector<32xf32> to vector<1x32xf32>
    %cst_4 = arith.constant 7.812500e-03 : f32
    %5 = vector.broadcast %cst_4 : f32 to vector<1x32xf32>
    %6 = arith.mulf %4, %5 : vector<1x32xf32>
    %7 = vector.broadcast %6 : vector<1x32xf32> to vector<128x32xf32>
    %8 = arith.subf %2, %7 : vector<128x32xf32>
    %9 = arith.mulf %8, %8 : vector<128x32xf32>
    %cst_5 = arith.constant dense<0.000000e+00> : vector<32xf32>
    %10 = vector.multi_reduction <add>, %9, %cst_5 [0] : vector<128x32xf32> to vector<32xf32>
    %11 = vector.shape_cast %10 : vector<32xf32> to vector<1x32xf32>
    %cst_6 = arith.constant 7.812500e-03 : f32
    %12 = vector.broadcast %cst_6 : f32 to vector<1x32xf32>
    %13 = arith.mulf %11, %12 : vector<1x32xf32>
    %c0_7 = arith.constant 0 : index
    %c0_8 = arith.constant 0 : index
    %14 = vector.load %arg2[%c0_7, %c0_8] : memref<1x32xf32, #tpu.memory_space<vmem>>, vector<1x32xf32>
    %cst_9 = arith.constant 9.99999974E-6 : f32
    %15 = vector.broadcast %cst_9 : f32 to vector<1x32xf32>
    %16 = arith.addf %13, %15 : vector<1x32xf32>
    %17 = math.rsqrt %16 : vector<1x32xf32>
    %18 = arith.mulf %14, %17 : vector<1x32xf32>
    %19 = vector.broadcast %18 : vector<1x32xf32> to vector<128x32xf32>
    %20 = arith.mulf %8, %19 : vector<128x32xf32>
    %c0_10 = arith.constant 0 : index
    %c0_11 = arith.constant 0 : index
    %21 = vector.load %arg3[%c0_10, %c0_11] : memref<1x32xf32, #tpu.memory_space<vmem>>, vector<1x32xf32>
    %22 = vector.broadcast %21 : vector<1x32xf32> to vector<128x32xf32>
    %23 = arith.addf %20, %22 : vector<128x32xf32>
    %cst_12 = arith.constant 0.000000e+00 : f32
    %24 = vector.broadcast %cst_12 : f32 to vector<128x32xf32>
    %25 = arith.cmpf ogt, %23, %24 : vector<128x32xf32>
    %cst_13 = arith.constant 2.000000e-01 : f32
    %26 = vector.broadcast %cst_13 : f32 to vector<128x32xf32>
    %27 = arith.mulf %26, %23 : vector<128x32xf32>
    %28 = arith.select %25, %23, %27 : vector<128x32xi1>, vector<128x32xf32>
    %c0_14 = arith.constant 0 : index
    %c0_15 = arith.constant 0 : index
    %29 = vector.load %arg4[%c0_14, %c0_15] : memref<128x32xf32, #tpu.memory_space<vmem>>, vector<128x32xf32>
    tpu.vector_store %arg4[%c0_14, %c0_15], %28 {strides = array<i32>} : memref<128x32xf32, #tpu.memory_space<vmem>>, vector<128x32xf32>,
    return
  }
}

module attributes {stable_mosaic.version = 11 : i64} {
  func.func @_conv_bn_lrelu_kernel(%arg0: memref<32x512xf32, #tpu.memory_space<vmem>>, %arg1: memref<512x64xf32, #tpu.memory_space<vmem>>, %arg2: memref<1x64xf32, #tpu.memory_space<vmem>>, %arg3: memref<1x64xf32, #tpu.memory_space<vmem>>, %arg4: memref<32x64xf32, #tpu.memory_space<vmem>>) attributes {dimension_semantics = [], scalar_prefetch = 0 : i64, scratch_operands = 0 : i64, tpu.core_type = #tpu.core_type<tc>} {
    %c0 = arith.constant 0 : index
    %c0_0 = arith.constant 0 : index
    %0 = vector.load %arg0[%c0, %c0_0] : memref<32x512xf32, #tpu.memory_space<vmem>>, vector<32x512xf32>
    %c0_1 = arith.constant 0 : index
    %c0_2 = arith.constant 0 : index
    %1 = vector.load %arg1[%c0_1, %c0_2] : memref<512x64xf32, #tpu.memory_space<vmem>>, vector<512x64xf32>
    %cst = arith.constant dense<0.000000e+00> : vector<32x64xf32>
    %2 = tpu.matmul %0, %1, %cst {dimension_numbers = #tpu.dot_dimension_numbers<[1], [0], [0], [1], [0, 0, 1, 1], [], []>} : vector<32x512xf32>, vector<512x64xf32>, vector<32x64xf32> -> vector<32x64xf32>
    %cst_3 = arith.constant dense<0.000000e+00> : vector<64xf32>
    %3 = vector.multi_reduction <add>, %2, %cst_3 [0] : vector<32x64xf32> to vector<64xf32>
    %4 = vector.shape_cast %3 : vector<64xf32> to vector<1x64xf32>
    %cst_4 = arith.constant 3.125000e-02 : f32
    %5 = vector.broadcast %cst_4 : f32 to vector<1x64xf32>
    %6 = arith.mulf %4, %5 : vector<1x64xf32>
    %7 = vector.broadcast %6 : vector<1x64xf32> to vector<32x64xf32>
    %8 = arith.subf %2, %7 : vector<32x64xf32>
    %9 = arith.mulf %8, %8 : vector<32x64xf32>
    %cst_5 = arith.constant dense<0.000000e+00> : vector<64xf32>
    %10 = vector.multi_reduction <add>, %9, %cst_5 [0] : vector<32x64xf32> to vector<64xf32>
    %11 = vector.shape_cast %10 : vector<64xf32> to vector<1x64xf32>
    %cst_6 = arith.constant 3.125000e-02 : f32
    %12 = vector.broadcast %cst_6 : f32 to vector<1x64xf32>
    %13 = arith.mulf %11, %12 : vector<1x64xf32>
    %c0_7 = arith.constant 0 : index
    %c0_8 = arith.constant 0 : index
    %14 = vector.load %arg2[%c0_7, %c0_8] : memref<1x64xf32, #tpu.memory_space<vmem>>, vector<1x64xf32>
    %cst_9 = arith.constant 9.99999974E-6 : f32
    %15 = vector.broadcast %cst_9 : f32 to vector<1x64xf32>
    %16 = arith.addf %13, %15 : vector<1x64xf32>
    %17 = math.rsqrt %16 : vector<1x64xf32>
    %18 = arith.mulf %14, %17 : vector<1x64xf32>
    %19 = vector.broadcast %18 : vector<1x64xf32> to vector<32x64xf32>
    %20 = arith.mulf %8, %19 : vector<32x64xf32>
    %c0_10 = arith.constant 0 : index
    %c0_11 = arith.constant 0 : index
    %21 = vector.load %arg3[%c0_10, %c0_11] : memref<1x64xf32, #tpu.memory_space<vmem>>, vector<1x64xf32>
    %22 = vector.broadcast %21 : vector<1x64xf32> to vector<32x64xf32>
    %23 = arith.addf %20, %22 : vector<32x64xf32>
    %cst_12 = arith.constant 0.000000e+00 : f32
    %24 = vector.broadcast %cst_12 : f32 to vector<32x64xf32>
    %25 = arith.cmpf ogt, %23, %24 : vector<32x64xf32>
    %cst_13 = arith.constant 2.000000e-01 : f32
    %26 = vector.broadcast %cst_13 : f32 to vector<32x64xf32>
    %27 = arith.mulf %26, %23 : vector<32x64xf32>
    %28 = arith.select %25, %23, %27 : vector<32x64xi1>, vector<32x64xf32>
    %c0_14 = arith.constant 0 : index
    %c0_15 = arith.constant 0 : index
    %29 = vector.load %arg4[%c0_14, %c0_15] : memref<32x64xf32, #tpu.memory_space<vmem>>, vector<32x64xf32>
    tpu.vector_store %arg4[%c0_14, %c0_15], %28 {strides = array<i32>} : memref<32x64xf32, #tpu.memory_space<vmem>>, vector<32x64xf32>,
    return
  }
}

module attributes {stable_mosaic.version = 11 : i64} {
  func.func @_conv_bias_act_kernel(%arg0: i32, %arg1: memref<2x1024xf32, #tpu.memory_space<vmem>>, %arg2: memref<1024x1xf32, #tpu.memory_space<vmem>>, %arg3: memref<1x1xf32, #tpu.memory_space<vmem>>, %arg4: memref<2x1xf32, #tpu.memory_space<vmem>>) attributes {dimension_semantics = [#tpu.dimension_semantics<parallel>], iteration_bounds = array<i64: 1>, scalar_prefetch = 0 : i64, scratch_operands = 0 : i64, tpu.core_type = #tpu.core_type<tc>, window_params = [{transform_indices = @transform_0, window_bounds = array<i64: 2, 1024>}, {pipeline_mode = #tpu.pipeline_mode<synchronous>, transform_indices = @transform_1, window_bounds = array<i64: 1024, 1>}, {pipeline_mode = #tpu.pipeline_mode<synchronous>, transform_indices = @transform_2, window_bounds = array<i64: 1, 1>}, {transform_indices = @transform_3, window_bounds = array<i64: 2, 1>}]} {
    %c0 = arith.constant 0 : index
    %c0_0 = arith.constant 0 : index
    %0 = vector.load %arg1[%c0, %c0_0] : memref<2x1024xf32, #tpu.memory_space<vmem>>, vector<2x1024xf32>
    %c0_1 = arith.constant 0 : index
    %c0_2 = arith.constant 0 : index
    %1 = vector.load %arg2[%c0_1, %c0_2] : memref<1024x1xf32, #tpu.memory_space<vmem>>, vector<1024x1xf32>
    %cst = arith.constant dense<0.000000e+00> : vector<2x1xf32>
    %2 = tpu.matmul %0, %1, %cst {dimension_numbers = #tpu.dot_dimension_numbers<[1], [0], [0], [1], [0, 0, 1, 1], [], []>} : vector<2x1024xf32>, vector<1024x1xf32>, vector<2x1xf32> -> vector<2x1xf32>
    %c0_3 = arith.constant 0 : index
    %c0_4 = arith.constant 0 : index
    %3 = vector.load %arg3[%c0_3, %c0_4] : memref<1x1xf32, #tpu.memory_space<vmem>>, vector<1x1xf32>
    %4 = vector.broadcast %3 : vector<1x1xf32> to vector<2x1xf32>
    %5 = arith.addf %2, %4 : vector<2x1xf32>
    %cst_5 = arith.constant 0.000000e+00 : f32
    %6 = vector.broadcast %cst_5 : f32 to vector<2x1xf32>
    %7 = arith.subf %6, %5 : vector<2x1xf32>
    %8 = math.exp %7 : vector<2x1xf32>
    %cst_6 = arith.constant 1.000000e+00 : f32
    %9 = vector.broadcast %cst_6 : f32 to vector<2x1xf32>
    %10 = arith.addf %9, %8 : vector<2x1xf32>
    %cst_7 = arith.constant 1.000000e+00 : f32
    %11 = vector.broadcast %cst_7 : f32 to vector<2x1xf32>
    %12 = arith.divf %11, %10 : vector<2x1xf32>
    %c0_8 = arith.constant 0 : index
    %c0_9 = arith.constant 0 : index
    %13 = vector.load %arg4[%c0_8, %c0_9] : memref<2x1xf32, #tpu.memory_space<vmem>>, vector<2x1xf32>
    tpu.vector_store %arg4[%c0_8, %c0_9], %12 {strides = array<i32>} : memref<2x1xf32, #tpu.memory_space<vmem>>, vector<2x1xf32>,
    return
  }
  func.func @transform_0(%arg0: i32) -> (i32, i32) {
    %c0_i32 = arith.constant 0 : i32
    %c0_i32_0 = arith.constant 0 : i32
    return %arg0, %c0_i32 : i32, i32
  }
  func.func @transform_1(%arg0: i32) -> (i32, i32) {
    %c0_i32 = arith.constant 0 : i32
    %c0_i32_0 = arith.constant 0 : i32
    %c0_i32_1 = arith.constant 0 : i32
    return %c0_i32, %c0_i32_0 : i32, i32
  }
  func.func @transform_2(%arg0: i32) -> (i32, i32) {
    %c0_i32 = arith.constant 0 : i32
    %c0_i32_0 = arith.constant 0 : i32
    %c0_i32_1 = arith.constant 0 : i32
    return %c0_i32, %c0_i32_0 : i32, i32
  }
  func.func @transform_3(%arg0: i32) -> (i32, i32) {
    %c0_i32 = arith.constant 0 : i32
    %c0_i32_0 = arith.constant 0 : i32
    return %arg0, %c0_i32 : i32, i32
  }
}

</mosaic_0001>

<llo_original>
// kernel: discriminator_forward.5
$region0: #{discriminator_forward.5}
  #allocation0 [shape = 'u32[]', space=smem, size = 0x4, offset = 0x4, fixed_abs, tag = 'smem constant byte address 0x4 - core index']
  #allocation1 [shape = 'u32[144,128]{1,0:T(1,128)}', space=vmem, size = 0x12000, scoped, tag = 'internal scratch']
  %s0 = inlined_call_operand.vmem [shape: f32[2048,48], index: 0, kind: input, shape index: {}]
  %s1 = inlined_call_operand.vmem [shape: f32[48,8], index: 1, kind: input, shape index: {}]
  %s2 = inlined_call_operand.vmem [shape: f32[1,8], index: 2, kind: input, shape index: {}]
  %s3 = inlined_call_operand.vmem [shape: f32[2048,8], index: 3, kind: output, shape index: {}]
  %s4 = sld [smem:[#allocation0]]
  $region45: #{discriminator_forward.5} parent=0
    _
  %s6 = ssub.s32 1, %s4
  %s7 = scalar_select 0, %s6, %s4
  loop: start=0, step=1, limit=4
  $region2: #{discriminator_forward.5} parent=0 // loop_pre_header
    _
  $region3: #{discriminator_forward.5} parent=0 // loop_header
    %s9 = sphi 0, %s13
    %p10 = scmp.ge.s32.totalorder %s9, 4
    %s19 = sphi 0, %s21
    %s22 = sphi 0, %s19
    %s23 = sphi 0, %s22
    %s39 = sphi 0, %s23
    %s43 = sphi 0, %s43
    %s45 = sphi 0, %s43
    %s46 = sphi 0, %s45
    %s60 = sphi 0, %s46
    %s64 = sphi 0, %s64
    %s66 = sphi 0, %s64
    %s67 = sphi 0, %s66
    %s81 = sphi 0, %s67
    %s87 = sphi 0, %s89
    %s90 = sphi 0, %s87
    %s91 = sphi 0, %s90
    %s107 = sphi 0, %s91
  $region4: #{discriminator_forward.5} parent=0 // loop_header_branch
    %12 = sbr.rel (%p10) target = $region8
  $region5: #{discriminator_forward.5} parent=0 // loop_body
    %s14 = ssub.s32 %s9, 1
    %s15 = ssub.s32 %s9, 2
    %s16 = sadd.s32 %s9, 1
    %s17 = ssub.s32 %s9, %s16
    %p18 = scmp.eq.s32.totalorder %s17, 0
    %s20 = sadd.s32 %s19, 1
    %s21 = scalar_select %p18, %s19, %s20
    %p24 = pneg %p18
    %p25 = scmp.eq.s32.totalorder %s9, 1
    %p26 = por %p24, %p25
    %p27 = scmp.ne.s32.totalorder %s19, %s22
    %p28 = scmp.eq.s32.totalorder %s9, 0
    %p29 = por %p27, %p28
    %p30 = scmp.ne.s32.totalorder %s19, %s22
    %p31 = scmp.eq.s32.totalorder %s14, 1
    %p32 = por %p30, %p31
    %p33 = scmp.ne.s32.totalorder %s22, %s23
    %p34 = scmp.eq.s32.totalorder %s14, 0
    %p35 = por %p33, %p34
    %p36 = scmp.ne.s32.totalorder %s22, %s23
    %p37 = scmp.eq.s32.totalorder %s15, 1
    %p38 = por %p36, %p37
    %p40 = scmp.ne.s32.totalorder %s23, %s39
    %p41 = scmp.eq.s32.totalorder %s15, 0
    %p42 = por %p40, %p41
    %s44 = sadd.s32 %s43, 1
    %p47 = scmp.eq.s32.totalorder %s9, 1
    %p48 = scmp.ne.s32.totalorder %s43, %s45
    %p49 = scmp.eq.s32.totalorder %s9, 0
    %p50 = por %p48, %p49
    %p51 = scmp.ne.s32.totalorder %s43, %s45
    %p52 = scmp.eq.s32.totalorder %s14, 1
    %p53 = por %p51, %p52
    %p54 = scmp.ne.s32.totalorder %s45, %s46
    %p55 = scmp.eq.s32.totalorder %s14, 0
    %p56 = por %p54, %p55
    %p57 = scmp.ne.s32.totalorder %s45, %s46
    %p58 = scmp.eq.s32.totalorder %s15, 1
    %p59 = por %p57, %p58
    %p61 = scmp.ne.s32.totalorder %s46, %s60
    %p62 = scmp.eq.s32.totalorder %s15, 0
    %p63 = por %p61, %p62
    %s65 = sadd.s32 %s64, 1
    %p68 = scmp.eq.s32.totalorder %s9, 1
    %p69 = scmp.ne.s32.totalorder %s64, %s66
    %p70 = scmp.eq.s32.totalorder %s9, 0
    %p71 = por %p69, %p70
    %p72 = scmp.ne.s32.totalorder %s64, %s66
    %p73 = scmp.eq.s32.totalorder %s14, 1
    %p74 = por %p72, %p73
    %p75 = scmp.ne.s32.totalorder %s66, %s67
    %p76 = scmp.eq.s32.totalorder %s14, 0
    %p77 = por %p75, %p76
    %p78 = scmp.ne.s32.totalorder %s66, %s67
    %p79 = scmp.eq.s32.totalorder %s15, 1
    %p80 = por %p78, %p79
    %p82 = scmp.ne.s32.totalorder %s67, %s81
    %p83 = scmp.eq.s32.totalorder %s15, 0
    %p84 = por %p82, %p83
    %s85 = ssub.s32 %s9, %s16
    %p86 = scmp.eq.s32.totalorder %s85, 0
    %s88 = sadd.s32 %s87, 1
    %s89 = scalar_select %p86, %s87, %s88
    %p92 = pneg %p86
    %p93 = scmp.eq.s32.totalorder %s9, 1
    %p94 = por %p92, %p93
    %p95 = scmp.ne.s32.totalorder %s87, %s90
    %p96 = scmp.eq.s32.totalorder %s9, 0
    %p97 = por %p95, %p96
    %p98 = scmp.ne.s32.totalorder %s87, %s90
    %p99 = scmp.eq.s32.totalorder %s14, 1
    %p100 = por %p98, %p99
    %p101 = scmp.ne.s32.totalorder %s90, %s91
    %p102 = scmp.eq.s32.totalorder %s14, 0
    %p103 = por %p101, %p102
    %p104 = scmp.ne.s32.totalorder %s90, %s91
    %p105 = scmp.eq.s32.totalorder %s15, 1
    %p106 = por %p104, %p105
    %p108 = scmp.ne.s32.totalorder %s91, %s107
    %p109 = scmp.eq.s32.totalorder %s15, 0
    %p110 = por %p108, %p109
    %p111 = scmp.le.s32.totalorder 1, %s9
    %p112 = scmp.lt.s32.totalorder %s9, 3
    %p113 = pnand %p111, %p112
    %p114 = pneg %p113
    // Predicated region
    $region9: #{discriminator_forward.5} parent=5 // pred_check
      _
    $region10: #{discriminator_forward.5} parent=5 // pred_check_branch
      %116 = sbr.rel (%p113) target = $region12
    $region11: #{discriminator_forward.5} parent=5 // pred_region
      %s117 = ssub.s32 %s9, 1
      // Predicated region
      $region13: #{discriminator_forward.5} parent=11 // pred_check
        %p118 = pneg %p56
      $region14: #{discriminator_forward.5} parent=11 // pred_check_branch
        %120 = sbr.rel (%p118) target = $region16
      $region15: #{discriminator_forward.5} parent=11 // pred_region
        _
      $region16: #{discriminator_forward.5} parent=11 // pred_fallthru
        _
      // Predicated region
      $region17: #{discriminator_forward.5} parent=11 // pred_check
        %p121 = pneg %p77
      $region18: #{discriminator_forward.5} parent=11 // pred_check_branch
        %123 = sbr.rel (%p121) target = $region20
      $region19: #{discriminator_forward.5} parent=11 // pred_region
        _
      $region20: #{discriminator_forward.5} parent=11 // pred_fallthru
        _
    $region12: #{discriminator_forward.5} parent=5 // pred_fallthru
      _
    %p124 = scmp.lt.s32.totalorder %s9, 2
    // Predicated region
    $region21: #{discriminator_forward.5} parent=5 // pred_check
      %p125 = pneg %p124
    $region22: #{discriminator_forward.5} parent=5 // pred_check_branch
      %127 = sbr.rel (%p125) target = $region24
    $region23: #{discriminator_forward.5} parent=5 // pred_region
      // Predicated region
      $region25: #{discriminator_forward.5} parent=23 // pred_check
        %p128 = pneg %p29
      $region26: #{discriminator_forward.5} parent=23 // pred_check_branch
        %130 = sbr.rel (%p128) target = $region28
      $region27: #{discriminator_forward.5} parent=23 // pred_region
        %s131 = smul.u32 128, %s9
        %p132 = scmp.lt.s32.totalorder %s131, 255
        %s133 = scalar_select %p132, %s131, 255
        %s134 = smul.addr %s133, 8
        %s135 = scalar_lea.vmem %s0, %s134
        %s136 = smul.u32 128, %s9
      $region28: #{discriminator_forward.5} parent=23 // pred_fallthru
        _
    $region24: #{discriminator_forward.5} parent=5 // pred_fallthru
      _
    %p137 = scmp.le.s32.totalorder 1, %s9
    %p138 = scmp.lt.s32.totalorder %s9, 3
    %p139 = pnand %p137, %p138
    %p140 = pneg %p139
    // Predicated region
    $region29: #{discriminator_forward.5} parent=5 // pred_check
      _
    $region30: #{discriminator_forward.5} parent=5 // pred_check_branch
      %142 = sbr.rel (%p139) target = $region32
    $region31: #{discriminator_forward.5} parent=5 // pred_region
      %s143 = ssub.s32 %s9, 1
      %s144 = smul.u32 128, %s14
      %p145 = scmp.lt.s32.totalorder %s144, 255
      %s146 = scalar_select %p145, %s144, 255
      %s147 = smul.addr %s146, 8
      %s148 = scalar_lea.vmem %s0, %s147
      %p149 = pneg %p35
      %p150 = pneg %p32
      %p151 = pneg %p56
      %p152 = pneg %p53
      %p153 = pneg %p77
      %p154 = pneg %p74
      %p155 = pneg %p103
      %p156 = pneg %p100
      %s157 = smul.u32 128, %s14
      %p158 = scmp.lt.s32.totalorder %s157, 255
      %s159 = scalar_select %p158, %s157, 255
      %s160 = smul.addr %s159, 8
      %s161 = scalar_lea.vmem %s3, %s160
      %s162 = smul.u32 128, %s14
      %p163 = scmp.lt.s32.totalorder %s162, 255
      %s164 = scalar_select %p163, %s162, 255
      %s165 = smul.addr %s164, 8
      %s166 = scalar_lea.vmem %s0, %s165
      %s167 = smul.u32 128, %s14
      %s168 = smul.u32 128, %s14
      %p169 = scmp.lt.s32.totalorder %s168, 255
      %s170 = scalar_select %p169, %s168, 255
      %s171 = smul.addr %s170, 8
      %s172 = scalar_lea.vmem %s3, %s171
      %s173 = smul.u32 128, %s14
      %v174 = vld [vmem:[%s166] sm:$0xff]
      %v175 = vld [vmem:[%s166 + $0x8] sm:$0xff]
      %v176 = vld [vmem:[%s166 + $0x10] sm:$0xff]
      %v177 = vld [vmem:[%s166 + $0x18] sm:$0xff]
      %v178 = vld [vmem:[%s166 + $0x20] sm:$0xff]
      %v179 = vld [vmem:[%s166 + $0x28] sm:$0xff]
      %v180 = vld [vmem:[%s166 + $0x30] sm:$0xff]
      %v181 = vld [vmem:[%s166 + $0x38] sm:$0xff]
      %v182 = vld [vmem:[%s166 + $0x40] sm:$0xff]
      %v183 = vld [vmem:[%s166 + $0x48] sm:$0xff]
      %v184 = vld [vmem:[%s166 + $0x50] sm:$0xff]
      %v185 = vld [vmem:[%s166 + $0x58] sm:$0xff]
      %v186 = vld [vmem:[%s166 + $0x60] sm:$0xff]
      %v187 = vld [vmem:[%s166 + $0x68] sm:$0xff]
      %v188 = vld [vmem:[%s166 + $0x70] sm:$0xff]
      %v189 = vld [vmem:[%s166 + $0x78] sm:$0xff]
      %v190 = vld [vmem:[%s166 + $0x80] sm:$0xff]
      %v191 = vld [vmem:[%s166 + $0x88] sm:$0xff]
      %v192 = vld [vmem:[%s166 + $0x90] sm:$0xff]
      %v193 = vld [vmem:[%s166 + $0x98] sm:$0xff]
      %v194 = vld [vmem:[%s166 + $0xa0] sm:$0xff]
      %v195 = vld [vmem:[%s166 + $0xa8] sm:$0xff]
      %v196 = vld [vmem:[%s166 + $0xb0] sm:$0xff]
      %v197 = vld [vmem:[%s166 + $0xb8] sm:$0xff]
      %v198 = vld [vmem:[%s166 + $0xc0] sm:$0xff]
      %v199 = vld [vmem:[%s166 + $0xc8] sm:$0xff]
      %v200 = vld [vmem:[%s166 + $0xd0] sm:$0xff]
      %v201 = vld [vmem:[%s166 + $0xd8] sm:$0xff]
      %v202 = vld [vmem:[%s166 + $0xe0] sm:$0xff]
      %v203 = vld [vmem:[%s166 + $0xe8] sm:$0xff]
      %v204 = vld [vmem:[%s166 + $0xf0] sm:$0xff]
      %v205 = vld [vmem:[%s166 + $0xf8] sm:$0xff]
      %v206 = vld [vmem:[%s166 + $0x100] sm:$0xff]
      %v207 = vld [vmem:[%s166 + $0x108] sm:$0xff]
      %v208 = vld [vmem:[%s166 + $0x110] sm:$0xff]
      %v209 = vld [vmem:[%s166 + $0x118] sm:$0xff]
      %v210 = vld [vmem:[%s166 + $0x120] sm:$0xff]
      %v211 = vld [vmem:[%s166 + $0x128] sm:$0xff]
      %v212 = vld [vmem:[%s166 + $0x130] sm:$0xff]
      %v213 = vld [vmem:[%s166 + $0x138] sm:$0xff]
      %v214 = vld [vmem:[%s166 + $0x140] sm:$0xff]
      %v215 = vld [vmem:[%s166 + $0x148] sm:$0xff]
      %v216 = vld [vmem:[%s166 + $0x150] sm:$0xff]
      %v217 = vld [vmem:[%s166 + $0x158] sm:$0xff]
      %v218 = vld [vmem:[%s166 + $0x160] sm:$0xff]
      %v219 = vld [vmem:[%s166 + $0x168] sm:$0xff]
      %v220 = vld [vmem:[%s166 + $0x170] sm:$0xff]
      %v221 = vld [vmem:[%s166 + $0x178] sm:$0xff]
      %v222 = vld [vmem:[%s166 + $0x180] sm:$0xff]
      %v223 = vld [vmem:[%s166 + $0x188] sm:$0xff]
      %v224 = vld [vmem:[%s166 + $0x190] sm:$0xff]
      %v225 = vld [vmem:[%s166 + $0x198] sm:$0xff]
      %v226 = vld [vmem:[%s166 + $0x1a0] sm:$0xff]
      %v227 = vld [vmem:[%s166 + $0x1a8] sm:$0xff]
      %v228 = vld [vmem:[%s166 + $0x1b0] sm:$0xff]
      %v229 = vld [vmem:[%s166 + $0x1b8] sm:$0xff]
      %v230 = vld [vmem:[%s166 + $0x1c0] sm:$0xff]
      %v231 = vld [vmem:[%s166 + $0x1c8] sm:$0xff]
      %v232 = vld [vmem:[%s166 + $0x1d0] sm:$0xff]
      %v233 = vld [vmem:[%s166 + $0x1d8] sm:$0xff]
      %v234 = vld [vmem:[%s166 + $0x1e0] sm:$0xff]
      %v235 = vld [vmem:[%s166 + $0x1e8] sm:$0xff]
      %v236 = vld [vmem:[%s166 + $0x1f0] sm:$0xff]
      %v237 = vld [vmem:[%s166 + $0x1f8] sm:$0xff]
      %v238 = vld [vmem:[%s166 + $0x200] sm:$0xff]
      %v239 = vld [vmem:[%s166 + $0x208] sm:$0xff]
      %v240 = vld [vmem:[%s166 + $0x210] sm:$0xff]
      %v241 = vld [vmem:[%s166 + $0x218] sm:$0xff]
      %v242 = vld [vmem:[%s166 + $0x220] sm:$0xff]
      %v243 = vld [vmem:[%s166 + $0x228] sm:$0xff]
      %v244 = vld [vmem:[%s166 + $0x230] sm:$0xff]
      %v245 = vld [vmem:[%s166 + $0x238] sm:$0xff]
      %v246 = vld [vmem:[%s166 + $0x240] sm:$0xff]
      %v247 = vld [vmem:[%s166 + $0x248] sm:$0xff]
      %v248 = vld [vmem:[%s166 + $0x250] sm:$0xff]
      %v249 = vld [vmem:[%s166 + $0x258] sm:$0xff]
      %v250 = vld [vmem:[%s166 + $0x260] sm:$0xff]
      %v251 = vld [vmem:[%s166 + $0x268] sm:$0xff]
      %v252 = vld [vmem:[%s166 + $0x270] sm:$0xff]
      %v253 = vld [vmem:[%s166 + $0x278] sm:$0xff]
      %v254 = vld [vmem:[%s166 + $0x280] sm:$0xff]
      %v255 = vld [vmem:[%s166 + $0x288] sm:$0xff]
      %v256 = vld [vmem:[%s166 + $0x290] sm:$0xff]
      %v257 = vld [vmem:[%s166 + $0x298] sm:$0xff]
      %v258 = vld [vmem:[%s166 + $0x2a0] sm:$0xff]
      %v259 = vld [vmem:[%s166 + $0x2a8] sm:$0xff]
      %v260 = vld [vmem:[%s166 + $0x2b0] sm:$0xff]
      %v261 = vld [vmem:[%s166 + $0x2b8] sm:$0xff]
      %v262 = vld [vmem:[%s166 + $0x2c0] sm:$0xff]
      %v263 = vld [vmem:[%s166 + $0x2c8] sm:$0xff]
      %v264 = vld [vmem:[%s166 + $0x2d0] sm:$0xff]
      %v265 = vld [vmem:[%s166 + $0x2d8] sm:$0xff]
      %v266 = vld [vmem:[%s166 + $0x2e0] sm:$0xff]
      %v267 = vld [vmem:[%s166 + $0x2e8] sm:$0xff]
      %v268 = vld [vmem:[%s166 + $0x2f0] sm:$0xff]
      %v269 = vld [vmem:[%s166 + $0x2f8] sm:$0xff]
      %v270 = vld [vmem:[%s166 + $0x300] sm:$0xff]
      %v271 = vld [vmem:[%s166 + $0x308] sm:$0xff]
      %v272 = vld [vmem:[%s166 + $0x310] sm:$0xff]
      %v273 = vld [vmem:[%s166 + $0x318] sm:$0xff]
      %v274 = vld [vmem:[%s166 + $0x320] sm:$0xff]
      %v275 = vld [vmem:[%s166 + $0x328] sm:$0xff]
      %v276 = vld [vmem:[%s166 + $0x330] sm:$0xff]
      %v277 = vld [vmem:[%s166 + $0x338] sm:$0xff]
      %v278 = vld [vmem:[%s166 + $0x340] sm:$0xff]
      %v279 = vld [vmem:[%s166 + $0x348] sm:$0xff]
      %v280 = vld [vmem:[%s166 + $0x350] sm:$0xff]
      %v281 = vld [vmem:[%s166 + $0x358] sm:$0xff]
      %v282 = vld [vmem:[%s166 + $0x360] sm:$0xff]
      %v283 = vld [vmem:[%s166 + $0x368] sm:$0xff]
      %v284 = vld [vmem:[%s166 + $0x370] sm:$0xff]
      %v285 = vld [vmem:[%s166 + $0x378] sm:$0xff]
      %v286 = vld [vmem:[%s166 + $0x380] sm:$0xff]
      %v287 = vld [vmem:[%s166 + $0x388] sm:$0xff]
      %v288 = vld [vmem:[%s166 + $0x390] sm:$0xff]
      %v289 = vld [vmem:[%s166 + $0x398] sm:$0xff]
      %v290 = vld [vmem:[%s166 + $0x3a0] sm:$0xff]
      %v291 = vld [vmem:[%s166 + $0x3a8] sm:$0xff]
      %v292 = vld [vmem:[%s166 + $0x3b0] sm:$0xff]
      %v293 = vld [vmem:[%s166 + $0x3b8] sm:$0xff]
      %v294 = vld [vmem:[%s166 + $0x3c0] sm:$0xff]
      %v295 = vld [vmem:[%s166 + $0x3c8] sm:$0xff]
      %v296 = vld [vmem:[%s166 + $0x3d0] sm:$0xff]
      %v297 = vld [vmem:[%s166 + $0x3d8] sm:$0xff]
      %v298 = vld [vmem:[%s166 + $0x3e0] sm:$0xff]
      %v299 = vld [vmem:[%s166 + $0x3e8] sm:$0xff]
      %v300 = vld [vmem:[%s166 + $0x3f0] sm:$0xff]
      %v301 = vld [vmem:[%s166 + $0x3f8] sm:$0xff]
      %v302 = vld [vmem:[%s1] sm:$0xff]
      %v303 = vld [vmem:[%s1 + $0x8] sm:$0xff]
      %v304 = vld [vmem:[%s1 + $0x10] sm:$0xff]
      %v305 = vld [vmem:[%s1 + $0x18] sm:$0xff]
      %v306 = vld [vmem:[%s1 + $0x20] sm:$0xff]
      %v307 = vld [vmem:[%s1 + $0x28] sm:$0xff]
      %v308 = vld [vmem:[%s2] sm:$0x1]
      %v310 = vlaneseq
      %v311 = vshrl.u32 %v310, 7
      %v312 = vsub.s32 0, %v311
      %v313 = vrot.slane %v308, %v312
      %vm315 = vcmask 392192
      %v317 = vsel %vm315, %v174, 0
      %v320 = vsel %vm315, %v175, 0
      %v323 = vsel %vm315, %v176, 0
      %v326 = vsel %vm315, %v177, 0
      %v329 = vsel %vm315, %v178, 0
      %v332 = vsel %vm315, %v179, 0
      %v335 = vsel %vm315, %v180, 0
      %v338 = vsel %vm315, %v181, 0
      %v341 = vsel %vm315, %v182, 0
      %v344 = vsel %vm315, %v183, 0
      %v347 = vsel %vm315, %v184, 0
      %v350 = vsel %vm315, %v185, 0
      %v353 = vsel %vm315, %v186, 0
      %v356 = vsel %vm315, %v187, 0
      %v359 = vsel %vm315, %v188, 0
      %v362 = vsel %vm315, %v189, 0
      %v365 = vsel %vm315, %v190, 0
      %v368 = vsel %vm315, %v191, 0
      %v371 = vsel %vm315, %v192, 0
      %v374 = vsel %vm315, %v193, 0
      %v377 = vsel %vm315, %v194, 0
      %v380 = vsel %vm315, %v195, 0
      %v383 = vsel %vm315, %v196, 0
      %v386 = vsel %vm315, %v197, 0
      %v389 = vsel %vm315, %v198, 0
      %v392 = vsel %vm315, %v199, 0
      %v395 = vsel %vm315, %v200, 0
      %v398 = vsel %vm315, %v201, 0
      %v401 = vsel %vm315, %v202, 0
      %v404 = vsel %vm315, %v203, 0
      %v407 = vsel %vm315, %v204, 0
      %v410 = vsel %vm315, %v205, 0
      %v413 = vsel %vm315, %v206, 0
      %v416 = vsel %vm315, %v207, 0
      %v419 = vsel %vm315, %v208, 0
      %v422 = vsel %vm315, %v209, 0
      %v425 = vsel %vm315, %v210, 0
      %v428 = vsel %vm315, %v211, 0
      %v431 = vsel %vm315, %v212, 0
      %v434 = vsel %vm315, %v213, 0
      %v437 = vsel %vm315, %v214, 0
      %v440 = vsel %vm315, %v215, 0
      %v443 = vsel %vm315, %v216, 0
      %v446 = vsel %vm315, %v217, 0
      %v449 = vsel %vm315, %v218, 0
      %v452 = vsel %vm315, %v219, 0
      %v455 = vsel %vm315, %v220, 0
      %v458 = vsel %vm315, %v221, 0
      %v461 = vsel %vm315, %v222, 0
      %v464 = vsel %vm315, %v223, 0
      %v467 = vsel %vm315, %v224, 0
      %v470 = vsel %vm315, %v225, 0
      %v473 = vsel %vm315, %v226, 0
      %v476 = vsel %vm315, %v227, 0
      %v479 = vsel %vm315, %v228, 0
      %v482 = vsel %vm315, %v229, 0
      %v485 = vsel %vm315, %v230, 0
      %v488 = vsel %vm315, %v231, 0
      %v491 = vsel %vm315, %v232, 0
      %v494 = vsel %vm315, %v233, 0
      %v497 = vsel %vm315, %v234, 0
      %v500 = vsel %vm315, %v235, 0
      %v503 = vsel %vm315, %v236, 0
      %v506 = vsel %vm315, %v237, 0
      %v509 = vsel %vm315, %v238, 0
      %v512 = vsel %vm315, %v239, 0
      %v515 = vsel %vm315, %v240, 0
      %v518 = vsel %vm315, %v241, 0
      %v521 = vsel %vm315, %v242, 0
      %v524 = vsel %vm315, %v243, 0
      %v527 = vsel %vm315, %v244, 0
      %v530 = vsel %vm315, %v245, 0
      %v533 = vsel %vm315, %v246, 0
      %v536 = vsel %vm315, %v247, 0
      %v539 = vsel %vm315, %v248, 0
      %v542 = vsel %vm315, %v249, 0
      %v545 = vsel %vm315, %v250, 0
      %v548 = vsel %vm315, %v251, 0
      %v551 = vsel %vm315, %v252, 0
      %v554 = vsel %vm315, %v253, 0
      %v557 = vsel %vm315, %v254, 0
      %v560 = vsel %vm315, %v255, 0
      %v563 = vsel %vm315, %v256, 0
      %v566 = vsel %vm315, %v257, 0
      %v569 = vsel %vm315, %v258, 0
      %v572 = vsel %vm315, %v259, 0
      %v575 = vsel %vm315, %v260, 0
      %v578 = vsel %vm315, %v261, 0
      %v581 = vsel %vm315, %v262, 0
      %v584 = vsel %vm315, %v263, 0
      %v587 = vsel %vm315, %v264, 0
      %v590 = vsel %vm315, %v265, 0
      %v593 = vsel %vm315, %v266, 0
      %v596 = vsel %vm315, %v267, 0
      %v599 = vsel %vm315, %v268, 0
      %v602 = vsel %vm315, %v269, 0
      %v605 = vsel %vm315, %v270, 0
      %v608 = vsel %vm315, %v271, 0
      %v611 = vsel %vm315, %v272, 0
      %v614 = vsel %vm315, %v273, 0
      %v617 = vsel %vm315, %v274, 0
      %v620 = vsel %vm315, %v275, 0
      %v623 = vsel %vm315, %v276, 0
      %v626 = vsel %vm315, %v277, 0
      %v629 = vsel %vm315, %v278, 0
      %v632 = vsel %vm315, %v279, 0
      %v635 = vsel %vm315, %v280, 0
      %v638 = vsel %vm315, %v281, 0
      %v641 = vsel %vm315, %v282, 0
      %v644 = vsel %vm315, %v283, 0
      %v647 = vsel %vm315, %v284, 0
      %v650 = vsel %vm315, %v285, 0
      %v653 = vsel %vm315, %v286, 0
      %v656 = vsel %vm315, %v287, 0
      %v659 = vsel %vm315, %v288, 0
      %v662 = vsel %vm315, %v289, 0
      %v665 = vsel %vm315, %v290, 0
      %v668 = vsel %vm315, %v291, 0
      %v671 = vsel %vm315, %v292, 0
      %v674 = vsel %vm315, %v293, 0
      %v677 = vsel %vm315, %v294, 0
      %v680 = vsel %vm315, %v295, 0
      %v683 = vsel %vm315, %v296, 0
      %v686 = vsel %vm315, %v297, 0
      %v689 = vsel %vm315, %v298, 0
      %v692 = vsel %vm315, %v299, 0
      %v695 = vsel %vm315, %v300, 0
      %v698 = vsel %vm315, %v301, 0
      %700 = vmatprep.subr.mxu0 0.0
      %701 = vmatpush1.msra.mxu0 %v302
      %702 = vmatprep.subr.mxu0 0.0
      %703 = vmatpush1.msra.mxu0 %v303
      %704 = vmatprep.subr.mxu0 0.0
      %705 = vmatpush1.msra.mxu0 %v304
      %706 = vmatprep.subr.mxu0 0.0
      %707 = vmatpush1.msra.mxu0 %v305
      %708 = vmatprep.subr.mxu0 0.0
      %709 = vmatpush1.msra.mxu0 %v306
      %710 = vmatprep.subr.mxu0 0.0
      %711 = vmatpush1.msra.mxu0 %v307
      %712 = vmatprep.subr.mxu0 0.0
      %713 = vmatpush1.msra.mxu0 0.0
      %714 = vmatprep.subr.mxu0 0.0
      %715 = vmatpush1.msra.mxu0 0.0
      %716 = vmatprep.subr.mxu0 0.0
      %717 = vmatpush1.msra.mxu0 0.0
      %718 = vmatprep.subr.mxu0 0.0
      %719 = vmatpush1.msra.mxu0 0.0
      %720 = vmatprep.subr.mxu0 0.0
      %721 = vmatpush1.msra.mxu0 0.0
      %722 = vmatprep.subr.mxu0 0.0
      %723 = vmatpush1.msra.mxu0 0.0
      %724 = vmatprep.subr.mxu0 0.0
      %725 = vmatpush1.msra.mxu0 0.0
      %726 = vmatprep.subr.mxu0 0.0
      %727 = vmatpush1.msra.mxu0 0.0
      %728 = vmatprep.subr.mxu0 0.0
      %729 = vmatpush1.msra.mxu0 0.0
      %730 = vmatprep.subr.mxu0 0.0
      %731 = vmatpush1.msra.mxu0 0.0
      %732 = vmatprep.subr.mxu0 0.0
      %733 = vmatpush1.msra.mxu0 0.0
      %734 = vmatprep.subr.mxu0 0.0
      %735 = vmatpush1.msra.mxu0 0.0
      %736 = vmatprep.subr.mxu0 0.0
      %737 = vmatpush1.msra.mxu0 0.0
      %738 = vmatprep.subr.mxu0 0.0
      %739 = vmatpush1.msra.mxu0 0.0
      %740 = vmatprep.subr.mxu0 0.0
      %741 = vmatpush1.msra.mxu0 0.0
      %742 = vmatprep.subr.mxu0 0.0
      %743 = vmatpush1.msra.mxu0 0.0
      %744 = vmatprep.subr.mxu0 0.0
      %745 = vmatpush1.msra.mxu0 0.0
      %746 = vmatprep.subr.mxu0 0.0
      %747 = vmatpush1.msra.mxu0 0.0
      %748 = vmatprep.subr.mxu0 0.0
      %749 = vmatpush1.msra.mxu0 0.0
      %750 = vmatprep.subr.mxu0 0.0
      %751 = vmatpush1.msra.mxu0 0.0
      %752 = vmatprep.subr.mxu0 0.0
      %753 = vmatpush1.msra.mxu0 0.0
      %754 = vmatprep.subr.mxu0 0.0
      %755 = vmatpush1.msra.mxu0 0.0
      %756 = vmatprep.subr.mxu0 0.0
      %757 = vmatpush1.msra.mxu0 0.0
      %758 = vmatprep.subr.mxu0 0.0
      %759 = vmatpush1.msra.mxu0 0.0
      %760 = vmatprep.subr.mxu0 0.0
      %761 = vmatpush1.msra.mxu0 0.0
      %762 = vmatprep.subr.mxu0 0.0
      %763 = vmatpush1.msra.mxu0 0.0
      %764 = vmatprep.mubr.f32.mxu0 0.0
      %765 = vmatmul.mubr.f32.gmra.mrb[0].mxu0 %v317
      %v766 = vpop.f32.mrb[0].mxu0
      %v767 = vadd.f32 %v313, %v766
      %v768 = vpop.f32.mrb[0].mxu0
      %769 = vmatprep.mubr.f32.mxu0 0.0
      %770 = vmatmul.mubr.f32.gmra.mrb[0].mxu0 %v320
      %v771 = vpop.f32.mrb[0].mxu0
      %v772 = vadd.f32 %v313, %v771
      %v773 = vpop.f32.mrb[0].mxu0
      %774 = vmatprep.mubr.f32.mxu0 0.0
      %775 = vmatmul.mubr.f32.gmra.mrb[0].mxu0 %v323
      %v776 = vpop.f32.mrb[0].mxu0
      %v777 = vadd.f32 %v313, %v776
      %v778 = vpop.f32.mrb[0].mxu0
      %779 = vmatprep.mubr.f32.mxu0 0.0
      %780 = vmatmul.mubr.f32.gmra.mrb[0].mxu0 %v326
      %v781 = vpop.f32.mrb[0].mxu0
      %v782 = vadd.f32 %v313, %v781
      %v783 = vpop.f32.mrb[0].mxu0
      %784 = vmatprep.mubr.f32.mxu0 0.0
      %785 = vmatmul.mubr.f32.gmra.mrb[0].mxu0 %v329
      %v786 = vpop.f32.mrb[0].mxu0
      %v787 = vadd.f32 %v313, %v786
      %v788 = vpop.f32.mrb[0].mxu0
      %789 = vmatprep.mubr.f32.mxu0 0.0
      %790 = vmatmul.mubr.f32.gmra.mrb[0].mxu0 %v332
      %v791 = vpop.f32.mrb[0].mxu0
      %v792 = vadd.f32 %v313, %v791
      %v793 = vpop.f32.mrb[0].mxu0
      %794 = vmatprep.mubr.f32.mxu0 0.0
      %795 = vmatmul.mubr.f32.gmra.mrb[0].mxu0 %v335
      %v796 = vpop.f32.mrb[0].mxu0
      %v797 = vadd.f32 %v313, %v796
      %v798 = vpop.f32.mrb[0].mxu0
      %799 = vmatprep.mubr.f32.mxu0 0.0
      %800 = vmatmul.mubr.f32.gmra.mrb[0].mxu0 %v338
      %v801 = vpop.f32.mrb[0].mxu0
      %v802 = vadd.f32 %v313, %v801
      %v803 = vpop.f32.mrb[0].mxu0
      %804 = vmatprep.mubr.f32.mxu0 0.0
      %805 = vmatmul.mubr.f32.gmra.mrb[0].mxu0 %v341
      %v806 = vpop.f32.mrb[0].mxu0
      %v807 = vadd.f32 %v313, %v806
      %v808 = vpop.f32.mrb[0].mxu0
      %809 = vmatprep.mubr.f32.mxu0 0.0
      %810 = vmatmul.mubr.f32.gmra.mrb[0].mxu0 %v344
      %v811 = vpop.f32.mrb[0].mxu0
      %v812 = vadd.f32 %v313, %v811
      %v813 = vpop.f32.mrb[0].mxu0
      %814 = vmatprep.mubr.f32.mxu0 0.0
      %815 = vmatmul.mubr.f32.gmra.mrb[0].mxu0 %v347
      %v816 = vpop.f32.mrb[0].mxu0
      %v817 = vadd.f32 %v313, %v816
      %v818 = vpop.f32.mrb[0].mxu0
      %819 = vmatprep.mubr.f32.mxu0 0.0
      %820 = vmatmul.mubr.f32.gmra.mrb[0].mxu0 %v350
      %v821 = vpop.f32.mrb[0].mxu0
      %v822 = vadd.f32 %v313, %v821
      %v823 = vpop.f32.mrb[0].mxu0
      %824 = vmatprep.mubr.f32.mxu0 0.0
      %825 = vmatmul.mubr.f32.gmra.mrb[0].mxu0 %v353
      %v826 = vpop.f32.mrb[0].mxu0
      %v827 = vadd.f32 %v313, %v826
      %v828 = vpop.f32.mrb[0].mxu0
      %829 = vmatprep.mubr.f32.mxu0 0.0
      %830 = vmatmul.mubr.f32.gmra.mrb[0].mxu0 %v356
      %v831 = vpop.f32.mrb[0].mxu0
      %v832 = vadd.f32 %v313, %v831
      %v833 = vpop.f32.mrb[0].mxu0
      %834 = vmatprep.mubr.f32.mxu0 0.0
      %835 = vmatmul.mubr.f32.gmra.mrb[0].mxu0 %v359
      %v836 = vpop.f32.mrb[0].mxu0
      %v837 = vadd.f32 %v313, %v836
      %v838 = vpop.f32.mrb[0].mxu0
      %839 = vmatprep.mubr.f32.mxu0 0.0
      %840 = vmatmul.mubr.f32.gmra.mrb[0].mxu0 %v362
      %v841 = vpop.f32.mrb[0].mxu0
      %v842 = vadd.f32 %v313, %v841
      %v843 = vpop.f32.mrb[0].mxu0
      %844 = vmatprep.mubr.f32.mxu0 0.0
      %845 = vmatmul.mubr.f32.gmra.mrb[0].mxu0 %v365
      %v846 = vpop.f32.mrb[0].mxu0
      %v847 = vadd.f32 %v313, %v846
      %v848 = vpop.f32.mrb[0].mxu0
      %849 = vmatprep.mubr.f32.mxu0 0.0
      %850 = vmatmul.mubr.f32.gmra.mrb[0].mxu0 %v368
      %v851 = vpop.f32.mrb[0].mxu0
      %v852 = vadd.f32 %v313, %v851
      %v853 = vpop.f32.mrb[0].mxu0
      %854 = vmatprep.mubr.f32.mxu0 0.0
      %855 = vmatmul.mubr.f32.gmra.mrb[0].mxu0 %v371
      %v856 = vpop.f32.mrb[0].mxu0
      %v857 = vadd.f32 %v313, %v856
      %v858 = vpop.f32.mrb[0].mxu0
      %859 = vmatprep.mubr.f32.mxu0 0.0
      %860 = vmatmul.mubr.f32.gmra.mrb[0].mxu0 %v374
      %v861 = vpop.f32.mrb[0].mxu0
      %v862 = vadd.f32 %v313, %v861
      %v863 = vpop.f32.mrb[0].mxu0
      %864 = vmatprep.mubr.f32.mxu0 0.0
      %865 = vmatmul.mubr.f32.gmra.mrb[0].mxu0 %v377
      %v866 = vpop.f32.mrb[0].mxu0
      %v867 = vadd.f32 %v313, %v866
      %v868 = vpop.f32.mrb[0].mxu0
      %869 = vmatprep.mubr.f32.mxu0 0.0
      %870 = vmatmul.mubr.f32.gmra.mrb[0].mxu0 %v380
      %v871 = vpop.f32.mrb[0].mxu0
      %v872 = vadd.f32 %v313, %v871
      %v873 = vpop.f32.mrb[0].mxu0
      %874 = vmatprep.mubr.f32.mxu0 0.0
      %875 = vmatmul.mubr.f32.gmra.mrb[0].mxu0 %v383
      %v876 = vpop.f32.mrb[0].mxu0
      %v877 = vadd.f32 %v313, %v876
      %v878 = vpop.f32.mrb[0].mxu0
      %879 = vmatprep.mubr.f32.mxu0 0.0
      %880 = vmatmul.mubr.f32.gmra.mrb[0].mxu0 %v386
      %v881 = vpop.f32.mrb[0].mxu0
      %v882 = vadd.f32 %v313, %v881
      %v883 = vpop.f32.mrb[0].mxu0
      %884 = vmatprep.mubr.f32.mxu0 0.0
      %885 = vmatmul.mubr.f32.gmra.mrb[0].mxu0 %v389
      %v886 = vpop.f32.mrb[0].mxu0
      %v887 = vadd.f32 %v313, %v886
      %v888 = vpop.f32.mrb[0].mxu0
      %889 = vmatprep.mubr.f32.mxu0 0.0
      %890 = vmatmul.mubr.f32.gmra.mrb[0].mxu0 %v392
      %v891 = vpop.f32.mrb[0].mxu0
      %v892 = vadd.f32 %v313, %v891
      %v893 = vpop.f32.mrb[0].mxu0
      %894 = vmatprep.mubr.f32.mxu0 0.0
      %895 = vmatmul.mubr.f32.gmra.mrb[0].mxu0 %v395
      %v896 = vpop.f32.mrb[0].mxu0
      %v897 = vadd.f32 %v313, %v896
      %v898 = vpop.f32.mrb[0].mxu0
      %899 = vmatprep.mubr.f32.mxu0 0.0
      %900 = vmatmul.mubr.f32.gmra.mrb[0].mxu0 %v398
      %v901 = vpop.f32.mrb[0].mxu0
      %v902 = vadd.f32 %v313, %v901
      %v903 = vpop.f32.mrb[0].mxu0
      %904 = vmatprep.mubr.f32.mxu0 0.0
      %905 = vmatmul.mubr.f32.gmra.mrb[0].mxu0 %v401
      %v906 = vpop.f32.mrb[0].mxu0
      %v907 = vadd.f32 %v313, %v906
      %v908 = vpop.f32.mrb[0].mxu0
      %909 = vmatprep.mubr.f32.mxu0 0.0
      %910 = vmatmul.mubr.f32.gmra.mrb[0].mxu0 %v404
      %v911 = vpop.f32.mrb[0].mxu0
      %v912 = vadd.f32 %v313, %v911
      %v913 = vpop.f32.mrb[0].mxu0
      %914 = vmatprep.mubr.f32.mxu0 0.0
      %915 = vmatmul.mubr.f32.gmra.mrb[0].mxu0 %v407
      %v916 = vpop.f32.mrb[0].mxu0
      %v917 = vadd.f32 %v313, %v916
      %v918 = vpop.f32.mrb[0].mxu0
      %919 = vmatprep.mubr.f32.mxu0 0.0
      %920 = vmatmul.mubr.f32.gmra.mrb[0].mxu0 %v410
      %v921 = vpop.f32.mrb[0].mxu0
      %v922 = vadd.f32 %v313, %v921
      %v923 = vpop.f32.mrb[0].mxu0
      %924 = vmatprep.mubr.f32.mxu0 0.0
      %925 = vmatmul.mubr.f32.gmra.mrb[0].mxu0 %v413
      %v926 = vpop.f32.mrb[0].mxu0
      %v927 = vadd.f32 %v313, %v926
      %v928 = vpop.f32.mrb[0].mxu0
      %929 = vmatprep.mubr.f32.mxu0 0.0
      %930 = vmatmul.mubr.f32.gmra.mrb[0].mxu0 %v416
      %v931 = vpop.f32.mrb[0].mxu0
      %v932 = vadd.f32 %v313, %v931
      %v933 = vpop.f32.mrb[0].mxu0
      %934 = vmatprep.mubr.f32.mxu0 0.0
      %935 = vmatmul.mubr.f32.gmra.mrb[0].mxu0 %v419
      %v936 = vpop.f32.mrb[0].mxu0
      %v937 = vadd.f32 %v313, %v936
      %v938 = vpop.f32.mrb[0].mxu0
      %939 = vmatprep.mubr.f32.mxu0 0.0
      %940 = vmatmul.mubr.f32.gmra.mrb[0].mxu0 %v422
      %v941 = vpop.f32.mrb[0].mxu0
      %v942 = vadd.f32 %v313, %v941
      %v943 = vpop.f32.mrb[0].mxu0
      %944 = vmatprep.mubr.f32.mxu0 0.0
      %945 = vmatmul.mubr.f32.gmra.mrb[0].mxu0 %v425
      %v946 = vpop.f32.mrb[0].mxu0
      %v947 = vadd.f32 %v313, %v946
      %v948 = vpop.f32.mrb[0].mxu0
      %949 = vmatprep.mubr.f32.mxu0 0.0
      %950 = vmatmul.mubr.f32.gmra.mrb[0].mxu0 %v428
      %v951 = vpop.f32.mrb[0].mxu0
      %v952 = vadd.f32 %v313, %v951
      %v953 = vpop.f32.mrb[0].mxu0
      %954 = vmatprep.mubr.f32.mxu0 0.0
      %955 = vmatmul.mubr.f32.gmra.mrb[0].mxu0 %v431
      %v956 = vpop.f32.mrb[0].mxu0
      %v957 = vadd.f32 %v313, %v956
      %v958 = vpop.f32.mrb[0].mxu0
      %959 = vmatprep.mubr.f32.mxu0 0.0
      %960 = vmatmul.mubr.f32.gmra.mrb[0].mxu0 %v434
      %v961 = vpop.f32.mrb[0].mxu0
      %v962 = vadd.f32 %v313, %v961
      %v963 = vpop.f32.mrb[0].mxu0
      %964 = vmatprep.mubr.f32.mxu0 0.0
      %965 = vmatmul.mubr.f32.gmra.mrb[0].mxu0 %v437
      %v966 = vpop.f32.mrb[0].mxu0
      %v967 = vadd.f32 %v313, %v966
      %v968 = vpop.f32.mrb[0].mxu0
      %969 = vmatprep.mubr.f32.mxu0 0.0
      %970 = vmatmul.mubr.f32.gmra.mrb[0].mxu0 %v440
      %v971 = vpop.f32.mrb[0].mxu0
      %v972 = vadd.f32 %v313, %v971
      %v973 = vpop.f32.mrb[0].mxu0
      %974 = vmatprep.mubr.f32.mxu0 0.0
      %975 = vmatmul.mubr.f32.gmra.mrb[0].mxu0 %v443
      %v976 = vpop.f32.mrb[0].mxu0
      %v977 = vadd.f32 %v313, %v976
      %v978 = vpop.f32.mrb[0].mxu0
      %979 = vmatprep.mubr.f32.mxu0 0.0
      %980 = vmatmul.mubr.f32.gmra.mrb[0].mxu0 %v446
      %v981 = vpop.f32.mrb[0].mxu0
      %v982 = vadd.f32 %v313, %v981
      %v983 = vpop.f32.mrb[0].mxu0
      %984 = vmatprep.mubr.f32.mxu0 0.0
      %985 = vmatmul.mubr.f32.gmra.mrb[0].mxu0 %v449
      %v986 = vpop.f32.mrb[0].mxu0
      %v987 = vadd.f32 %v313, %v986
      %v988 = vpop.f32.mrb[0].mxu0
      %989 = vmatprep.mubr.f32.mxu0 0.0
      %990 = vmatmul.mubr.f32.gmra.mrb[0].mxu0 %v452
      %v991 = vpop.f32.mrb[0].mxu0
      %v992 = vadd.f32 %v313, %v991
      %v993 = vpop.f32.mrb[0].mxu0
      %994 = vmatprep.mubr.f32.mxu0 0.0
      %995 = vmatmul.mubr.f32.gmra.mrb[0].mxu0 %v455
      %v996 = vpop.f32.mrb[0].mxu0
      %v997 = vadd.f32 %v313, %v996
      %v998 = vpop.f32.mrb[0].mxu0
      %999 = vmatprep.mubr.f32.mxu0 0.0
      %1000 = vmatmul.mubr.f32.gmra.mrb[0].mxu0 %v458
      %v1001 = vpop.f32.mrb[0].mxu0
      %v1002 = vadd.f32 %v313, %v1001
      %v1003 = vpop.f32.mrb[0].mxu0
      %1004 = vmatprep.mubr.f32.mxu0 0.0
      %1005 = vmatmul.mubr.f32.gmra.mrb[0].mxu0 %v461
      %v1006 = vpop.f32.mrb[0].mxu0
      %v1007 = vadd.f32 %v313, %v1006
      %v1008 = vpop.f32.mrb[0].mxu0
      %1009 = vmatprep.mubr.f32.mxu0 0.0
      %1010 = vmatmul.mubr.f32.gmra.mrb[0].mxu0 %v464
      %v1011 = vpop.f32.mrb[0].mxu0
      %v1012 = vadd.f32 %v313, %v1011
      %v1013 = vpop.f32.mrb[0].mxu0
      %1014 = vmatprep.mubr.f32.mxu0 0.0
      %1015 = vmatmul.mubr.f32.gmra.mrb[0].mxu0 %v467
      %v1016 = vpop.f32.mrb[0].mxu0
      %v1017 = vadd.f32 %v313, %v1016
      %v1018 = vpop.f32.mrb[0].mxu0
      %1019 = vmatprep.mubr.f32.mxu0 0.0
      %1020 = vmatmul.mubr.f32.gmra.mrb[0].mxu0 %v470
      %v1021 = vpop.f32.mrb[0].mxu0
      %v1022 = vadd.f32 %v313, %v1021
      %v1023 = vpop.f32.mrb[0].mxu0
      %1024 = vmatprep.mubr.f32.mxu0 0.0
      %1025 = vmatmul.mubr.f32.gmra.mrb[0].mxu0 %v473
      %v1026 = vpop.f32.mrb[0].mxu0
      %v1027 = vadd.f32 %v313, %v1026
      %v1028 = vpop.f32.mrb[0].mxu0
      %1029 = vmatprep.mubr.f32.mxu0 0.0
      %1030 = vmatmul.mubr.f32.gmra.mrb[0].mxu0 %v476
      %v1031 = vpop.f32.mrb[0].mxu0
      %v1032 = vadd.f32 %v313, %v1031
      %v1033 = vpop.f32.mrb[0].mxu0
      %1034 = vmatprep.mubr.f32.mxu0 0.0
      %1035 = vmatmul.mubr.f32.gmra.mrb[0].mxu0 %v479
      %v1036 = vpop.f32.mrb[0].mxu0
      %v1037 = vadd.f32 %v313, %v1036
      %v1038 = vpop.f32.mrb[0].mxu0
      %1039 = vmatprep.mubr.f32.mxu0 0.0
      %1040 = vmatmul.mubr.f32.gmra.mrb[0].mxu0 %v482
      %v1041 = vpop.f32.mrb[0].mxu0
      %v1042 = vadd.f32 %v313, %v1041
      %v1043 = vpop.f32.mrb[0].mxu0
      %1044 = vmatprep.mubr.f32.mxu0 0.0
      %1045 = vmatmul.mubr.f32.gmra.mrb[0].mxu0 %v485
      %v1046 = vpop.f32.mrb[0].mxu0
      %v1047 = vadd.f32 %v313, %v1046
      %v1048 = vpop.f32.mrb[0].mxu0
      %1049 = vmatprep.mubr.f32.mxu0 0.0
      %1050 = vmatmul.mubr.f32.gmra.mrb[0].mxu0 %v488
      %v1051 = vpop.f32.mrb[0].mxu0
      %v1052 = vadd.f32 %v313, %v1051
      %v1053 = vpop.f32.mrb[0].mxu0
      %1054 = vmatprep.mubr.f32.mxu0 0.0
      %1055 = vmatmul.mubr.f32.gmra.mrb[0].mxu0 %v491
      %v1056 = vpop.f32.mrb[0].mxu0
      %v1057 = vadd.f32 %v313, %v1056
      %v1058 = vpop.f32.mrb[0].mxu0
      %1059 = vmatprep.mubr.f32.mxu0 0.0
      %1060 = vmatmul.mubr.f32.gmra.mrb[0].mxu0 %v494
      %v1061 = vpop.f32.mrb[0].mxu0
      %v1062 = vadd.f32 %v313, %v1061
      %v1063 = vpop.f32.mrb[0].mxu0
      %1064 = vmatprep.mubr.f32.mxu0 0.0
      %1065 = vmatmul.mubr.f32.gmra.mrb[0].mxu0 %v497
      %v1066 = vpop.f32.mrb[0].mxu0
      %v1067 = vadd.f32 %v313, %v1066
      %v1068 = vpop.f32.mrb[0].mxu0
      %1069 = vmatprep.mubr.f32.mxu0 0.0
      %1070 = vmatmul.mubr.f32.gmra.mrb[0].mxu0 %v500
      %v1071 = vpop.f32.mrb[0].mxu0
      %v1072 = vadd.f32 %v313, %v1071
      %v1073 = vpop.f32.mrb[0].mxu0
      %1074 = vmatprep.mubr.f32.mxu0 0.0
      %1075 = vmatmul.mubr.f32.gmra.mrb[0].mxu0 %v503
      %v1076 = vpop.f32.mrb[0].mxu0
      %v1077 = vadd.f32 %v313, %v1076
      %v1078 = vpop.f32.mrb[0].mxu0
      %1079 = vmatprep.mubr.f32.mxu0 0.0
      %1080 = vmatmul.mubr.f32.gmra.mrb[0].mxu0 %v506
      %v1081 = vpop.f32.mrb[0].mxu0
      %v1082 = vadd.f32 %v313, %v1081
      %v1083 = vpop.f32.mrb[0].mxu0
      %1084 = vmatprep.mubr.f32.mxu0 0.0
      %1085 = vmatmul.mubr.f32.gmra.mrb[0].mxu0 %v509
      %v1086 = vpop.f32.mrb[0].mxu0
      %v1087 = vadd.f32 %v313, %v1086
      %v1088 = vpop.f32.mrb[0].mxu0
      %1089 = vmatprep.mubr.f32.mxu0 0.0
      %1090 = vmatmul.mubr.f32.gmra.mrb[0].mxu0 %v512
      %v1091 = vpop.f32.mrb[0].mxu0
      %v1092 = vadd.f32 %v313, %v1091
      %v1093 = vpop.f32.mrb[0].mxu0
      %1094 = vmatprep.mubr.f32.mxu0 0.0
      %1095 = vmatmul.mubr.f32.gmra.mrb[0].mxu0 %v515
      %v1096 = vpop.f32.mrb[0].mxu0
      %v1097 = vadd.f32 %v313, %v1096
      %v1098 = vpop.f32.mrb[0].mxu0
      %1099 = vmatprep.mubr.f32.mxu0 0.0
      %1100 = vmatmul.mubr.f32.gmra.mrb[0].mxu0 %v518
      %v1101 = vpop.f32.mrb[0].mxu0
      %v1102 = vadd.f32 %v313, %v1101
      %v1103 = vpop.f32.mrb[0].mxu0
      %1104 = vmatprep.mubr.f32.mxu0 0.0
      %1105 = vmatmul.mubr.f32.gmra.mrb[0].mxu0 %v521
      %v1106 = vpop.f32.mrb[0].mxu0
      %v1107 = vadd.f32 %v313, %v1106
      %v1108 = vpop.f32.mrb[0].mxu0
      %1109 = vmatprep.mubr.f32.mxu0 0.0
      %1110 = vmatmul.mubr.f32.gmra.mrb[0].mxu0 %v524
      %v1111 = vpop.f32.mrb[0].mxu0
      %v1112 = vadd.f32 %v313, %v1111
      %v1113 = vpop.f32.mrb[0].mxu0
      %1114 = vmatprep.mubr.f32.mxu0 0.0
      %1115 = vmatmul.mubr.f32.gmra.mrb[0].mxu0 %v527
      %v1116 = vpop.f32.mrb[0].mxu0
      %v1117 = vadd.f32 %v313, %v1116
      %v1118 = vpop.f32.mrb[0].mxu0
      %1119 = vmatprep.mubr.f32.mxu0 0.0
      %1120 = vmatmul.mubr.f32.gmra.mrb[0].mxu0 %v530
      %v1121 = vpop.f32.mrb[0].mxu0
      %v1122 = vadd.f32 %v313, %v1121
      %v1123 = vpop.f32.mrb[0].mxu0
      %1124 = vmatprep.mubr.f32.mxu0 0.0
      %1125 = vmatmul.mubr.f32.gmra.mrb[0].mxu0 %v533
      %v1126 = vpop.f32.mrb[0].mxu0
      %v1127 = vadd.f32 %v313, %v1126
      %v1128 = vpop.f32.mrb[0].mxu0
      %1129 = vmatprep.mubr.f32.mxu0 0.0
      %1130 = vmatmul.mubr.f32.gmra.mrb[0].mxu0 %v536
      %v1131 = vpop.f32.mrb[0].mxu0
      %v1132 = vadd.f32 %v313, %v1131
      %v1133 = vpop.f32.mrb[0].mxu0
      %1134 = vmatprep.mubr.f32.mxu0 0.0
      %1135 = vmatmul.mubr.f32.gmra.mrb[0].mxu0 %v539
      %v1136 = vpop.f32.mrb[0].mxu0
      %v1137 = vadd.f32 %v313, %v1136
      %v1138 = vpop.f32.mrb[0].mxu0
      %1139 = vmatprep.mubr.f32.mxu0 0.0
      %1140 = vmatmul.mubr.f32.gmra.mrb[0].mxu0 %v542
      %v1141 = vpop.f32.mrb[0].mxu0
      %v1142 = vadd.f32 %v313, %v1141
      %v1143 = vpop.f32.mrb[0].mxu0
      %1144 = vmatprep.mubr.f32.mxu0 0.0
      %1145 = vmatmul.mubr.f32.gmra.mrb[0].mxu0 %v545
      %v1146 = vpop.f32.mrb[0].mxu0
      %v1147 = vadd.f32 %v313, %v1146
      %v1148 = vpop.f32.mrb[0].mxu0
      %1149 = vmatprep.mubr.f32.mxu0 0.0
      %1150 = vmatmul.mubr.f32.gmra.mrb[0].mxu0 %v548
      %v1151 = vpop.f32.mrb[0].mxu0
      %v1152 = vadd.f32 %v313, %v1151
      %v1153 = vpop.f32.mrb[0].mxu0
      %1154 = vmatprep.mubr.f32.mxu0 0.0
      %1155 = vmatmul.mubr.f32.gmra.mrb[0].mxu0 %v551
      %v1156 = vpop.f32.mrb[0].mxu0
      %v1157 = vadd.f32 %v313, %v1156
      %v1158 = vpop.f32.mrb[0].mxu0
      %1159 = vmatprep.mubr.f32.mxu0 0.0
      %1160 = vmatmul.mubr.f32.gmra.mrb[0].mxu0 %v554
      %v1161 = vpop.f32.mrb[0].mxu0
      %v1162 = vadd.f32 %v313, %v1161
      %v1163 = vpop.f32.mrb[0].mxu0
      %1164 = vmatprep.mubr.f32.mxu0 0.0
      %1165 = vmatmul.mubr.f32.gmra.mrb[0].mxu0 %v557
      %v1166 = vpop.f32.mrb[0].mxu0
      %v1167 = vadd.f32 %v313, %v1166
      %v1168 = vpop.f32.mrb[0].mxu0
      %1169 = vmatprep.mubr.f32.mxu0 0.0
      %1170 = vmatmul.mubr.f32.gmra.mrb[0].mxu0 %v560
      %v1171 = vpop.f32.mrb[0].mxu0
      %v1172 = vadd.f32 %v313, %v1171
      %v1173 = vpop.f32.mrb[0].mxu0
      %1174 = vmatprep.mubr.f32.mxu0 0.0
      %1175 = vmatmul.mubr.f32.gmra.mrb[0].mxu0 %v563
      %v1176 = vpop.f32.mrb[0].mxu0
      %v1177 = vadd.f32 %v313, %v1176
      %v1178 = vpop.f32.mrb[0].mxu0
      %1179 = vmatprep.mubr.f32.mxu0 0.0
      %1180 = vmatmul.mubr.f32.gmra.mrb[0].mxu0 %v566
      %v1181 = vpop.f32.mrb[0].mxu0
      %v1182 = vadd.f32 %v313, %v1181
      %v1183 = vpop.f32.mrb[0].mxu0
      %1184 = vmatprep.mubr.f32.mxu0 0.0
      %1185 = vmatmul.mubr.f32.gmra.mrb[0].mxu0 %v569
      %v1186 = vpop.f32.mrb[0].mxu0
      %v1187 = vadd.f32 %v313, %v1186
      %v1188 = vpop.f32.mrb[0].mxu0
      %1189 = vmatprep.mubr.f32.mxu0 0.0
      %1190 = vmatmul.mubr.f32.gmra.mrb[0].mxu0 %v572
      %v1191 = vpop.f32.mrb[0].mxu0
      %v1192 = vadd.f32 %v313, %v1191
      %v1193 = vpop.f32.mrb[0].mxu0
      %1194 = vmatprep.mubr.f32.mxu0 0.0
      %1195 = vmatmul.mubr.f32.gmra.mrb[0].mxu0 %v575
      %v1196 = vpop.f32.mrb[0].mxu0
      %v1197 = vadd.f32 %v313, %v1196
      %v1198 = vpop.f32.mrb[0].mxu0
      %1199 = vmatprep.mubr.f32.mxu0 0.0
      %1200 = vmatmul.mubr.f32.gmra.mrb[0].mxu0 %v578
      %v1201 = vpop.f32.mrb[0].mxu0
      %v1202 = vadd.f32 %v313, %v1201
      %v1203 = vpop.f32.mrb[0].mxu0
      %1204 = vmatprep.mubr.f32.mxu0 0.0
      %1205 = vmatmul.mubr.f32.gmra.mrb[0].mxu0 %v581
      %v1206 = vpop.f32.mrb[0].mxu0
      %v1207 = vadd.f32 %v313, %v1206
      %v1208 = vpop.f32.mrb[0].mxu0
      %1209 = vmatprep.mubr.f32.mxu0 0.0
      %1210 = vmatmul.mubr.f32.gmra.mrb[0].mxu0 %v584
      %v1211 = vpop.f32.mrb[0].mxu0
      %v1212 = vadd.f32 %v313, %v1211
      %v1213 = vpop.f32.mrb[0].mxu0
      %1214 = vmatprep.mubr.f32.mxu0 0.0
      %1215 = vmatmul.mubr.f32.gmra.mrb[0].mxu0 %v587
      %v1216 = vpop.f32.mrb[0].mxu0
      %v1217 = vadd.f32 %v313, %v1216
      %v1218 = vpop.f32.mrb[0].mxu0
      %1219 = vmatprep.mubr.f32.mxu0 0.0
      %1220 = vmatmul.mubr.f32.gmra.mrb[0].mxu0 %v590
      %v1221 = vpop.f32.mrb[0].mxu0
      %v1222 = vadd.f32 %v313, %v1221
      %v1223 = vpop.f32.mrb[0].mxu0
      %1224 = vmatprep.mubr.f32.mxu0 0.0
      %1225 = vmatmul.mubr.f32.gmra.mrb[0].mxu0 %v593
      %v1226 = vpop.f32.mrb[0].mxu0
      %v1227 = vadd.f32 %v313, %v1226
      %v1228 = vpop.f32.mrb[0].mxu0
      %1229 = vmatprep.mubr.f32.mxu0 0.0
      %1230 = vmatmul.mubr.f32.gmra.mrb[0].mxu0 %v596
      %v1231 = vpop.f32.mrb[0].mxu0
      %v1232 = vadd.f32 %v313, %v1231
      %v1233 = vpop.f32.mrb[0].mxu0
      %1234 = vmatprep.mubr.f32.mxu0 0.0
      %1235 = vmatmul.mubr.f32.gmra.mrb[0].mxu0 %v599
      %v1236 = vpop.f32.mrb[0].mxu0
      %v1237 = vadd.f32 %v313, %v1236
      %v1238 = vpop.f32.mrb[0].mxu0
      %1239 = vmatprep.mubr.f32.mxu0 0.0
      %1240 = vmatmul.mubr.f32.gmra.mrb[0].mxu0 %v602
      %v1241 = vpop.f32.mrb[0].mxu0
      %v1242 = vadd.f32 %v313, %v1241
      %v1243 = vpop.f32.mrb[0].mxu0
      %1244 = vmatprep.mubr.f32.mxu0 0.0
      %1245 = vmatmul.mubr.f32.gmra.mrb[0].mxu0 %v605
      %v1246 = vpop.f32.mrb[0].mxu0
      %v1247 = vadd.f32 %v313, %v1246
      %v1248 = vpop.f32.mrb[0].mxu0
      %1249 = vmatprep.mubr.f32.mxu0 0.0
      %1250 = vmatmul.mubr.f32.gmra.mrb[0].mxu0 %v608
      %v1251 = vpop.f32.mrb[0].mxu0
      %v1252 = vadd.f32 %v313, %v1251
      %v1253 = vpop.f32.mrb[0].mxu0
      %1254 = vmatprep.mubr.f32.mxu0 0.0
      %1255 = vmatmul.mubr.f32.gmra.mrb[0].mxu0 %v611
      %v1256 = vpop.f32.mrb[0].mxu0
      %v1257 = vadd.f32 %v313, %v1256
      %v1258 = vpop.f32.mrb[0].mxu0
      %1259 = vmatprep.mubr.f32.mxu0 0.0
      %1260 = vmatmul.mubr.f32.gmra.mrb[0].mxu0 %v614
      %v1261 = vpop.f32.mrb[0].mxu0
      %v1262 = vadd.f32 %v313, %v1261
      %v1263 = vpop.f32.mrb[0].mxu0
      %1264 = vmatprep.mubr.f32.mxu0 0.0
      %1265 = vmatmul.mubr.f32.gmra.mrb[0].mxu0 %v617
      %v1266 = vpop.f32.mrb[0].mxu0
      %v1267 = vadd.f32 %v313, %v1266
      %v1268 = vpop.f32.mrb[0].mxu0
      %1269 = vmatprep.mubr.f32.mxu0 0.0
      %1270 = vmatmul.mubr.f32.gmra.mrb[0].mxu0 %v620
      %v1271 = vpop.f32.mrb[0].mxu0
      %v1272 = vadd.f32 %v313, %v1271
      %v1273 = vpop.f32.mrb[0].mxu0
      %1274 = vmatprep.mubr.f32.mxu0 0.0
      %1275 = vmatmul.mubr.f32.gmra.mrb[0].mxu0 %v623
      %v1276 = vpop.f32.mrb[0].mxu0
      %v1277 = vadd.f32 %v313, %v1276
      %v1278 = vpop.f32.mrb[0].mxu0
      %1279 = vmatprep.mubr.f32.mxu0 0.0
      %1280 = vmatmul.mubr.f32.gmra.mrb[0].mxu0 %v626
      %v1281 = vpop.f32.mrb[0].mxu0
      %v1282 = vadd.f32 %v313, %v1281
      %v1283 = vpop.f32.mrb[0].mxu0
      %1284 = vmatprep.mubr.f32.mxu0 0.0
      %1285 = vmatmul.mubr.f32.gmra.mrb[0].mxu0 %v629
      %v1286 = vpop.f32.mrb[0].mxu0
      %v1287 = vadd.f32 %v313, %v1286
      %v1288 = vpop.f32.mrb[0].mxu0
      %1289 = vmatprep.mubr.f32.mxu0 0.0
      %1290 = vmatmul.mubr.f32.gmra.mrb[0].mxu0 %v632
      %v1291 = vpop.f32.mrb[0].mxu0
      %v1292 = vadd.f32 %v313, %v1291
      %v1293 = vpop.f32.mrb[0].mxu0
      %1294 = vmatprep.mubr.f32.mxu0 0.0
      %1295 = vmatmul.mubr.f32.gmra.mrb[0].mxu0 %v635
      %v1296 = vpop.f32.mrb[0].mxu0
      %v1297 = vadd.f32 %v313, %v1296
      %v1298 = vpop.f32.mrb[0].mxu0
      %1299 = vmatprep.mubr.f32.mxu0 0.0
      %1300 = vmatmul.mubr.f32.gmra.mrb[0].mxu0 %v638
      %v1301 = vpop.f32.mrb[0].mxu0
      %v1302 = vadd.f32 %v313, %v1301
      %v1303 = vpop.f32.mrb[0].mxu0
      %1304 = vmatprep.mubr.f32.mxu0 0.0
      %1305 = vmatmul.mubr.f32.gmra.mrb[0].mxu0 %v641
      %v1306 = vpop.f32.mrb[0].mxu0
      %v1307 = vadd.f32 %v313, %v1306
      %v1308 = vpop.f32.mrb[0].mxu0
      %1309 = vmatprep.mubr.f32.mxu0 0.0
      %1310 = vmatmul.mubr.f32.gmra.mrb[0].mxu0 %v644
      %v1311 = vpop.f32.mrb[0].mxu0
      %v1312 = vadd.f32 %v313, %v1311
      %v1313 = vpop.f32.mrb[0].mxu0
      %1314 = vmatprep.mubr.f32.mxu0 0.0
      %1315 = vmatmul.mubr.f32.gmra.mrb[0].mxu0 %v647
      %v1316 = vpop.f32.mrb[0].mxu0
      %v1317 = vadd.f32 %v313, %v1316
      %v1318 = vpop.f32.mrb[0].mxu0
      %1319 = vmatprep.mubr.f32.mxu0 0.0
      %1320 = vmatmul.mubr.f32.gmra.mrb[0].mxu0 %v650
      %v1321 = vpop.f32.mrb[0].mxu0
      %v1322 = vadd.f32 %v313, %v1321
      %v1323 = vpop.f32.mrb[0].mxu0
      %1324 = vmatprep.mubr.f32.mxu0 0.0
      %1325 = vmatmul.mubr.f32.gmra.mrb[0].mxu0 %v653
      %v1326 = vpop.f32.mrb[0].mxu0
      %v1327 = vadd.f32 %v313, %v1326
      %v1328 = vpop.f32.mrb[0].mxu0
      %1329 = vmatprep.mubr.f32.mxu0 0.0
      %1330 = vmatmul.mubr.f32.gmra.mrb[0].mxu0 %v656
      %v1331 = vpop.f32.mrb[0].mxu0
      %v1332 = vadd.f32 %v313, %v1331
      %v1333 = vpop.f32.mrb[0].mxu0
      %1334 = vmatprep.mubr.f32.mxu0 0.0
      %1335 = vmatmul.mubr.f32.gmra.mrb[0].mxu0 %v659
      %v1336 = vpop.f32.mrb[0].mxu0
      %v1337 = vadd.f32 %v313, %v1336
      %v1338 = vpop.f32.mrb[0].mxu0
      %1339 = vmatprep.mubr.f32.mxu0 0.0
      %1340 = vmatmul.mubr.f32.gmra.mrb[0].mxu0 %v662
      %v1341 = vpop.f32.mrb[0].mxu0
      %v1342 = vadd.f32 %v313, %v1341
      %v1343 = vpop.f32.mrb[0].mxu0
      %1344 = vmatprep.mubr.f32.mxu0 0.0
      %1345 = vmatmul.mubr.f32.gmra.mrb[0].mxu0 %v665
      %v1346 = vpop.f32.mrb[0].mxu0
      %v1347 = vadd.f32 %v313, %v1346
      %v1348 = vpop.f32.mrb[0].mxu0
      %1349 = vmatprep.mubr.f32.mxu0 0.0
      %1350 = vmatmul.mubr.f32.gmra.mrb[0].mxu0 %v668
      %v1351 = vpop.f32.mrb[0].mxu0
      %v1352 = vadd.f32 %v313, %v1351
      %v1353 = vpop.f32.mrb[0].mxu0
      %1354 = vmatprep.mubr.f32.mxu0 0.0
      %1355 = vmatmul.mubr.f32.gmra.mrb[0].mxu0 %v671
      %v1356 = vpop.f32.mrb[0].mxu0
      %v1357 = vadd.f32 %v313, %v1356
      %v1358 = vpop.f32.mrb[0].mxu0
      %1359 = vmatprep.mubr.f32.mxu0 0.0
      %1360 = vmatmul.mubr.f32.gmra.mrb[0].mxu0 %v674
      %v1361 = vpop.f32.mrb[0].mxu0
      %v1362 = vadd.f32 %v313, %v1361
      %v1363 = vpop.f32.mrb[0].mxu0
      %1364 = vmatprep.mubr.f32.mxu0 0.0
      %1365 = vmatmul.mubr.f32.gmra.mrb[0].mxu0 %v677
      %v1366 = vpop.f32.mrb[0].mxu0
      %v1367 = vadd.f32 %v313, %v1366
      %v1368 = vpop.f32.mrb[0].mxu0
      %1369 = vmatprep.mubr.f32.mxu0 0.0
      %1370 = vmatmul.mubr.f32.gmra.mrb[0].mxu0 %v680
      %v1371 = vpop.f32.mrb[0].mxu0
      %v1372 = vadd.f32 %v313, %v1371
      %v1373 = vpop.f32.mrb[0].mxu0
      %1374 = vmatprep.mubr.f32.mxu0 0.0
      %1375 = vmatmul.mubr.f32.gmra.mrb[0].mxu0 %v683
      %v1376 = vpop.f32.mrb[0].mxu0
      %v1377 = vadd.f32 %v313, %v1376
      %v1378 = vpop.f32.mrb[0].mxu0
      %1379 = vmatprep.mubr.f32.mxu0 0.0
      %1380 = vmatmul.mubr.f32.gmra.mrb[0].mxu0 %v686
      %v1381 = vpop.f32.mrb[0].mxu0
      %v1382 = vadd.f32 %v313, %v1381
      %v1383 = vpop.f32.mrb[0].mxu0
      %1384 = vmatprep.mubr.f32.mxu0 0.0
      %1385 = vmatmul.mubr.f32.gmra.mrb[0].mxu0 %v689
      %v1386 = vpop.f32.mrb[0].mxu0
      %v1387 = vadd.f32 %v313, %v1386
      %v1388 = vpop.f32.mrb[0].mxu0
      %1389 = vmatprep.mubr.f32.mxu0 0.0
      %1390 = vmatmul.mubr.f32.gmra.mrb[0].mxu0 %v692
      %v1391 = vpop.f32.mrb[0].mxu0
      %v1392 = vadd.f32 %v313, %v1391
      %v1393 = vpop.f32.mrb[0].mxu0
      %1394 = vmatprep.mubr.f32.mxu0 0.0
      %1395 = vmatmul.mubr.f32.gmra.mrb[0].mxu0 %v695
      %v1396 = vpop.f32.mrb[0].mxu0
      %v1397 = vadd.f32 %v313, %v1396
      %v1398 = vpop.f32.mrb[0].mxu0
      %1399 = vmatprep.mubr.f32.mxu0 0.0
      %1400 = vmatmul.mubr.f32.gmra.mrb[0].mxu0 %v698
      %v1401 = vpop.f32.mrb[0].mxu0
      %v1402 = vadd.f32 %v313, %v1401
      %v1403 = vpop.f32.mrb[0].mxu0
      %1404 = vdwg.mxu0
      %vm1405 = vcmp.gt.f32.partialorder %v767, 0.0
      %vm1406 = vcmp.gt.f32.partialorder %v772, 0.0
      %vm1407 = vcmp.gt.f32.partialorder %v777, 0.0
      %vm1408 = vcmp.gt.f32.partialorder %v782, 0.0
      %vm1409 = vcmp.gt.f32.partialorder %v787, 0.0
      %vm1410 = vcmp.gt.f32.partialorder %v792, 0.0
      %vm1411 = vcmp.gt.f32.partialorder %v797, 0.0
      %vm1412 = vcmp.gt.f32.partialorder %v802, 0.0
      %vm1413 = vcmp.gt.f32.partialorder %v807, 0.0
      %vm1414 = vcmp.gt.f32.partialorder %v812, 0.0
      %vm1415 = vcmp.gt.f32.partialorder %v817, 0.0
      %vm1416 = vcmp.gt.f32.partialorder %v822, 0.0
      %vm1417 = vcmp.gt.f32.partialorder %v827, 0.0
      %vm1418 = vcmp.gt.f32.partialorder %v832, 0.0
      %vm1419 = vcmp.gt.f32.partialorder %v837, 0.0
      %vm1420 = vcmp.gt.f32.partialorder %v842, 0.0
      %vm1421 = vcmp.gt.f32.partialorder %v847, 0.0
      %vm1422 = vcmp.gt.f32.partialorder %v852, 0.0
      %vm1423 = vcmp.gt.f32.partialorder %v857, 0.0
      %vm1424 = vcmp.gt.f32.partialorder %v862, 0.0
      %vm1425 = vcmp.gt.f32.partialorder %v867, 0.0
      %vm1426 = vcmp.gt.f32.partialorder %v872, 0.0
      %vm1427 = vcmp.gt.f32.partialorder %v877, 0.0
      %vm1428 = vcmp.gt.f32.partialorder %v882, 0.0
      %vm1429 = vcmp.gt.f32.partialorder %v887, 0.0
      %vm1430 = vcmp.gt.f32.partialorder %v892, 0.0
      %vm1431 = vcmp.gt.f32.partialorder %v897, 0.0
      %vm1432 = vcmp.gt.f32.partialorder %v902, 0.0
      %vm1433 = vcmp.gt.f32.partialorder %v907, 0.0
      %vm1434 = vcmp.gt.f32.partialorder %v912, 0.0
      %vm1435 = vcmp.gt.f32.partialorder %v917, 0.0
      %vm1436 = vcmp.gt.f32.partialorder %v922, 0.0
      %vm1437 = vcmp.gt.f32.partialorder %v927, 0.0
      %vm1438 = vcmp.gt.f32.partialorder %v932, 0.0
      %vm1439 = vcmp.gt.f32.partialorder %v937, 0.0
      %vm1440 = vcmp.gt.f32.partialorder %v942, 0.0
      %vm1441 = vcmp.gt.f32.partialorder %v947, 0.0
      %vm1442 = vcmp.gt.f32.partialorder %v952, 0.0
      %vm1443 = vcmp.gt.f32.partialorder %v957, 0.0
      %vm1444 = vcmp.gt.f32.partialorder %v962, 0.0
      %vm1445 = vcmp.gt.f32.partialorder %v967, 0.0
      %vm1446 = vcmp.gt.f32.partialorder %v972, 0.0
      %vm1447 = vcmp.gt.f32.partialorder %v977, 0.0
      %vm1448 = vcmp.gt.f32.partialorder %v982, 0.0
      %vm1449 = vcmp.gt.f32.partialorder %v987, 0.0
      %vm1450 = vcmp.gt.f32.partialorder %v992, 0.0
      %vm1451 = vcmp.gt.f32.partialorder %v997, 0.0
      %vm1452 = vcmp.gt.f32.partialorder %v1002, 0.0
      %vm1453 = vcmp.gt.f32.partialorder %v1007, 0.0
      %vm1454 = vcmp.gt.f32.partialorder %v1012, 0.0
      %vm1455 = vcmp.gt.f32.partialorder %v1017, 0.0
      %vm1456 = vcmp.gt.f32.partialorder %v1022, 0.0
      %vm1457 = vcmp.gt.f32.partialorder %v1027, 0.0
      %vm1458 = vcmp.gt.f32.partialorder %v1032, 0.0
      %vm1459 = vcmp.gt.f32.partialorder %v1037, 0.0
      %vm1460 = vcmp.gt.f32.partialorder %v1042, 0.0
      %vm1461 = vcmp.gt.f32.partialorder %v1047, 0.0
      %vm1462 = vcmp.gt.f32.partialorder %v1052, 0.0
      %vm1463 = vcmp.gt.f32.partialorder %v1057, 0.0
      %vm1464 = vcmp.gt.f32.partialorder %v1062, 0.0
      %vm1465 = vcmp.gt.f32.partialorder %v1067, 0.0
      %vm1466 = vcmp.gt.f32.partialorder %v1072, 0.0
      %vm1467 = vcmp.gt.f32.partialorder %v1077, 0.0
      %vm1468 = vcmp.gt.f32.partialorder %v1082, 0.0
      %vm1469 = vcmp.gt.f32.partialorder %v1087, 0.0
      %vm1470 = vcmp.gt.f32.partialorder %v1092, 0.0
      %vm1471 = vcmp.gt.f32.partialorder %v1097, 0.0
      %vm1472 = vcmp.gt.f32.partialorder %v1102, 0.0
      %vm1473 = vcmp.gt.f32.partialorder %v1107, 0.0
      %vm1474 = vcmp.gt.f32.partialorder %v1112, 0.0
      %vm1475 = vcmp.gt.f32.partialorder %v1117, 0.0
      %vm1476 = vcmp.gt.f32.partialorder %v1122, 0.0
      %vm1477 = vcmp.gt.f32.partialorder %v1127, 0.0
      %vm1478 = vcmp.gt.f32.partialorder %v1132, 0.0
      %vm1479 = vcmp.gt.f32.partialorder %v1137, 0.0
      %vm1480 = vcmp.gt.f32.partialorder %v1142, 0.0
      %vm1481 = vcmp.gt.f32.partialorder %v1147, 0.0
      %vm1482 = vcmp.gt.f32.partialorder %v1152, 0.0
      %vm1483 = vcmp.gt.f32.partialorder %v1157, 0.0
      %vm1484 = vcmp.gt.f32.partialorder %v1162, 0.0
      %vm1485 = vcmp.gt.f32.partialorder %v1167, 0.0
      %vm1486 = vcmp.gt.f32.partialorder %v1172, 0.0
      %vm1487 = vcmp.gt.f32.partialorder %v1177, 0.0
      %vm1488 = vcmp.gt.f32.partialorder %v1182, 0.0
      %vm1489 = vcmp.gt.f32.partialorder %v1187, 0.0
      %vm1490 = vcmp.gt.f32.partialorder %v1192, 0.0
      %vm1491 = vcmp.gt.f32.partialorder %v1197, 0.0
      %vm1492 = vcmp.gt.f32.partialorder %v1202, 0.0
      %vm1493 = vcmp.gt.f32.partialorder %v1207, 0.0
      %vm1494 = vcmp.gt.f32.partialorder %v1212, 0.0
      %vm1495 = vcmp.gt.f32.partialorder %v1217, 0.0
      %vm1496 = vcmp.gt.f32.partialorder %v1222, 0.0
      %vm1497 = vcmp.gt.f32.partialorder %v1227, 0.0
      %vm1498 = vcmp.gt.f32.partialorder %v1232, 0.0
      %vm1499 = vcmp.gt.f32.partialorder %v1237, 0.0
      %vm1500 = vcmp.gt.f32.partialorder %v1242, 0.0
      %vm1501 = vcmp.gt.f32.partialorder %v1247, 0.0
      %vm1502 = vcmp.gt.f32.partialorder %v1252, 0.0
      %vm1503 = vcmp.gt.f32.partialorder %v1257, 0.0
      %vm1504 = vcmp.gt.f32.partialorder %v1262, 0.0
      %vm1505 = vcmp.gt.f32.partialorder %v1267, 0.0
      %vm1506 = vcmp.gt.f32.partialorder %v1272, 0.0
      %vm1507 = vcmp.gt.f32.partialorder %v1277, 0.0
      %vm1508 = vcmp.gt.f32.partialorder %v1282, 0.0
      %vm1509 = vcmp.gt.f32.partialorder %v1287, 0.0
      %vm1510 = vcmp.gt.f32.partialorder %v1292, 0.0
      %vm1511 = vcmp.gt.f32.partialorder %v1297, 0.0
      %vm1512 = vcmp.gt.f32.partialorder %v1302, 0.0
      %vm1513 = vcmp.gt.f32.partialorder %v1307, 0.0
      %vm1514 = vcmp.gt.f32.partialorder %v1312, 0.0
      %vm1515 = vcmp.gt.f32.partialorder %v1317, 0.0
      %vm1516 = vcmp.gt.f32.partialorder %v1322, 0.0
      %vm1517 = vcmp.gt.f32.partialorder %v1327, 0.0
      %vm1518 = vcmp.gt.f32.partialorder %v1332, 0.0
      %vm1519 = vcmp.gt.f32.partialorder %v1337, 0.0
      %vm1520 = vcmp.gt.f32.partialorder %v1342, 0.0
      %vm1521 = vcmp.gt.f32.partialorder %v1347, 0.0
      %vm1522 = vcmp.gt.f32.partialorder %v1352, 0.0
      %vm1523 = vcmp.gt.f32.partialorder %v1357, 0.0
      %vm1524 = vcmp.gt.f32.partialorder %v1362, 0.0
      %vm1525 = vcmp.gt.f32.partialorder %v1367, 0.0
      %vm1526 = vcmp.gt.f32.partialorder %v1372, 0.0
      %vm1527 = vcmp.gt.f32.partialorder %v1377, 0.0
      %vm1528 = vcmp.gt.f32.partialorder %v1382, 0.0
      %vm1529 = vcmp.gt.f32.partialorder %v1387, 0.0
      %vm1530 = vcmp.gt.f32.partialorder %v1392, 0.0
      %vm1531 = vcmp.gt.f32.partialorder %v1397, 0.0
      %vm1532 = vcmp.gt.f32.partialorder %v1402, 0.0
      %v1533 = vmul.f32 %v767, 0.2
      %v1534 = vmul.f32 %v772, 0.2
      %v1535 = vmul.f32 %v777, 0.2
      %v1536 = vmul.f32 %v782, 0.2
      %v1537 = vmul.f32 %v787, 0.2
      %v1538 = vmul.f32 %v792, 0.2
      %v1539 = vmul.f32 %v797, 0.2
      %v1540 = vmul.f32 %v802, 0.2
      %v1541 = vmul.f32 %v807, 0.2
      %v1542 = vmul.f32 %v812, 0.2
      %v1543 = vmul.f32 %v817, 0.2
      %v1544 = vmul.f32 %v822, 0.2
      %v1545 = vmul.f32 %v827, 0.2
      %v1546 = vmul.f32 %v832, 0.2
      %v1547 = vmul.f32 %v837, 0.2
      %v1548 = vmul.f32 %v842, 0.2
      %v1549 = vmul.f32 %v847, 0.2
      %v1550 = vmul.f32 %v852, 0.2
      %v1551 = vmul.f32 %v857, 0.2
      %v1552 = vmul.f32 %v862, 0.2
      %v1553 = vmul.f32 %v867, 0.2
      %v1554 = vmul.f32 %v872, 0.2
      %v1555 = vmul.f32 %v877, 0.2
      %v1556 = vmul.f32 %v882, 0.2
      %v1557 = vmul.f32 %v887, 0.2
      %v1558 = vmul.f32 %v892, 0.2
      %v1559 = vmul.f32 %v897, 0.2
      %v1560 = vmul.f32 %v902, 0.2
      %v1561 = vmul.f32 %v907, 0.2
      %v1562 = vmul.f32 %v912, 0.2
      %v1563 = vmul.f32 %v917, 0.2
      %v1564 = vmul.f32 %v922, 0.2
      %v1565 = vmul.f32 %v927, 0.2
      %v1566 = vmul.f32 %v932, 0.2
      %v1567 = vmul.f32 %v937, 0.2
      %v1568 = vmul.f32 %v942, 0.2
      %v1569 = vmul.f32 %v947, 0.2
      %v1570 = vmul.f32 %v952, 0.2
      %v1571 = vmul.f32 %v957, 0.2
      %v1572 = vmul.f32 %v962, 0.2
      %v1573 = vmul.f32 %v967, 0.2
      %v1574 = vmul.f32 %v972, 0.2
      %v1575 = vmul.f32 %v977, 0.2
      %v1576 = vmul.f32 %v982, 0.2
      %v1577 = vmul.f32 %v987, 0.2
      %v1578 = vmul.f32 %v992, 0.2
      %v1579 = vmul.f32 %v997, 0.2
      %v1580 = vmul.f32 %v1002, 0.2
      %v1581 = vmul.f32 %v1007, 0.2
      %v1582 = vmul.f32 %v1012, 0.2
      %v1583 = vmul.f32 %v1017, 0.2
      %v1584 = vmul.f32 %v1022, 0.2
      %v1585 = vmul.f32 %v1027, 0.2
      %v1586 = vmul.f32 %v1032, 0.2
      %v1587 = vmul.f32 %v1037, 0.2
      %v1588 = vmul.f32 %v1042, 0.2
      %v1589 = vmul.f32 %v1047, 0.2
      %v1590 = vmul.f32 %v1052, 0.2
      %v1591 = vmul.f32 %v1057, 0.2
      %v1592 = vmul.f32 %v1062, 0.2
      %v1593 = vmul.f32 %v1067, 0.2
      %v1594 = vmul.f32 %v1072, 0.2
      %v1595 = vmul.f32 %v1077, 0.2
      %v1596 = vmul.f32 %v1082, 0.2
      %v1597 = vmul.f32 %v1087, 0.2
      %v1598 = vmul.f32 %v1092, 0.2
      %v1599 = vmul.f32 %v1097, 0.2
      %v1600 = vmul.f32 %v1102, 0.2
      %v1601 = vmul.f32 %v1107, 0.2
      %v1602 = vmul.f32 %v1112, 0.2
      %v1603 = vmul.f32 %v1117, 0.2
      %v1604 = vmul.f32 %v1122, 0.2
      %v1605 = vmul.f32 %v1127, 0.2
      %v1606 = vmul.f32 %v1132, 0.2
      %v1607 = vmul.f32 %v1137, 0.2
      %v1608 = vmul.f32 %v1142, 0.2
      %v1609 = vmul.f32 %v1147, 0.2
      %v1610 = vmul.f32 %v1152, 0.2
      %v1611 = vmul.f32 %v1157, 0.2
      %v1612 = vmul.f32 %v1162, 0.2
      %v1613 = vmul.f32 %v1167, 0.2
      %v1614 = vmul.f32 %v1172, 0.2
      %v1615 = vmul.f32 %v1177, 0.2
      %v1616 = vmul.f32 %v1182, 0.2
      %v1617 = vmul.f32 %v1187, 0.2
      %v1618 = vmul.f32 %v1192, 0.2
      %v1619 = vmul.f32 %v1197, 0.2
      %v1620 = vmul.f32 %v1202, 0.2
      %v1621 = vmul.f32 %v1207, 0.2
      %v1622 = vmul.f32 %v1212, 0.2
      %v1623 = vmul.f32 %v1217, 0.2
      %v1624 = vmul.f32 %v1222, 0.2
      %v1625 = vmul.f32 %v1227, 0.2
      %v1626 = vmul.f32 %v1232, 0.2
      %v1627 = vmul.f32 %v1237, 0.2
      %v1628 = vmul.f32 %v1242, 0.2
      %v1629 = vmul.f32 %v1247, 0.2
      %v1630 = vmul.f32 %v1252, 0.2
      %v1631 = vmul.f32 %v1257, 0.2
      %v1632 = vmul.f32 %v1262, 0.2
      %v1633 = vmul.f32 %v1267, 0.2
      %v1634 = vmul.f32 %v1272, 0.2
      %v1635 = vmul.f32 %v1277, 0.2
      %v1636 = vmul.f32 %v1282, 0.2
      %v1637 = vmul.f32 %v1287, 0.2
      %v1638 = vmul.f32 %v1292, 0.2
      %v1639 = vmul.f32 %v1297, 0.2
      %v1640 = vmul.f32 %v1302, 0.2
      %v1641 = vmul.f32 %v1307, 0.2
      %v1642 = vmul.f32 %v1312, 0.2
      %v1643 = vmul.f32 %v1317, 0.2
      %v1644 = vmul.f32 %v1322, 0.2
      %v1645 = vmul.f32 %v1327, 0.2
      %v1646 = vmul.f32 %v1332, 0.2
      %v1647 = vmul.f32 %v1337, 0.2
      %v1648 = vmul.f32 %v1342, 0.2
      %v1649 = vmul.f32 %v1347, 0.2
      %v1650 = vmul.f32 %v1352, 0.2
      %v1651 = vmul.f32 %v1357, 0.2
      %v1652 = vmul.f32 %v1362, 0.2
      %v1653 = vmul.f32 %v1367, 0.2
      %v1654 = vmul.f32 %v1372, 0.2
      %v1655 = vmul.f32 %v1377, 0.2
      %v1656 = vmul.f32 %v1382, 0.2
      %v1657 = vmul.f32 %v1387, 0.2
      %v1658 = vmul.f32 %v1392, 0.2
      %v1659 = vmul.f32 %v1397, 0.2
      %v1660 = vmul.f32 %v1402, 0.2
      %v1661 = vsel %vm1405, %v767, %v1533
      %v1662 = vsel %vm1406, %v772, %v1534
      %v1663 = vsel %vm1407, %v777, %v1535
      %v1664 = vsel %vm1408, %v782, %v1536
      %v1665 = vsel %vm1409, %v787, %v1537
      %v1666 = vsel %vm1410, %v792, %v1538
      %v1667 = vsel %vm1411, %v797, %v1539
      %v1668 = vsel %vm1412, %v802, %v1540
      %v1669 = vsel %vm1413, %v807, %v1541
      %v1670 = vsel %vm1414, %v812, %v1542
      %v1671 = vsel %vm1415, %v817, %v1543
      %v1672 = vsel %vm1416, %v822, %v1544
      %v1673 = vsel %vm1417, %v827, %v1545
      %v1674 = vsel %vm1418, %v832, %v1546
      %v1675 = vsel %vm1419, %v837, %v1547
      %v1676 = vsel %vm1420, %v842, %v1548
      %v1677 = vsel %vm1421, %v847, %v1549
      %v1678 = vsel %vm1422, %v852, %v1550
      %v1679 = vsel %vm1423, %v857, %v1551
      %v1680 = vsel %vm1424, %v862, %v1552
      %v1681 = vsel %vm1425, %v867, %v1553
      %v1682 = vsel %vm1426, %v872, %v1554
      %v1683 = vsel %vm1427, %v877, %v1555
      %v1684 = vsel %vm1428, %v882, %v1556
      %v1685 = vsel %vm1429, %v887, %v1557
      %v1686 = vsel %vm1430, %v892, %v1558
      %v1687 = vsel %vm1431, %v897, %v1559
      %v1688 = vsel %vm1432, %v902, %v1560
      %v1689 = vsel %vm1433, %v907, %v1561
      %v1690 = vsel %vm1434, %v912, %v1562
      %v1691 = vsel %vm1435, %v917, %v1563
      %v1692 = vsel %vm1436, %v922, %v1564
      %v1693 = vsel %vm1437, %v927, %v1565
      %v1694 = vsel %vm1438, %v932, %v1566
      %v1695 = vsel %vm1439, %v937, %v1567
      %v1696 = vsel %vm1440, %v942, %v1568
      %v1697 = vsel %vm1441, %v947, %v1569
      %v1698 = vsel %vm1442, %v952, %v1570
      %v1699 = vsel %vm1443, %v957, %v1571
      %v1700 = vsel %vm1444, %v962, %v1572
      %v1701 = vsel %vm1445, %v967, %v1573
      %v1702 = vsel %vm1446, %v972, %v1574
      %v1703 = vsel %vm1447, %v977, %v1575
      %v1704 = vsel %vm1448, %v982, %v1576
      %v1705 = vsel %vm1449, %v987, %v1577
      %v1706 = vsel %vm1450, %v992, %v1578
      %v1707 = vsel %vm1451, %v997, %v1579
      %v1708 = vsel %vm1452, %v1002, %v1580
      %v1709 = vsel %vm1453, %v1007, %v1581
      %v1710 = vsel %vm1454, %v1012, %v1582
      %v1711 = vsel %vm1455, %v1017, %v1583
      %v1712 = vsel %vm1456, %v1022, %v1584
      %v1713 = vsel %vm1457, %v1027, %v1585
      %v1714 = vsel %vm1458, %v1032, %v1586
      %v1715 = vsel %vm1459, %v1037, %v1587
      %v1716 = vsel %vm1460, %v1042, %v1588
      %v1717 = vsel %vm1461, %v1047, %v1589
      %v1718 = vsel %vm1462, %v1052, %v1590
      %v1719 = vsel %vm1463, %v1057, %v1591
      %v1720 = vsel %vm1464, %v1062, %v1592
      %v1721 = vsel %vm1465, %v1067, %v1593
      %v1722 = vsel %vm1466, %v1072, %v1594
      %v1723 = vsel %vm1467, %v1077, %v1595
      %v1724 = vsel %vm1468, %v1082, %v1596
      %v1725 = vsel %vm1469, %v1087, %v1597
      %v1726 = vsel %vm1470, %v1092, %v1598
      %v1727 = vsel %vm1471, %v1097, %v1599
      %v1728 = vsel %vm1472, %v1102, %v1600
      %v1729 = vsel %vm1473, %v1107, %v1601
      %v1730 = vsel %vm1474, %v1112, %v1602
      %v1731 = vsel %vm1475, %v1117, %v1603
      %v1732 = vsel %vm1476, %v1122, %v1604
      %v1733 = vsel %vm1477, %v1127, %v1605
      %v1734 = vsel %vm1478, %v1132, %v1606
      %v1735 = vsel %vm1479, %v1137, %v1607
      %v1736 = vsel %vm1480, %v1142, %v1608
      %v1737 = vsel %vm1481, %v1147, %v1609
      %v1738 = vsel %vm1482, %v1152, %v1610
      %v1739 = vsel %vm1483, %v1157, %v1611
      %v1740 = vsel %vm1484, %v1162, %v1612
      %v1741 = vsel %vm1485, %v1167, %v1613
      %v1742 = vsel %vm1486, %v1172, %v1614
      %v1743 = vsel %vm1487, %v1177, %v1615
      %v1744 = vsel %vm1488, %v1182, %v1616
      %v1745 = vsel %vm1489, %v1187, %v1617
      %v1746 = vsel %vm1490, %v1192, %v1618
      %v1747 = vsel %vm1491, %v1197, %v1619
      %v1748 = vsel %vm1492, %v1202, %v1620
      %v1749 = vsel %vm1493, %v1207, %v1621
      %v1750 = vsel %vm1494, %v1212, %v1622
      %v1751 = vsel %vm1495, %v1217, %v1623
      %v1752 = vsel %vm1496, %v1222, %v1624
      %v1753 = vsel %vm1497, %v1227, %v1625
      %v1754 = vsel %vm1498, %v1232, %v1626
      %v1755 = vsel %vm1499, %v1237, %v1627
      %v1756 = vsel %vm1500, %v1242, %v1628
      %v1757 = vsel %vm1501, %v1247, %v1629
      %v1758 = vsel %vm1502, %v1252, %v1630
      %v1759 = vsel %vm1503, %v1257, %v1631
      %v1760 = vsel %vm1504, %v1262, %v1632
      %v1761 = vsel %vm1505, %v1267, %v1633
      %v1762 = vsel %vm1506, %v1272, %v1634
      %v1763 = vsel %vm1507, %v1277, %v1635
      %v1764 = vsel %vm1508, %v1282, %v1636
      %v1765 = vsel %vm1509, %v1287, %v1637
      %v1766 = vsel %vm1510, %v1292, %v1638
      %v1767 = vsel %vm1511, %v1297, %v1639
      %v1768 = vsel %vm1512, %v1302, %v1640
      %v1769 = vsel %vm1513, %v1307, %v1641
      %v1770 = vsel %vm1514, %v1312, %v1642
      %v1771 = vsel %vm1515, %v1317, %v1643
      %v1772 = vsel %vm1516, %v1322, %v1644
      %v1773 = vsel %vm1517, %v1327, %v1645
      %v1774 = vsel %vm1518, %v1332, %v1646
      %v1775 = vsel %vm1519, %v1337, %v1647
      %v1776 = vsel %vm1520, %v1342, %v1648
      %v1777 = vsel %vm1521, %v1347, %v1649
      %v1778 = vsel %vm1522, %v1352, %v1650
      %v1779 = vsel %vm1523, %v1357, %v1651
      %v1780 = vsel %vm1524, %v1362, %v1652
      %v1781 = vsel %vm1525, %v1367, %v1653
      %v1782 = vsel %vm1526, %v1372, %v1654
      %v1783 = vsel %vm1527, %v1377, %v1655
      %v1784 = vsel %vm1528, %v1382, %v1656
      %v1785 = vsel %vm1529, %v1387, %v1657
      %v1786 = vsel %vm1530, %v1392, %v1658
      %v1787 = vsel %vm1531, %v1397, %v1659
      %v1788 = vsel %vm1532, %v1402, %v1660
      %vm1789 = vcmask 64512
      %1790 = vst.msk [vmem:[%s172] sm:$0xff] %vm1789, %v1661
      %1791 = vst.msk [vmem:[%s172 + $0x8] sm:$0xff] %vm1789, %v1662
      %1792 = vst.msk [vmem:[%s172 + $0x10] sm:$0xff] %vm1789, %v1663
      %1793 = vst.msk [vmem:[%s172 + $0x18] sm:$0xff] %vm1789, %v1664
      %1794 = vst.msk [vmem:[%s172 + $0x20] sm:$0xff] %vm1789, %v1665
      %1795 = vst.msk [vmem:[%s172 + $0x28] sm:$0xff] %vm1789, %v1666
      %1796 = vst.msk [vmem:[%s172 + $0x30] sm:$0xff] %vm1789, %v1667
      %1797 = vst.msk [vmem:[%s172 + $0x38] sm:$0xff] %vm1789, %v1668
      %1798 = vst.msk [vmem:[%s172 + $0x40] sm:$0xff] %vm1789, %v1669
      %1799 = vst.msk [vmem:[%s172 + $0x48] sm:$0xff] %vm1789, %v1670
      %1800 = vst.msk [vmem:[%s172 + $0x50] sm:$0xff] %vm1789, %v1671
      %1801 = vst.msk [vmem:[%s172 + $0x58] sm:$0xff] %vm1789, %v1672
      %1802 = vst.msk [vmem:[%s172 + $0x60] sm:$0xff] %vm1789, %v1673
      %1803 = vst.msk [vmem:[%s172 + $0x68] sm:$0xff] %vm1789, %v1674
      %1804 = vst.msk [vmem:[%s172 + $0x70] sm:$0xff] %vm1789, %v1675
      %1805 = vst.msk [vmem:[%s172 + $0x78] sm:$0xff] %vm1789, %v1676
      %1806 = vst.msk [vmem:[%s172 + $0x80] sm:$0xff] %vm1789, %v1677
      %1807 = vst.msk [vmem:[%s172 + $0x88] sm:$0xff] %vm1789, %v1678
      %1808 = vst.msk [vmem:[%s172 + $0x90] sm:$0xff] %vm1789, %v1679
      %1809 = vst.msk [vmem:[%s172 + $0x98] sm:$0xff] %vm1789, %v1680
      %1810 = vst.msk [vmem:[%s172 + $0xa0] sm:$0xff] %vm1789, %v1681
      %1811 = vst.msk [vmem:[%s172 + $0xa8] sm:$0xff] %vm1789, %v1682
      %1812 = vst.msk [vmem:[%s172 + $0xb0] sm:$0xff] %vm1789, %v1683
      %1813 = vst.msk [vmem:[%s172 + $0xb8] sm:$0xff] %vm1789, %v1684
      %1814 = vst.msk [vmem:[%s172 + $0xc0] sm:$0xff] %vm1789, %v1685
      %1815 = vst.msk [vmem:[%s172 + $0xc8] sm:$0xff] %vm1789, %v1686
      %1816 = vst.msk [vmem:[%s172 + $0xd0] sm:$0xff] %vm1789, %v1687
      %1817 = vst.msk [vmem:[%s172 + $0xd8] sm:$0xff] %vm1789, %v1688
      %1818 = vst.msk [vmem:[%s172 + $0xe0] sm:$0xff] %vm1789, %v1689
      %1819 = vst.msk [vmem:[%s172 + $0xe8] sm:$0xff] %vm1789, %v1690
      %1820 = vst.msk [vmem:[%s172 + $0xf0] sm:$0xff] %vm1789, %v1691
      %1821 = vst.msk [vmem:[%s172 + $0xf8] sm:$0xff] %vm1789, %v1692
      %1822 = vst.msk [vmem:[%s172 + $0x100] sm:$0xff] %vm1789, %v1693
      %1823 = vst.msk [vmem:[%s172 + $0x108] sm:$0xff] %vm1789, %v1694
      %1824 = vst.msk [vmem:[%s172 + $0x110] sm:$0xff] %vm1789, %v1695
      %1825 = vst.msk [vmem:[%s172 + $0x118] sm:$0xff] %vm1789, %v1696
      %1826 = vst.msk [vmem:[%s172 + $0x120] sm:$0xff] %vm1789, %v1697
      %1827 = vst.msk [vmem:[%s172 + $0x128] sm:$0xff] %vm1789, %v1698
      %1828 = vst.msk [vmem:[%s172 + $0x130] sm:$0xff] %vm1789, %v1699
      %1829 = vst.msk [vmem:[%s172 + $0x138] sm:$0xff] %vm1789, %v1700
      %1830 = vst.msk [vmem:[%s172 + $0x140] sm:$0xff] %vm1789, %v1701
      %1831 = vst.msk [vmem:[%s172 + $0x148] sm:$0xff] %vm1789, %v1702
      %1832 = vst.msk [vmem:[%s172 + $0x150] sm:$0xff] %vm1789, %v1703
      %1833 = vst.msk [vmem:[%s172 + $0x158] sm:$0xff] %vm1789, %v1704
      %1834 = vst.msk [vmem:[%s172 + $0x160] sm:$0xff] %vm1789, %v1705
      %1835 = vst.msk [vmem:[%s172 + $0x168] sm:$0xff] %vm1789, %v1706
      %1836 = vst.msk [vmem:[%s172 + $0x170] sm:$0xff] %vm1789, %v1707
      %1837 = vst.msk [vmem:[%s172 + $0x178] sm:$0xff] %vm1789, %v1708
      %1838 = vst.msk [vmem:[%s172 + $0x180] sm:$0xff] %vm1789, %v1709
      %1839 = vst.msk [vmem:[%s172 + $0x188] sm:$0xff] %vm1789, %v1710
      %1840 = vst.msk [vmem:[%s172 + $0x190] sm:$0xff] %vm1789, %v1711
      %1841 = vst.msk [vmem:[%s172 + $0x198] sm:$0xff] %vm1789, %v1712
      %1842 = vst.msk [vmem:[%s172 + $0x1a0] sm:$0xff] %vm1789, %v1713
      %1843 = vst.msk [vmem:[%s172 + $0x1a8] sm:$0xff] %vm1789, %v1714
      %1844 = vst.msk [vmem:[%s172 + $0x1b0] sm:$0xff] %vm1789, %v1715
      %1845 = vst.msk [vmem:[%s172 + $0x1b8] sm:$0xff] %vm1789, %v1716
      %1846 = vst.msk [vmem:[%s172 + $0x1c0] sm:$0xff] %vm1789, %v1717
      %1847 = vst.msk [vmem:[%s172 + $0x1c8] sm:$0xff] %vm1789, %v1718
      %1848 = vst.msk [vmem:[%s172 + $0x1d0] sm:$0xff] %vm1789, %v1719
      %1849 = vst.msk [vmem:[%s172 + $0x1d8] sm:$0xff] %vm1789, %v1720
      %1850 = vst.msk [vmem:[%s172 + $0x1e0] sm:$0xff] %vm1789, %v1721
      %1851 = vst.msk [vmem:[%s172 + $0x1e8] sm:$0xff] %vm1789, %v1722
      %1852 = vst.msk [vmem:[%s172 + $0x1f0] sm:$0xff] %vm1789, %v1723
      %1853 = vst.msk [vmem:[%s172 + $0x1f8] sm:$0xff] %vm1789, %v1724
      %1854 = vst.msk [vmem:[%s172 + $0x200] sm:$0xff] %vm1789, %v1725
      %1855 = vst.msk [vmem:[%s172 + $0x208] sm:$0xff] %vm1789, %v1726
      %1856 = vst.msk [vmem:[%s172 + $0x210] sm:$0xff] %vm1789, %v1727
      %1857 = vst.msk [vmem:[%s172 + $0x218] sm:$0xff] %vm1789, %v1728
      %1858 = vst.msk [vmem:[%s172 + $0x220] sm:$0xff] %vm1789, %v1729
      %1859 = vst.msk [vmem:[%s172 + $0x228] sm:$0xff] %vm1789, %v1730
      %1860 = vst.msk [vmem:[%s172 + $0x230] sm:$0xff] %vm1789, %v1731
      %1861 = vst.msk [vmem:[%s172 + $0x238] sm:$0xff] %vm1789, %v1732
      %1862 = vst.msk [vmem:[%s172 + $0x240] sm:$0xff] %vm1789, %v1733
      %1863 = vst.msk [vmem:[%s172 + $0x248] sm:$0xff] %vm1789, %v1734
      %1864 = vst.msk [vmem:[%s172 + $0x250] sm:$0xff] %vm1789, %v1735
      %1865 = vst.msk [vmem:[%s172 + $0x258] sm:$0xff] %vm1789, %v1736
      %1866 = vst.msk [vmem:[%s172 + $0x260] sm:$0xff] %vm1789, %v1737
      %1867 = vst.msk [vmem:[%s172 + $0x268] sm:$0xff] %vm1789, %v1738
      %1868 = vst.msk [vmem:[%s172 + $0x270] sm:$0xff] %vm1789, %v1739
      %1869 = vst.msk [vmem:[%s172 + $0x278] sm:$0xff] %vm1789, %v1740
      %1870 = vst.msk [vmem:[%s172 + $0x280] sm:$0xff] %vm1789, %v1741
      %1871 = vst.msk [vmem:[%s172 + $0x288] sm:$0xff] %vm1789, %v1742
      %1872 = vst.msk [vmem:[%s172 + $0x290] sm:$0xff] %vm1789, %v1743
      %1873 = vst.msk [vmem:[%s172 + $0x298] sm:$0xff] %vm1789, %v1744
      %1874 = vst.msk [vmem:[%s172 + $0x2a0] sm:$0xff] %vm1789, %v1745
      %1875 = vst.msk [vmem:[%s172 + $0x2a8] sm:$0xff] %vm1789, %v1746
      %1876 = vst.msk [vmem:[%s172 + $0x2b0] sm:$0xff] %vm1789, %v1747
      %1877 = vst.msk [vmem:[%s172 + $0x2b8] sm:$0xff] %vm1789, %v1748
      %1878 = vst.msk [vmem:[%s172 + $0x2c0] sm:$0xff] %vm1789, %v1749
      %1879 = vst.msk [vmem:[%s172 + $0x2c8] sm:$0xff] %vm1789, %v1750
      %1880 = vst.msk [vmem:[%s172 + $0x2d0] sm:$0xff] %vm1789, %v1751
      %1881 = vst.msk [vmem:[%s172 + $0x2d8] sm:$0xff] %vm1789, %v1752
      %1882 = vst.msk [vmem:[%s172 + $0x2e0] sm:$0xff] %vm1789, %v1753
      %1883 = vst.msk [vmem:[%s172 + $0x2e8] sm:$0xff] %vm1789, %v1754
      %1884 = vst.msk [vmem:[%s172 + $0x2f0] sm:$0xff] %vm1789, %v1755
      %1885 = vst.msk [vmem:[%s172 + $0x2f8] sm:$0xff] %vm1789, %v1756
      %1886 = vst.msk [vmem:[%s172 + $0x300] sm:$0xff] %vm1789, %v1757
      %1887 = vst.msk [vmem:[%s172 + $0x308] sm:$0xff] %vm1789, %v1758
      %1888 = vst.msk [vmem:[%s172 + $0x310] sm:$0xff] %vm1789, %v1759
      %1889 = vst.msk [vmem:[%s172 + $0x318] sm:$0xff] %vm1789, %v1760
      %1890 = vst.msk [vmem:[%s172 + $0x320] sm:$0xff] %vm1789, %v1761
      %1891 = vst.msk [vmem:[%s172 + $0x328] sm:$0xff] %vm1789, %v1762
      %1892 = vst.msk [vmem:[%s172 + $0x330] sm:$0xff] %vm1789, %v1763
      %1893 = vst.msk [vmem:[%s172 + $0x338] sm:$0xff] %vm1789, %v1764
      %1894 = vst.msk [vmem:[%s172 + $0x340] sm:$0xff] %vm1789, %v1765
      %1895 = vst.msk [vmem:[%s172 + $0x348] sm:$0xff] %vm1789, %v1766
      %1896 = vst.msk [vmem:[%s172 + $0x350] sm:$0xff] %vm1789, %v1767
      %1897 = vst.msk [vmem:[%s172 + $0x358] sm:$0xff] %vm1789, %v1768
      %1898 = vst.msk [vmem:[%s172 + $0x360] sm:$0xff] %vm1789, %v1769
      %1899 = vst.msk [vmem:[%s172 + $0x368] sm:$0xff] %vm1789, %v1770
      %1900 = vst.msk [vmem:[%s172 + $0x370] sm:$0xff] %vm1789, %v1771
      %1901 = vst.msk [vmem:[%s172 + $0x378] sm:$0xff] %vm1789, %v1772
      %1902 = vst.msk [vmem:[%s172 + $0x380] sm:$0xff] %vm1789, %v1773
      %1903 = vst.msk [vmem:[%s172 + $0x388] sm:$0xff] %vm1789, %v1774
      %1904 = vst.msk [vmem:[%s172 + $0x390] sm:$0xff] %vm1789, %v1775
      %1905 = vst.msk [vmem:[%s172 + $0x398] sm:$0xff] %vm1789, %v1776
      %1906 = vst.msk [vmem:[%s172 + $0x3a0] sm:$0xff] %vm1789, %v1777
      %1907 = vst.msk [vmem:[%s172 + $0x3a8] sm:$0xff] %vm1789, %v1778
      %1908 = vst.msk [vmem:[%s172 + $0x3b0] sm:$0xff] %vm1789, %v1779
      %1909 = vst.msk [vmem:[%s172 + $0x3b8] sm:$0xff] %vm1789, %v1780
      %1910 = vst.msk [vmem:[%s172 + $0x3c0] sm:$0xff] %vm1789, %v1781
      %1911 = vst.msk [vmem:[%s172 + $0x3c8] sm:$0xff] %vm1789, %v1782
      %1912 = vst.msk [vmem:[%s172 + $0x3d0] sm:$0xff] %vm1789, %v1783
      %1913 = vst.msk [vmem:[%s172 + $0x3d8] sm:$0xff] %vm1789, %v1784
      %1914 = vst.msk [vmem:[%s172 + $0x3e0] sm:$0xff] %vm1789, %v1785
      %1915 = vst.msk [vmem:[%s172 + $0x3e8] sm:$0xff] %vm1789, %v1786
      %1916 = vst.msk [vmem:[%s172 + $0x3f0] sm:$0xff] %vm1789, %v1787
      %1917 = vst.msk [vmem:[%s172 + $0x3f8] sm:$0xff] %vm1789, %v1788
      %s1918 = smul.u32 128, %s14
      %p1919 = scmp.lt.s32.totalorder %s1918, 255
      %s1920 = scalar_select %p1919, %s1918, 255
      %s1921 = smul.addr %s1920, 8
      %s1922 = scalar_lea.vmem %s3, %s1921
      // Predicated region
      $region33: #{discriminator_forward.5} parent=31 // pred_check
        %p1923 = pneg %p100
      $region34: #{discriminator_forward.5} parent=31 // pred_check_branch
        %1925 = sbr.rel (%p1923) target = $region36
      $region35: #{discriminator_forward.5} parent=31 // pred_region
        %s1926 = smul.u32 128, %s14
      $region36: #{discriminator_forward.5} parent=31 // pred_fallthru
        _
    $region32: #{discriminator_forward.5} parent=5 // pred_fallthru
      _
    %p1927 = scmp.le.s32.totalorder 2, %s9
    // Predicated region
    $region37: #{discriminator_forward.5} parent=5 // pred_check
      %p1928 = pneg %p1927
    $region38: #{discriminator_forward.5} parent=5 // pred_check_branch
      %1930 = sbr.rel (%p1928) target = $region40
    $region39: #{discriminator_forward.5} parent=5 // pred_region
      %s1931 = ssub.s32 %s9, 2
      // Predicated region
      $region41: #{discriminator_forward.5} parent=39 // pred_check
        %p1932 = pneg %p106
      $region42: #{discriminator_forward.5} parent=39 // pred_check_branch
        %1934 = sbr.rel (%p1932) target = $region44
      $region43: #{discriminator_forward.5} parent=39 // pred_region
        %s1935 = smul.u32 128, %s15
        %p1936 = scmp.lt.s32.totalorder %s1935, 255
        %s1937 = scalar_select %p1936, %s1935, 255
        %s1938 = smul.addr %s1937, 8
        %s1939 = scalar_lea.vmem %s3, %s1938
      $region44: #{discriminator_forward.5} parent=39 // pred_fallthru
        _
    $region40: #{discriminator_forward.5} parent=5 // pred_fallthru
      _
  $region6: #{discriminator_forward.5} parent=0 // loop_footer
    %s13 = sadd.s32 1, %s9
  $region7: #{discriminator_forward.5} parent=0 // loop_footer_branch
    %8 = sbr.rel target = $region3
  $region8: #{discriminator_forward.5} parent=0 // loop_exit
    _

// kernel: discriminator_forward.6
$region0: #{discriminator_forward.6}
  #allocation0 [shape = 'u32[]', space=smem, size = 0x4, offset = 0x4, fixed_abs, tag = 'smem constant byte address 0x4 - core index']
  #allocation1 [shape = 'u32[144,128]{1,0:T(1,128)}', space=vmem, size = 0x12000, scoped, tag = 'internal scratch']
  %s0 = inlined_call_operand.vmem [shape: f32[512,128], index: 0, kind: input, shape index: {}]
  %s1 = inlined_call_operand.vmem [shape: f32[128,16], index: 1, kind: input, shape index: {}]
  %s2 = inlined_call_operand.vmem [shape: f32[1,16], index: 2, kind: input, shape index: {}]
  %s3 = inlined_call_operand.vmem [shape: f32[1,16], index: 3, kind: input, shape index: {}]
  %s4 = inlined_call_operand.vmem [shape: f32[512,16], index: 4, kind: output, shape index: {}]
  %s5 = sld [smem:[#allocation0]]
  $region26: #{discriminator_forward.6} parent=0
    _
  %s7 = ssub.s32 1, %s5
  %s8 = scalar_select 0, %s7, %s5
  // Predicated region
  $region2: #{discriminator_forward.6} parent=0 // pred_check
    _
  $region3: #{discriminator_forward.6} parent=0 // pred_check_branch
    %10 = sbr.rel (0) target = $region5
  $region4: #{discriminator_forward.6} parent=0 // pred_region
    _
  $region5: #{discriminator_forward.6} parent=0 // pred_fallthru
    _
  // Predicated region
  $region6: #{discriminator_forward.6} parent=0 // pred_check
    _
  $region7: #{discriminator_forward.6} parent=0 // pred_check_branch
    %12 = sbr.rel (0) target = $region9
  $region8: #{discriminator_forward.6} parent=0 // pred_region
    _
  $region9: #{discriminator_forward.6} parent=0 // pred_fallthru
    _
  // Predicated region
  $region10: #{discriminator_forward.6} parent=0 // pred_check
    _
  $region11: #{discriminator_forward.6} parent=0 // pred_check_branch
    %14 = sbr.rel (0) target = $region13
  $region12: #{discriminator_forward.6} parent=0 // pred_region
    _
  $region13: #{discriminator_forward.6} parent=0 // pred_fallthru
    _
  // Predicated region
  $region14: #{discriminator_forward.6} parent=0 // pred_check
    _
  $region15: #{discriminator_forward.6} parent=0 // pred_check_branch
    %16 = sbr.rel (0) target = $region17
  $region16: #{discriminator_forward.6} parent=0 // pred_region
    _
  $region17: #{discriminator_forward.6} parent=0 // pred_fallthru
    _
  %v17 = vld [vmem:[%s0] sm:$0xff]
  %v18 = vld [vmem:[%s0 + $0x8] sm:$0xff]
  %v19 = vld [vmem:[%s0 + $0x10] sm:$0xff]
  %v20 = vld [vmem:[%s0 + $0x18] sm:$0xff]
  %v21 = vld [vmem:[%s0 + $0x20] sm:$0xff]
  %v22 = vld [vmem:[%s0 + $0x28] sm:$0xff]
  %v23 = vld [vmem:[%s0 + $0x30] sm:$0xff]
  %v24 = vld [vmem:[%s0 + $0x38] sm:$0xff]
  %v25 = vld [vmem:[%s0 + $0x40] sm:$0xff]
  %v26 = vld [vmem:[%s0 + $0x48] sm:$0xff]
  %v27 = vld [vmem:[%s0 + $0x50] sm:$0xff]
  %v28 = vld [vmem:[%s0 + $0x58] sm:$0xff]
  %v29 = vld [vmem:[%s0 + $0x60] sm:$0xff]
  %v30 = vld [vmem:[%s0 + $0x68] sm:$0xff]
  %v31 = vld [vmem:[%s0 + $0x70] sm:$0xff]
  %v32 = vld [vmem:[%s0 + $0x78] sm:$0xff]
  %v33 = vld [vmem:[%s0 + $0x80] sm:$0xff]
  %v34 = vld [vmem:[%s0 + $0x88] sm:$0xff]
  %v35 = vld [vmem:[%s0 + $0x90] sm:$0xff]
  %v36 = vld [vmem:[%s0 + $0x98] sm:$0xff]
  %v37 = vld [vmem:[%s0 + $0xa0] sm:$0xff]
  %v38 = vld [vmem:[%s0 + $0xa8] sm:$0xff]
  %v39 = vld [vmem:[%s0 + $0xb0] sm:$0xff]
  %v40 = vld [vmem:[%s0 + $0xb8] sm:$0xff]
  %v41 = vld [vmem:[%s0 + $0xc0] sm:$0xff]
  %v42 = vld [vmem:[%s0 + $0xc8] sm:$0xff]
  %v43 = vld [vmem:[%s0 + $0xd0] sm:$0xff]
  %v44 = vld [vmem:[%s0 + $0xd8] sm:$0xff]
  %v45 = vld [vmem:[%s0 + $0xe0] sm:$0xff]
  %v46 = vld [vmem:[%s0 + $0xe8] sm:$0xff]
  %v47 = vld [vmem:[%s0 + $0xf0] sm:$0xff]
  %v48 = vld [vmem:[%s0 + $0xf8] sm:$0xff]
  %v49 = vld [vmem:[%s0 + $0x100] sm:$0xff]
  %v50 = vld [vmem:[%s0 + $0x108] sm:$0xff]
  %v51 = vld [vmem:[%s0 + $0x110] sm:$0xff]
  %v52 = vld [vmem:[%s0 + $0x118] sm:$0xff]
  %v53 = vld [vmem:[%s0 + $0x120] sm:$0xff]
  %v54 = vld [vmem:[%s0 + $0x128] sm:$0xff]
  %v55 = vld [vmem:[%s0 + $0x130] sm:$0xff]
  %v56 = vld [vmem:[%s0 + $0x138] sm:$0xff]
  %v57 = vld [vmem:[%s0 + $0x140] sm:$0xff]
  %v58 = vld [vmem:[%s0 + $0x148] sm:$0xff]
  %v59 = vld [vmem:[%s0 + $0x150] sm:$0xff]
  %v60 = vld [vmem:[%s0 + $0x158] sm:$0xff]
  %v61 = vld [vmem:[%s0 + $0x160] sm:$0xff]
  %v62 = vld [vmem:[%s0 + $0x168] sm:$0xff]
  %v63 = vld [vmem:[%s0 + $0x170] sm:$0xff]
  %v64 = vld [vmem:[%s0 + $0x178] sm:$0xff]
  %v65 = vld [vmem:[%s0 + $0x180] sm:$0xff]
  %v66 = vld [vmem:[%s0 + $0x188] sm:$0xff]
  %v67 = vld [vmem:[%s0 + $0x190] sm:$0xff]
  %v68 = vld [vmem:[%s0 + $0x198] sm:$0xff]
  %v69 = vld [vmem:[%s0 + $0x1a0] sm:$0xff]
  %v70 = vld [vmem:[%s0 + $0x1a8] sm:$0xff]
  %v71 = vld [vmem:[%s0 + $0x1b0] sm:$0xff]
  %v72 = vld [vmem:[%s0 + $0x1b8] sm:$0xff]
  %v73 = vld [vmem:[%s0 + $0x1c0] sm:$0xff]
  %v74 = vld [vmem:[%s0 + $0x1c8] sm:$0xff]
  %v75 = vld [vmem:[%s0 + $0x1d0] sm:$0xff]
  %v76 = vld [vmem:[%s0 + $0x1d8] sm:$0xff]
  %v77 = vld [vmem:[%s0 + $0x1e0] sm:$0xff]
  %v78 = vld [vmem:[%s0 + $0x1e8] sm:$0xff]
  %v79 = vld [vmem:[%s0 + $0x1f0] sm:$0xff]
  %v80 = vld [vmem:[%s0 + $0x1f8] sm:$0xff]
  %v81 = vld [vmem:[%s1] sm:$0xff]
  %v82 = vld [vmem:[%s1 + $0x8] sm:$0xff]
  %v83 = vld [vmem:[%s1 + $0x10] sm:$0xff]
  %v84 = vld [vmem:[%s1 + $0x18] sm:$0xff]
  %v85 = vld [vmem:[%s1 + $0x20] sm:$0xff]
  %v86 = vld [vmem:[%s1 + $0x28] sm:$0xff]
  %v87 = vld [vmem:[%s1 + $0x30] sm:$0xff]
  %v88 = vld [vmem:[%s1 + $0x38] sm:$0xff]
  %v89 = vld [vmem:[%s1 + $0x40] sm:$0xff]
  %v90 = vld [vmem:[%s1 + $0x48] sm:$0xff]
  %v91 = vld [vmem:[%s1 + $0x50] sm:$0xff]
  %v92 = vld [vmem:[%s1 + $0x58] sm:$0xff]
  %v93 = vld [vmem:[%s1 + $0x60] sm:$0xff]
  %v94 = vld [vmem:[%s1 + $0x68] sm:$0xff]
  %v95 = vld [vmem:[%s1 + $0x70] sm:$0xff]
  %v96 = vld [vmem:[%s1 + $0x78] sm:$0xff]
  %97 = vmatprep.subr.mxu0 0.0
  %98 = vmatpush1.msra.mxu0 %v81
  %99 = vmatprep.subr.mxu0 0.0
  %100 = vmatpush1.msra.mxu0 %v82
  %101 = vmatprep.subr.mxu0 0.0
  %102 = vmatpush1.msra.mxu0 %v83
  %103 = vmatprep.subr.mxu0 0.0
  %104 = vmatpush1.msra.mxu0 %v84
  %105 = vmatprep.subr.mxu0 0.0
  %106 = vmatpush1.msra.mxu0 %v85
  %107 = vmatprep.subr.mxu0 0.0
  %108 = vmatpush1.msra.mxu0 %v86
  %109 = vmatprep.subr.mxu0 0.0
  %110 = vmatpush1.msra.mxu0 %v87
  %111 = vmatprep.subr.mxu0 0.0
  %112 = vmatpush1.msra.mxu0 %v88
  %113 = vmatprep.subr.mxu0 0.0
  %114 = vmatpush1.msra.mxu0 %v89
  %115 = vmatprep.subr.mxu0 0.0
  %116 = vmatpush1.msra.mxu0 %v90
  %117 = vmatprep.subr.mxu0 0.0
  %118 = vmatpush1.msra.mxu0 %v91
  %119 = vmatprep.subr.mxu0 0.0
  %120 = vmatpush1.msra.mxu0 %v92
  %121 = vmatprep.subr.mxu0 0.0
  %122 = vmatpush1.msra.mxu0 %v93
  %123 = vmatprep.subr.mxu0 0.0
  %124 = vmatpush1.msra.mxu0 %v94
  %125 = vmatprep.subr.mxu0 0.0
  %126 = vmatpush1.msra.mxu0 %v95
  %127 = vmatprep.subr.mxu0 0.0
  %128 = vmatpush1.msra.mxu0 %v96
  %129 = vmatprep.subr.mxu0 0.0
  %130 = vmatpush1.msra.mxu0 0.0
  %131 = vmatprep.subr.mxu0 0.0
  %132 = vmatpush1.msra.mxu0 0.0
  %133 = vmatprep.subr.mxu0 0.0
  %134 = vmatpush1.msra.mxu0 0.0
  %135 = vmatprep.subr.mxu0 0.0
  %136 = vmatpush1.msra.mxu0 0.0
  %137 = vmatprep.subr.mxu0 0.0
  %138 = vmatpush1.msra.mxu0 0.0
  %139 = vmatprep.subr.mxu0 0.0
  %140 = vmatpush1.msra.mxu0 0.0
  %141 = vmatprep.subr.mxu0 0.0
  %142 = vmatpush1.msra.mxu0 0.0
  %143 = vmatprep.subr.mxu0 0.0
  %144 = vmatpush1.msra.mxu0 0.0
  %145 = vmatprep.subr.mxu0 0.0
  %146 = vmatpush1.msra.mxu0 0.0
  %147 = vmatprep.subr.mxu0 0.0
  %148 = vmatpush1.msra.mxu0 0.0
  %149 = vmatprep.subr.mxu0 0.0
  %150 = vmatpush1.msra.mxu0 0.0
  %151 = vmatprep.subr.mxu0 0.0
  %152 = vmatpush1.msra.mxu0 0.0
  %153 = vmatprep.subr.mxu0 0.0
  %154 = vmatpush1.msra.mxu0 0.0
  %155 = vmatprep.subr.mxu0 0.0
  %156 = vmatpush1.msra.mxu0 0.0
  %157 = vmatprep.subr.mxu0 0.0
  %158 = vmatpush1.msra.mxu0 0.0
  %159 = vmatprep.subr.mxu0 0.0
  %160 = vmatpush1.msra.mxu0 0.0
  %161 = vmatprep.mubr.f32.mxu0 0.0
  %162 = vmatmul.mubr.f32.gmra.mrb[0].mxu0 %v17
  %v163 = vpop.f32.mrb[0].mxu0
  %v164 = vadd.f32 0.0, %v163
  %v165 = vpop.f32.mrb[0].mxu0
  %166 = vmatprep.mubr.f32.mxu0 0.0
  %167 = vmatmul.mubr.f32.gmra.mrb[0].mxu0 %v18
  %v168 = vpop.f32.mrb[0].mxu0
  %v169 = vadd.f32 0.0, %v168
  %v170 = vpop.f32.mrb[0].mxu0
  %171 = vmatprep.mubr.f32.mxu0 0.0
  %172 = vmatmul.mubr.f32.gmra.mrb[0].mxu0 %v19
  %v173 = vpop.f32.mrb[0].mxu0
  %v174 = vadd.f32 0.0, %v173
  %v175 = vpop.f32.mrb[0].mxu0
  %176 = vmatprep.mubr.f32.mxu0 0.0
  %177 = vmatmul.mubr.f32.gmra.mrb[0].mxu0 %v20
  %v178 = vpop.f32.mrb[0].mxu0
  %v179 = vadd.f32 0.0, %v178
  %v180 = vpop.f32.mrb[0].mxu0
  %181 = vmatprep.mubr.f32.mxu0 0.0
  %182 = vmatmul.mubr.f32.gmra.mrb[0].mxu0 %v21
  %v183 = vpop.f32.mrb[0].mxu0
  %v184 = vadd.f32 0.0, %v183
  %v185 = vpop.f32.mrb[0].mxu0
  %186 = vmatprep.mubr.f32.mxu0 0.0
  %187 = vmatmul.mubr.f32.gmra.mrb[0].mxu0 %v22
  %v188 = vpop.f32.mrb[0].mxu0
  %v189 = vadd.f32 0.0, %v188
  %v190 = vpop.f32.mrb[0].mxu0
  %191 = vmatprep.mubr.f32.mxu0 0.0
  %192 = vmatmul.mubr.f32.gmra.mrb[0].mxu0 %v23
  %v193 = vpop.f32.mrb[0].mxu0
  %v194 = vadd.f32 0.0, %v193
  %v195 = vpop.f32.mrb[0].mxu0
  %196 = vmatprep.mubr.f32.mxu0 0.0
  %197 = vmatmul.mubr.f32.gmra.mrb[0].mxu0 %v24
  %v198 = vpop.f32.mrb[0].mxu0
  %v199 = vadd.f32 0.0, %v198
  %v200 = vpop.f32.mrb[0].mxu0
  %201 = vmatprep.mubr.f32.mxu0 0.0
  %202 = vmatmul.mubr.f32.gmra.mrb[0].mxu0 %v25
  %v203 = vpop.f32.mrb[0].mxu0
  %v204 = vadd.f32 0.0, %v203
  %v205 = vpop.f32.mrb[0].mxu0
  %206 = vmatprep.mubr.f32.mxu0 0.0
  %207 = vmatmul.mubr.f32.gmra.mrb[0].mxu0 %v26
  %v208 = vpop.f32.mrb[0].mxu0
  %v209 = vadd.f32 0.0, %v208
  %v210 = vpop.f32.mrb[0].mxu0
  %211 = vmatprep.mubr.f32.mxu0 0.0
  %212 = vmatmul.mubr.f32.gmra.mrb[0].mxu0 %v27
  %v213 = vpop.f32.mrb[0].mxu0
  %v214 = vadd.f32 0.0, %v213
  %v215 = vpop.f32.mrb[0].mxu0
  %216 = vmatprep.mubr.f32.mxu0 0.0
  %217 = vmatmul.mubr.f32.gmra.mrb[0].mxu0 %v28
  %v218 = vpop.f32.mrb[0].mxu0
  %v219 = vadd.f32 0.0, %v218
  %v220 = vpop.f32.mrb[0].mxu0
  %221 = vmatprep.mubr.f32.mxu0 0.0
  %222 = vmatmul.mubr.f32.gmra.mrb[0].mxu0 %v29
  %v223 = vpop.f32.mrb[0].mxu0
  %v224 = vadd.f32 0.0, %v223
  %v225 = vpop.f32.mrb[0].mxu0
  %226 = vmatprep.mubr.f32.mxu0 0.0
  %227 = vmatmul.mubr.f32.gmra.mrb[0].mxu0 %v30
  %v228 = vpop.f32.mrb[0].mxu0
  %v229 = vadd.f32 0.0, %v228
  %v230 = vpop.f32.mrb[0].mxu0
  %231 = vmatprep.mubr.f32.mxu0 0.0
  %232 = vmatmul.mubr.f32.gmra.mrb[0].mxu0 %v31
  %v233 = vpop.f32.mrb[0].mxu0
  %v234 = vadd.f32 0.0, %v233
  %v235 = vpop.f32.mrb[0].mxu0
  %236 = vmatprep.mubr.f32.mxu0 0.0
  %237 = vmatmul.mubr.f32.gmra.mrb[0].mxu0 %v32
  %v238 = vpop.f32.mrb[0].mxu0
  %v239 = vadd.f32 0.0, %v238
  %v240 = vpop.f32.mrb[0].mxu0
  %241 = vmatprep.mubr.f32.mxu0 0.0
  %242 = vmatmul.mubr.f32.gmra.mrb[0].mxu0 %v33
  %v243 = vpop.f32.mrb[0].mxu0
  %v244 = vadd.f32 0.0, %v243
  %v245 = vpop.f32.mrb[0].mxu0
  %246 = vmatprep.mubr.f32.mxu0 0.0
  %247 = vmatmul.mubr.f32.gmra.mrb[0].mxu0 %v34
  %v248 = vpop.f32.mrb[0].mxu0
  %v249 = vadd.f32 0.0, %v248
  %v250 = vpop.f32.mrb[0].mxu0
  %251 = vmatprep.mubr.f32.mxu0 0.0
  %252 = vmatmul.mubr.f32.gmra.mrb[0].mxu0 %v35
  %v253 = vpop.f32.mrb[0].mxu0
  %v254 = vadd.f32 0.0, %v253
  %v255 = vpop.f32.mrb[0].mxu0
  %256 = vmatprep.mubr.f32.mxu0 0.0
  %257 = vmatmul.mubr.f32.gmra.mrb[0].mxu0 %v36
  %v258 = vpop.f32.mrb[0].mxu0
  %v259 = vadd.f32 0.0, %v258
  %v260 = vpop.f32.mrb[0].mxu0
  %261 = vmatprep.mubr.f32.mxu0 0.0
  %262 = vmatmul.mubr.f32.gmra.mrb[0].mxu0 %v37
  %v263 = vpop.f32.mrb[0].mxu0
  %v264 = vadd.f32 0.0, %v263
  %v265 = vpop.f32.mrb[0].mxu0
  %266 = vmatprep.mubr.f32.mxu0 0.0
  %267 = vmatmul.mubr.f32.gmra.mrb[0].mxu0 %v38
  %v268 = vpop.f32.mrb[0].mxu0
  %v269 = vadd.f32 0.0, %v268
  %v270 = vpop.f32.mrb[0].mxu0
  %271 = vmatprep.mubr.f32.mxu0 0.0
  %272 = vmatmul.mubr.f32.gmra.mrb[0].mxu0 %v39
  %v273 = vpop.f32.mrb[0].mxu0
  %v274 = vadd.f32 0.0, %v273
  %v275 = vpop.f32.mrb[0].mxu0
  %276 = vmatprep.mubr.f32.mxu0 0.0
  %277 = vmatmul.mubr.f32.gmra.mrb[0].mxu0 %v40
  %v278 = vpop.f32.mrb[0].mxu0
  %v279 = vadd.f32 0.0, %v278
  %v280 = vpop.f32.mrb[0].mxu0
  %281 = vmatprep.mubr.f32.mxu0 0.0
  %282 = vmatmul.mubr.f32.gmra.mrb[0].mxu0 %v41
  %v283 = vpop.f32.mrb[0].mxu0
  %v284 = vadd.f32 0.0, %v283
  %v285 = vpop.f32.mrb[0].mxu0
  %286 = vmatprep.mubr.f32.mxu0 0.0
  %287 = vmatmul.mubr.f32.gmra.mrb[0].mxu0 %v42
  %v288 = vpop.f32.mrb[0].mxu0
  %v289 = vadd.f32 0.0, %v288
  %v290 = vpop.f32.mrb[0].mxu0
  %291 = vmatprep.mubr.f32.mxu0 0.0
  %292 = vmatmul.mubr.f32.gmra.mrb[0].mxu0 %v43
  %v293 = vpop.f32.mrb[0].mxu0
  %v294 = vadd.f32 0.0, %v293
  %v295 = vpop.f32.mrb[0].mxu0
  %296 = vmatprep.mubr.f32.mxu0 0.0
  %297 = vmatmul.mubr.f32.gmra.mrb[0].mxu0 %v44
  %v298 = vpop.f32.mrb[0].mxu0
  %v299 = vadd.f32 0.0, %v298
  %v300 = vpop.f32.mrb[0].mxu0
  %301 = vmatprep.mubr.f32.mxu0 0.0
  %302 = vmatmul.mubr.f32.gmra.mrb[0].mxu0 %v45
  %v303 = vpop.f32.mrb[0].mxu0
  %v304 = vadd.f32 0.0, %v303
  %v305 = vpop.f32.mrb[0].mxu0
  %306 = vmatprep.mubr.f32.mxu0 0.0
  %307 = vmatmul.mubr.f32.gmra.mrb[0].mxu0 %v46
  %v308 = vpop.f32.mrb[0].mxu0
  %v309 = vadd.f32 0.0, %v308
  %v310 = vpop.f32.mrb[0].mxu0
  %311 = vmatprep.mubr.f32.mxu0 0.0
  %312 = vmatmul.mubr.f32.gmra.mrb[0].mxu0 %v47
  %v313 = vpop.f32.mrb[0].mxu0
  %v314 = vadd.f32 0.0, %v313
  %v315 = vpop.f32.mrb[0].mxu0
  %316 = vmatprep.mubr.f32.mxu0 0.0
  %317 = vmatmul.mubr.f32.gmra.mrb[0].mxu0 %v48
  %v318 = vpop.f32.mrb[0].mxu0
  %v319 = vadd.f32 0.0, %v318
  %v320 = vpop.f32.mrb[0].mxu0
  %321 = vmatprep.mubr.f32.mxu0 0.0
  %322 = vmatmul.mubr.f32.gmra.mrb[0].mxu0 %v49
  %v323 = vpop.f32.mrb[0].mxu0
  %v324 = vadd.f32 0.0, %v323
  %v325 = vpop.f32.mrb[0].mxu0
  %326 = vmatprep.mubr.f32.mxu0 0.0
  %327 = vmatmul.mubr.f32.gmra.mrb[0].mxu0 %v50
  %v328 = vpop.f32.mrb[0].mxu0
  %v329 = vadd.f32 0.0, %v328
  %v330 = vpop.f32.mrb[0].mxu0
  %331 = vmatprep.mubr.f32.mxu0 0.0
  %332 = vmatmul.mubr.f32.gmra.mrb[0].mxu0 %v51
  %v333 = vpop.f32.mrb[0].mxu0
  %v334 = vadd.f32 0.0, %v333
  %v335 = vpop.f32.mrb[0].mxu0
  %336 = vmatprep.mubr.f32.mxu0 0.0
  %337 = vmatmul.mubr.f32.gmra.mrb[0].mxu0 %v52
  %v338 = vpop.f32.mrb[0].mxu0
  %v339 = vadd.f32 0.0, %v338
  %v340 = vpop.f32.mrb[0].mxu0
  %341 = vmatprep.mubr.f32.mxu0 0.0
  %342 = vmatmul.mubr.f32.gmra.mrb[0].mxu0 %v53
  %v343 = vpop.f32.mrb[0].mxu0
  %v344 = vadd.f32 0.0, %v343
  %v345 = vpop.f32.mrb[0].mxu0
  %346 = vmatprep.mubr.f32.mxu0 0.0
  %347 = vmatmul.mubr.f32.gmra.mrb[0].mxu0 %v54
  %v348 = vpop.f32.mrb[0].mxu0
  %v349 = vadd.f32 0.0, %v348
  %v350 = vpop.f32.mrb[0].mxu0
  %351 = vmatprep.mubr.f32.mxu0 0.0
  %352 = vmatmul.mubr.f32.gmra.mrb[0].mxu0 %v55
  %v353 = vpop.f32.mrb[0].mxu0
  %v354 = vadd.f32 0.0, %v353
  %v355 = vpop.f32.mrb[0].mxu0
  %356 = vmatprep.mubr.f32.mxu0 0.0
  %357 = vmatmul.mubr.f32.gmra.mrb[0].mxu0 %v56
  %v358 = vpop.f32.mrb[0].mxu0
  %v359 = vadd.f32 0.0, %v358
  %v360 = vpop.f32.mrb[0].mxu0
  %361 = vmatprep.mubr.f32.mxu0 0.0
  %362 = vmatmul.mubr.f32.gmra.mrb[0].mxu0 %v57
  %v363 = vpop.f32.mrb[0].mxu0
  %v364 = vadd.f32 0.0, %v363
  %v365 = vpop.f32.mrb[0].mxu0
  %366 = vmatprep.mubr.f32.mxu0 0.0
  %367 = vmatmul.mubr.f32.gmra.mrb[0].mxu0 %v58
  %v368 = vpop.f32.mrb[0].mxu0
  %v369 = vadd.f32 0.0, %v368
  %v370 = vpop.f32.mrb[0].mxu0
  %371 = vmatprep.mubr.f32.mxu0 0.0
  %372 = vmatmul.mubr.f32.gmra.mrb[0].mxu0 %v59
  %v373 = vpop.f32.mrb[0].mxu0
  %v374 = vadd.f32 0.0, %v373
  %v375 = vpop.f32.mrb[0].mxu0
  %376 = vmatprep.mubr.f32.mxu0 0.0
  %377 = vmatmul.mubr.f32.gmra.mrb[0].mxu0 %v60
  %v378 = vpop.f32.mrb[0].mxu0
  %v379 = vadd.f32 0.0, %v378
  %v380 = vpop.f32.mrb[0].mxu0
  %381 = vmatprep.mubr.f32.mxu0 0.0
  %382 = vmatmul.mubr.f32.gmra.mrb[0].mxu0 %v61
  %v383 = vpop.f32.mrb[0].mxu0
  %v384 = vadd.f32 0.0, %v383
  %v385 = vpop.f32.mrb[0].mxu0
  %386 = vmatprep.mubr.f32.mxu0 0.0
  %387 = vmatmul.mubr.f32.gmra.mrb[0].mxu0 %v62
  %v388 = vpop.f32.mrb[0].mxu0
  %v389 = vadd.f32 0.0, %v388
  %v390 = vpop.f32.mrb[0].mxu0
  %391 = vmatprep.mubr.f32.mxu0 0.0
  %392 = vmatmul.mubr.f32.gmra.mrb[0].mxu0 %v63
  %v393 = vpop.f32.mrb[0].mxu0
  %v394 = vadd.f32 0.0, %v393
  %v395 = vpop.f32.mrb[0].mxu0
  %396 = vmatprep.mubr.f32.mxu0 0.0
  %397 = vmatmul.mubr.f32.gmra.mrb[0].mxu0 %v64
  %v398 = vpop.f32.mrb[0].mxu0
  %v399 = vadd.f32 0.0, %v398
  %v400 = vpop.f32.mrb[0].mxu0
  %401 = vmatprep.mubr.f32.mxu0 0.0
  %402 = vmatmul.mubr.f32.gmra.mrb[0].mxu0 %v65
  %v403 = vpop.f32.mrb[0].mxu0
  %v404 = vadd.f32 0.0, %v403
  %v405 = vpop.f32.mrb[0].mxu0
  %406 = vmatprep.mubr.f32.mxu0 0.0
  %407 = vmatmul.mubr.f32.gmra.mrb[0].mxu0 %v66
  %v408 = vpop.f32.mrb[0].mxu0
  %v409 = vadd.f32 0.0, %v408
  %v410 = vpop.f32.mrb[0].mxu0
  %411 = vmatprep.mubr.f32.mxu0 0.0
  %412 = vmatmul.mubr.f32.gmra.mrb[0].mxu0 %v67
  %v413 = vpop.f32.mrb[0].mxu0
  %v414 = vadd.f32 0.0, %v413
  %v415 = vpop.f32.mrb[0].mxu0
  %416 = vmatprep.mubr.f32.mxu0 0.0
  %417 = vmatmul.mubr.f32.gmra.mrb[0].mxu0 %v68
  %v418 = vpop.f32.mrb[0].mxu0
  %v419 = vadd.f32 0.0, %v418
  %v420 = vpop.f32.mrb[0].mxu0
  %421 = vmatprep.mubr.f32.mxu0 0.0
  %422 = vmatmul.mubr.f32.gmra.mrb[0].mxu0 %v69
  %v423 = vpop.f32.mrb[0].mxu0
  %v424 = vadd.f32 0.0, %v423
  %v425 = vpop.f32.mrb[0].mxu0
  %426 = vmatprep.mubr.f32.mxu0 0.0
  %427 = vmatmul.mubr.f32.gmra.mrb[0].mxu0 %v70
  %v428 = vpop.f32.mrb[0].mxu0
  %v429 = vadd.f32 0.0, %v428
  %v430 = vpop.f32.mrb[0].mxu0
  %431 = vmatprep.mubr.f32.mxu0 0.0
  %432 = vmatmul.mubr.f32.gmra.mrb[0].mxu0 %v71
  %v433 = vpop.f32.mrb[0].mxu0
  %v434 = vadd.f32 0.0, %v433
  %v435 = vpop.f32.mrb[0].mxu0
  %436 = vmatprep.mubr.f32.mxu0 0.0
  %437 = vmatmul.mubr.f32.gmra.mrb[0].mxu0 %v72
  %v438 = vpop.f32.mrb[0].mxu0
  %v439 = vadd.f32 0.0, %v438
  %v440 = vpop.f32.mrb[0].mxu0
  %441 = vmatprep.mubr.f32.mxu0 0.0
  %442 = vmatmul.mubr.f32.gmra.mrb[0].mxu0 %v73
  %v443 = vpop.f32.mrb[0].mxu0
  %v444 = vadd.f32 0.0, %v443
  %v445 = vpop.f32.mrb[0].mxu0
  %446 = vmatprep.mubr.f32.mxu0 0.0
  %447 = vmatmul.mubr.f32.gmra.mrb[0].mxu0 %v74
  %v448 = vpop.f32.mrb[0].mxu0
  %v449 = vadd.f32 0.0, %v448
  %v450 = vpop.f32.mrb[0].mxu0
  %451 = vmatprep.mubr.f32.mxu0 0.0
  %452 = vmatmul.mubr.f32.gmra.mrb[0].mxu0 %v75
  %v453 = vpop.f32.mrb[0].mxu0
  %v454 = vadd.f32 0.0, %v453
  %v455 = vpop.f32.mrb[0].mxu0
  %456 = vmatprep.mubr.f32.mxu0 0.0
  %457 = vmatmul.mubr.f32.gmra.mrb[0].mxu0 %v76
  %v458 = vpop.f32.mrb[0].mxu0
  %v459 = vadd.f32 0.0, %v458
  %v460 = vpop.f32.mrb[0].mxu0
  %461 = vmatprep.mubr.f32.mxu0 0.0
  %462 = vmatmul.mubr.f32.gmra.mrb[0].mxu0 %v77
  %v463 = vpop.f32.mrb[0].mxu0
  %v464 = vadd.f32 0.0, %v463
  %v465 = vpop.f32.mrb[0].mxu0
  %466 = vmatprep.mubr.f32.mxu0 0.0
  %467 = vmatmul.mubr.f32.gmra.mrb[0].mxu0 %v78
  %v468 = vpop.f32.mrb[0].mxu0
  %v469 = vadd.f32 0.0, %v468
  %v470 = vpop.f32.mrb[0].mxu0
  %471 = vmatprep.mubr.f32.mxu0 0.0
  %472 = vmatmul.mubr.f32.gmra.mrb[0].mxu0 %v79
  %v473 = vpop.f32.mrb[0].mxu0
  %v474 = vadd.f32 0.0, %v473
  %v475 = vpop.f32.mrb[0].mxu0
  %476 = vmatprep.mubr.f32.mxu0 0.0
  %477 = vmatmul.mubr.f32.gmra.mrb[0].mxu0 %v80
  %v478 = vpop.f32.mrb[0].mxu0
  %v479 = vadd.f32 0.0, %v478
  %v480 = vpop.f32.mrb[0].mxu0
  %481 = vdwg.mxu0
  %vm482 = vcmask 130048
  %v483 = vsel %vm482, %v164, 0.0
  %v484 = vsel %vm482, %v169, 0.0
  %v485 = vadd.f32 %v483, %v484
  %v486 = vsel %vm482, %v174, 0.0
  %v487 = vadd.f32 %v485, %v486
  %v488 = vsel %vm482, %v179, 0.0
  %v489 = vadd.f32 %v487, %v488
  %v490 = vsel %vm482, %v184, 0.0
  %v491 = vadd.f32 %v489, %v490
  %v492 = vsel %vm482, %v189, 0.0
  %v493 = vadd.f32 %v491, %v492
  %v494 = vsel %vm482, %v194, 0.0
  %v495 = vadd.f32 %v493, %v494
  %v496 = vsel %vm482, %v199, 0.0
  %v497 = vadd.f32 %v495, %v496
  %v498 = vsel %vm482, %v204, 0.0
  %v499 = vadd.f32 %v497, %v498
  %v500 = vsel %vm482, %v209, 0.0
  %v501 = vadd.f32 %v499, %v500
  %v502 = vsel %vm482, %v214, 0.0
  %v503 = vadd.f32 %v501, %v502
  %v504 = vsel %vm482, %v219, 0.0
  %v505 = vadd.f32 %v503, %v504
  %v506 = vsel %vm482, %v224, 0.0
  %v507 = vadd.f32 %v505, %v506
  %v508 = vsel %vm482, %v229, 0.0
  %v509 = vadd.f32 %v507, %v508
  %v510 = vsel %vm482, %v234, 0.0
  %v511 = vadd.f32 %v509, %v510
  %v512 = vsel %vm482, %v239, 0.0
  %v513 = vadd.f32 %v511, %v512
  %v514 = vsel %vm482, %v244, 0.0
  %v515 = vadd.f32 %v513, %v514
  %v516 = vsel %vm482, %v249, 0.0
  %v517 = vadd.f32 %v515, %v516
  %v518 = vsel %vm482, %v254, 0.0
  %v519 = vadd.f32 %v517, %v518
  %v520 = vsel %vm482, %v259, 0.0
  %v521 = vadd.f32 %v519, %v520
  %v522 = vsel %vm482, %v264, 0.0
  %v523 = vadd.f32 %v521, %v522
  %v524 = vsel %vm482, %v269, 0.0
  %v525 = vadd.f32 %v523, %v524
  %v526 = vsel %vm482, %v274, 0.0
  %v527 = vadd.f32 %v525, %v526
  %v528 = vsel %vm482, %v279, 0.0
  %v529 = vadd.f32 %v527, %v528
  %v530 = vsel %vm482, %v284, 0.0
  %v531 = vadd.f32 %v529, %v530
  %v532 = vsel %vm482, %v289, 0.0
  %v533 = vadd.f32 %v531, %v532
  %v534 = vsel %vm482, %v294, 0.0
  %v535 = vadd.f32 %v533, %v534
  %v536 = vsel %vm482, %v299, 0.0
  %v537 = vadd.f32 %v535, %v536
  %v538 = vsel %vm482, %v304, 0.0
  %v539 = vadd.f32 %v537, %v538
  %v540 = vsel %vm482, %v309, 0.0
  %v541 = vadd.f32 %v539, %v540
  %v542 = vsel %vm482, %v314, 0.0
  %v543 = vadd.f32 %v541, %v542
  %v544 = vsel %vm482, %v319, 0.0
  %v545 = vadd.f32 %v543, %v544
  %v546 = vsel %vm482, %v324, 0.0
  %v547 = vadd.f32 %v545, %v546
  %v548 = vsel %vm482, %v329, 0.0
  %v549 = vadd.f32 %v547, %v548
  %v550 = vsel %vm482, %v334, 0.0
  %v551 = vadd.f32 %v549, %v550
  %v552 = vsel %vm482, %v339, 0.0
  %v553 = vadd.f32 %v551, %v552
  %v554 = vsel %vm482, %v344, 0.0
  %v555 = vadd.f32 %v553, %v554
  %v556 = vsel %vm482, %v349, 0.0
  %v557 = vadd.f32 %v555, %v556
  %v558 = vsel %vm482, %v354, 0.0
  %v559 = vadd.f32 %v557, %v558
  %v560 = vsel %vm482, %v359, 0.0
  %v561 = vadd.f32 %v559, %v560
  %v562 = vsel %vm482, %v364, 0.0
  %v563 = vadd.f32 %v561, %v562
  %v564 = vsel %vm482, %v369, 0.0
  %v565 = vadd.f32 %v563, %v564
  %v566 = vsel %vm482, %v374, 0.0
  %v567 = vadd.f32 %v565, %v566
  %v568 = vsel %vm482, %v379, 0.0
  %v569 = vadd.f32 %v567, %v568
  %v570 = vsel %vm482, %v384, 0.0
  %v571 = vadd.f32 %v569, %v570
  %v572 = vsel %vm482, %v389, 0.0
  %v573 = vadd.f32 %v571, %v572
  %v574 = vsel %vm482, %v394, 0.0
  %v575 = vadd.f32 %v573, %v574
  %v576 = vsel %vm482, %v399, 0.0
  %v577 = vadd.f32 %v575, %v576
  %v578 = vsel %vm482, %v404, 0.0
  %v579 = vadd.f32 %v577, %v578
  %v580 = vsel %vm482, %v409, 0.0
  %v581 = vadd.f32 %v579, %v580
  %v582 = vsel %vm482, %v414, 0.0
  %v583 = vadd.f32 %v581, %v582
  %v584 = vsel %vm482, %v419, 0.0
  %v585 = vadd.f32 %v583, %v584
  %v586 = vsel %vm482, %v424, 0.0
  %v587 = vadd.f32 %v585, %v586
  %v588 = vsel %vm482, %v429, 0.0
  %v589 = vadd.f32 %v587, %v588
  %v590 = vsel %vm482, %v434, 0.0
  %v591 = vadd.f32 %v589, %v590
  %v592 = vsel %vm482, %v439, 0.0
  %v593 = vadd.f32 %v591, %v592
  %v594 = vsel %vm482, %v444, 0.0
  %v595 = vadd.f32 %v593, %v594
  %v596 = vsel %vm482, %v449, 0.0
  %v597 = vadd.f32 %v595, %v596
  %v598 = vsel %vm482, %v454, 0.0
  %v599 = vadd.f32 %v597, %v598
  %v600 = vsel %vm482, %v459, 0.0
  %v601 = vadd.f32 %v599, %v600
  %v602 = vsel %vm482, %v464, 0.0
  %v603 = vadd.f32 %v601, %v602
  %v604 = vsel %vm482, %v469, 0.0
  %v605 = vadd.f32 %v603, %v604
  %v606 = vsel %vm482, %v474, 0.0
  %v607 = vadd.f32 %v605, %v606
  %v608 = vsel %vm482, %v479, 0.0
  %v609 = vadd.f32 %v607, %v608
  %v610 = vrot.slane %v609, 4
  %v611 = vadd.f32 %v609, %v610
  %v612 = vrot.slane %v611, 2
  %v613 = vadd.f32 %v611, %v612
  %v614 = vrot.slane %v613, 1
  %v615 = vadd.f32 %v613, %v614
  %v616 = vmul.f32 %v615, 0.001953125
  %v617 = vsub.f32 %v164, %v616
  %v618 = vsub.f32 %v169, %v616
  %v619 = vsub.f32 %v174, %v616
  %v620 = vsub.f32 %v179, %v616
  %v621 = vsub.f32 %v184, %v616
  %v622 = vsub.f32 %v189, %v616
  %v623 = vsub.f32 %v194, %v616
  %v624 = vsub.f32 %v199, %v616
  %v625 = vsub.f32 %v204, %v616
  %v626 = vsub.f32 %v209, %v616
  %v627 = vsub.f32 %v214, %v616
  %v628 = vsub.f32 %v219, %v616
  %v629 = vsub.f32 %v224, %v616
  %v630 = vsub.f32 %v229, %v616
  %v631 = vsub.f32 %v234, %v616
  %v632 = vsub.f32 %v239, %v616
  %v633 = vsub.f32 %v244, %v616
  %v634 = vsub.f32 %v249, %v616
  %v635 = vsub.f32 %v254, %v616
  %v636 = vsub.f32 %v259, %v616
  %v637 = vsub.f32 %v264, %v616
  %v638 = vsub.f32 %v269, %v616
  %v639 = vsub.f32 %v274, %v616
  %v640 = vsub.f32 %v279, %v616
  %v641 = vsub.f32 %v284, %v616
  %v642 = vsub.f32 %v289, %v616
  %v643 = vsub.f32 %v294, %v616
  %v644 = vsub.f32 %v299, %v616
  %v645 = vsub.f32 %v304, %v616
  %v646 = vsub.f32 %v309, %v616
  %v647 = vsub.f32 %v314, %v616
  %v648 = vsub.f32 %v319, %v616
  %v649 = vsub.f32 %v324, %v616
  %v650 = vsub.f32 %v329, %v616
  %v651 = vsub.f32 %v334, %v616
  %v652 = vsub.f32 %v339, %v616
  %v653 = vsub.f32 %v344, %v616
  %v654 = vsub.f32 %v349, %v616
  %v655 = vsub.f32 %v354, %v616
  %v656 = vsub.f32 %v359, %v616
  %v657 = vsub.f32 %v364, %v616
  %v658 = vsub.f32 %v369, %v616
  %v659 = vsub.f32 %v374, %v616
  %v660 = vsub.f32 %v379, %v616
  %v661 = vsub.f32 %v384, %v616
  %v662 = vsub.f32 %v389, %v616
  %v663 = vsub.f32 %v394, %v616
  %v664 = vsub.f32 %v399, %v616
  %v665 = vsub.f32 %v404, %v616
  %v666 = vsub.f32 %v409, %v616
  %v667 = vsub.f32 %v414, %v616
  %v668 = vsub.f32 %v419, %v616
  %v669 = vsub.f32 %v424, %v616
  %v670 = vsub.f32 %v429, %v616
  %v671 = vsub.f32 %v434, %v616
  %v672 = vsub.f32 %v439, %v616
  %v673 = vsub.f32 %v444, %v616
  %v674 = vsub.f32 %v449, %v616
  %v675 = vsub.f32 %v454, %v616
  %v676 = vsub.f32 %v459, %v616
  %v677 = vsub.f32 %v464, %v616
  %v678 = vsub.f32 %v469, %v616
  %v679 = vsub.f32 %v474, %v616
  %v680 = vsub.f32 %v479, %v616
  %v681 = vmul.f32 %v617, %v617
  %v682 = vmul.f32 %v618, %v618
  %v683 = vmul.f32 %v619, %v619
  %v684 = vmul.f32 %v620, %v620
  %v685 = vmul.f32 %v621, %v621
  %v686 = vmul.f32 %v622, %v622
  %v687 = vmul.f32 %v623, %v623
  %v688 = vmul.f32 %v624, %v624
  %v689 = vmul.f32 %v625, %v625
  %v690 = vmul.f32 %v626, %v626
  %v691 = vmul.f32 %v627, %v627
  %v692 = vmul.f32 %v628, %v628
  %v693 = vmul.f32 %v629, %v629
  %v694 = vmul.f32 %v630, %v630
  %v695 = vmul.f32 %v631, %v631
  %v696 = vmul.f32 %v632, %v632
  %v697 = vmul.f32 %v633, %v633
  %v698 = vmul.f32 %v634, %v634
  %v699 = vmul.f32 %v635, %v635
  %v700 = vmul.f32 %v636, %v636
  %v701 = vmul.f32 %v637, %v637
  %v702 = vmul.f32 %v638, %v638
  %v703 = vmul.f32 %v639, %v639
  %v704 = vmul.f32 %v640, %v640
  %v705 = vmul.f32 %v641, %v641
  %v706 = vmul.f32 %v642, %v642
  %v707 = vmul.f32 %v643, %v643
  %v708 = vmul.f32 %v644, %v644
  %v709 = vmul.f32 %v645, %v645
  %v710 = vmul.f32 %v646, %v646
  %v711 = vmul.f32 %v647, %v647
  %v712 = vmul.f32 %v648, %v648
  %v713 = vmul.f32 %v649, %v649
  %v714 = vmul.f32 %v650, %v650
  %v715 = vmul.f32 %v651, %v651
  %v716 = vmul.f32 %v652, %v652
  %v717 = vmul.f32 %v653, %v653
  %v718 = vmul.f32 %v654, %v654
  %v719 = vmul.f32 %v655, %v655
  %v720 = vmul.f32 %v656, %v656
  %v721 = vmul.f32 %v657, %v657
  %v722 = vmul.f32 %v658, %v658
  %v723 = vmul.f32 %v659, %v659
  %v724 = vmul.f32 %v660, %v660
  %v725 = vmul.f32 %v661, %v661
  %v726 = vmul.f32 %v662, %v662
  %v727 = vmul.f32 %v663, %v663
  %v728 = vmul.f32 %v664, %v664
  %v729 = vmul.f32 %v665, %v665
  %v730 = vmul.f32 %v666, %v666
  %v731 = vmul.f32 %v667, %v667
  %v732 = vmul.f32 %v668, %v668
  %v733 = vmul.f32 %v669, %v669
  %v734 = vmul.f32 %v670, %v670
  %v735 = vmul.f32 %v671, %v671
  %v736 = vmul.f32 %v672, %v672
  %v737 = vmul.f32 %v673, %v673
  %v738 = vmul.f32 %v674, %v674
  %v739 = vmul.f32 %v675, %v675
  %v740 = vmul.f32 %v676, %v676
  %v741 = vmul.f32 %v677, %v677
  %v742 = vmul.f32 %v678, %v678
  %v743 = vmul.f32 %v679, %v679
  %v744 = vmul.f32 %v680, %v680
  %v745 = vsel %vm482, %v681, 0.0
  %v746 = vsel %vm482, %v682, 0.0
  %v747 = vadd.f32 %v745, %v746
  %v748 = vsel %vm482, %v683, 0.0
  %v749 = vadd.f32 %v747, %v748
  %v750 = vsel %vm482, %v684, 0.0
  %v751 = vadd.f32 %v749, %v750
  %v752 = vsel %vm482, %v685, 0.0
  %v753 = vadd.f32 %v751, %v752
  %v754 = vsel %vm482, %v686, 0.0
  %v755 = vadd.f32 %v753, %v754
  %v756 = vsel %vm482, %v687, 0.0
  %v757 = vadd.f32 %v755, %v756
  %v758 = vsel %vm482, %v688, 0.0
  %v759 = vadd.f32 %v757, %v758
  %v760 = vsel %vm482, %v689, 0.0
  %v761 = vadd.f32 %v759, %v760
  %v762 = vsel %vm482, %v690, 0.0
  %v763 = vadd.f32 %v761, %v762
  %v764 = vsel %vm482, %v691, 0.0
  %v765 = vadd.f32 %v763, %v764
  %v766 = vsel %vm482, %v692, 0.0
  %v767 = vadd.f32 %v765, %v766
  %v768 = vsel %vm482, %v693, 0.0
  %v769 = vadd.f32 %v767, %v768
  %v770 = vsel %vm482, %v694, 0.0
  %v771 = vadd.f32 %v769, %v770
  %v772 = vsel %vm482, %v695, 0.0
  %v773 = vadd.f32 %v771, %v772
  %v774 = vsel %vm482, %v696, 0.0
  %v775 = vadd.f32 %v773, %v774
  %v776 = vsel %vm482, %v697, 0.0
  %v777 = vadd.f32 %v775, %v776
  %v778 = vsel %vm482, %v698, 0.0
  %v779 = vadd.f32 %v777, %v778
  %v780 = vsel %vm482, %v699, 0.0
  %v781 = vadd.f32 %v779, %v780
  %v782 = vsel %vm482, %v700, 0.0
  %v783 = vadd.f32 %v781, %v782
  %v784 = vsel %vm482, %v701, 0.0
  %v785 = vadd.f32 %v783, %v784
  %v786 = vsel %vm482, %v702, 0.0
  %v787 = vadd.f32 %v785, %v786
  %v788 = vsel %vm482, %v703, 0.0
  %v789 = vadd.f32 %v787, %v788
  %v790 = vsel %vm482, %v704, 0.0
  %v791 = vadd.f32 %v789, %v790
  %v792 = vsel %vm482, %v705, 0.0
  %v793 = vadd.f32 %v791, %v792
  %v794 = vsel %vm482, %v706, 0.0
  %v795 = vadd.f32 %v793, %v794
  %v796 = vsel %vm482, %v707, 0.0
  %v797 = vadd.f32 %v795, %v796
  %v798 = vsel %vm482, %v708, 0.0
  %v799 = vadd.f32 %v797, %v798
  %v800 = vsel %vm482, %v709, 0.0
  %v801 = vadd.f32 %v799, %v800
  %v802 = vsel %vm482, %v710, 0.0
  %v803 = vadd.f32 %v801, %v802
  %v804 = vsel %vm482, %v711, 0.0
  %v805 = vadd.f32 %v803, %v804
  %v806 = vsel %vm482, %v712, 0.0
  %v807 = vadd.f32 %v805, %v806
  %v808 = vsel %vm482, %v713, 0.0
  %v809 = vadd.f32 %v807, %v808
  %v810 = vsel %vm482, %v714, 0.0
  %v811 = vadd.f32 %v809, %v810
  %v812 = vsel %vm482, %v715, 0.0
  %v813 = vadd.f32 %v811, %v812
  %v814 = vsel %vm482, %v716, 0.0
  %v815 = vadd.f32 %v813, %v814
  %v816 = vsel %vm482, %v717, 0.0
  %v817 = vadd.f32 %v815, %v816
  %v818 = vsel %vm482, %v718, 0.0
  %v819 = vadd.f32 %v817, %v818
  %v820 = vsel %vm482, %v719, 0.0
  %v821 = vadd.f32 %v819, %v820
  %v822 = vsel %vm482, %v720, 0.0
  %v823 = vadd.f32 %v821, %v822
  %v824 = vsel %vm482, %v721, 0.0
  %v825 = vadd.f32 %v823, %v824
  %v826 = vsel %vm482, %v722, 0.0
  %v827 = vadd.f32 %v825, %v826
  %v828 = vsel %vm482, %v723, 0.0
  %v829 = vadd.f32 %v827, %v828
  %v830 = vsel %vm482, %v724, 0.0
  %v831 = vadd.f32 %v829, %v830
  %v832 = vsel %vm482, %v725, 0.0
  %v833 = vadd.f32 %v831, %v832
  %v834 = vsel %vm482, %v726, 0.0
  %v835 = vadd.f32 %v833, %v834
  %v836 = vsel %vm482, %v727, 0.0
  %v837 = vadd.f32 %v835, %v836
  %v838 = vsel %vm482, %v728, 0.0
  %v839 = vadd.f32 %v837, %v838
  %v840 = vsel %vm482, %v729, 0.0
  %v841 = vadd.f32 %v839, %v840
  %v842 = vsel %vm482, %v730, 0.0
  %v843 = vadd.f32 %v841, %v842
  %v844 = vsel %vm482, %v731, 0.0
  %v845 = vadd.f32 %v843, %v844
  %v846 = vsel %vm482, %v732, 0.0
  %v847 = vadd.f32 %v845, %v846
  %v848 = vsel %vm482, %v733, 0.0
  %v849 = vadd.f32 %v847, %v848
  %v850 = vsel %vm482, %v734, 0.0
  %v851 = vadd.f32 %v849, %v850
  %v852 = vsel %vm482, %v735, 0.0
  %v853 = vadd.f32 %v851, %v852
  %v854 = vsel %vm482, %v736, 0.0
  %v855 = vadd.f32 %v853, %v854
  %v856 = vsel %vm482, %v737, 0.0
  %v857 = vadd.f32 %v855, %v856
  %v858 = vsel %vm482, %v738, 0.0
  %v859 = vadd.f32 %v857, %v858
  %v860 = vsel %vm482, %v739, 0.0
  %v861 = vadd.f32 %v859, %v860
  %v862 = vsel %vm482, %v740, 0.0
  %v863 = vadd.f32 %v861, %v862
  %v864 = vsel %vm482, %v741, 0.0
  %v865 = vadd.f32 %v863, %v864
  %v866 = vsel %vm482, %v742, 0.0
  %v867 = vadd.f32 %v865, %v866
  %v868 = vsel %vm482, %v743, 0.0
  %v869 = vadd.f32 %v867, %v868
  %v870 = vsel %vm482, %v744, 0.0
  %v871 = vadd.f32 %v869, %v870
  %v872 = vrot.slane %v871, 4
  %v873 = vadd.f32 %v871, %v872
  %v874 = vrot.slane %v873, 2
  %v875 = vadd.f32 %v873, %v874
  %v876 = vrot.slane %v875, 1
  %v877 = vadd.f32 %v875, %v876
  %v878 = vmul.f32 %v877, 0.001953125
  %v879 = vld [vmem:[%s2] sm:$0x1]
  %v880 = vadd.f32 %v878, 1e-05
  %v881 = vrsqrt.pop %v880
  %v882 = vmul.f32 %v879, %v881
  %v884 = vlaneseq
  %v885 = vshrl.u32 %v884, 7
  %v886 = vsub.s32 0, %v885
  %v887 = vrot.slane %v882, %v886
  %v889 = vmul.f32 %v617, %v887
  %v890 = vmul.f32 %v618, %v887
  %v891 = vmul.f32 %v619, %v887
  %v892 = vmul.f32 %v620, %v887
  %v893 = vmul.f32 %v621, %v887
  %v894 = vmul.f32 %v622, %v887
  %v895 = vmul.f32 %v623, %v887
  %v896 = vmul.f32 %v624, %v887
  %v897 = vmul.f32 %v625, %v887
  %v898 = vmul.f32 %v626, %v887
  %v899 = vmul.f32 %v627, %v887
  %v900 = vmul.f32 %v628, %v887
  %v901 = vmul.f32 %v629, %v887
  %v902 = vmul.f32 %v630, %v887
  %v903 = vmul.f32 %v631, %v887
  %v904 = vmul.f32 %v632, %v887
  %v905 = vmul.f32 %v633, %v887
  %v906 = vmul.f32 %v634, %v887
  %v907 = vmul.f32 %v635, %v887
  %v908 = vmul.f32 %v636, %v887
  %v909 = vmul.f32 %v637, %v887
  %v910 = vmul.f32 %v638, %v887
  %v911 = vmul.f32 %v639, %v887
  %v912 = vmul.f32 %v640, %v887
  %v913 = vmul.f32 %v641, %v887
  %v914 = vmul.f32 %v642, %v887
  %v915 = vmul.f32 %v643, %v887
  %v916 = vmul.f32 %v644, %v887
  %v917 = vmul.f32 %v645, %v887
  %v918 = vmul.f32 %v646, %v887
  %v919 = vmul.f32 %v647, %v887
  %v920 = vmul.f32 %v648, %v887
  %v921 = vmul.f32 %v649, %v887
  %v922 = vmul.f32 %v650, %v887
  %v923 = vmul.f32 %v651, %v887
  %v924 = vmul.f32 %v652, %v887
  %v925 = vmul.f32 %v653, %v887
  %v926 = vmul.f32 %v654, %v887
  %v927 = vmul.f32 %v655, %v887
  %v928 = vmul.f32 %v656, %v887
  %v929 = vmul.f32 %v657, %v887
  %v930 = vmul.f32 %v658, %v887
  %v931 = vmul.f32 %v659, %v887
  %v932 = vmul.f32 %v660, %v887
  %v933 = vmul.f32 %v661, %v887
  %v934 = vmul.f32 %v662, %v887
  %v935 = vmul.f32 %v663, %v887
  %v936 = vmul.f32 %v664, %v887
  %v937 = vmul.f32 %v665, %v887
  %v938 = vmul.f32 %v666, %v887
  %v939 = vmul.f32 %v667, %v887
  %v940 = vmul.f32 %v668, %v887
  %v941 = vmul.f32 %v669, %v887
  %v942 = vmul.f32 %v670, %v887
  %v943 = vmul.f32 %v671, %v887
  %v944 = vmul.f32 %v672, %v887
  %v945 = vmul.f32 %v673, %v887
  %v946 = vmul.f32 %v674, %v887
  %v947 = vmul.f32 %v675, %v887
  %v948 = vmul.f32 %v676, %v887
  %v949 = vmul.f32 %v677, %v887
  %v950 = vmul.f32 %v678, %v887
  %v951 = vmul.f32 %v679, %v887
  %v952 = vmul.f32 %v680, %v887
  %v953 = vld [vmem:[%s3] sm:$0x1]
  %v955 = vlaneseq
  %v956 = vshrl.u32 %v955, 7
  %v957 = vsub.s32 0, %v956
  %v958 = vrot.slane %v953, %v957
  %v960 = vadd.f32 %v889, %v958
  %v961 = vadd.f32 %v890, %v958
  %v962 = vadd.f32 %v891, %v958
  %v963 = vadd.f32 %v892, %v958
  %v964 = vadd.f32 %v893, %v958
  %v965 = vadd.f32 %v894, %v958
  %v966 = vadd.f32 %v895, %v958
  %v967 = vadd.f32 %v896, %v958
  %v968 = vadd.f32 %v897, %v958
  %v969 = vadd.f32 %v898, %v958
  %v970 = vadd.f32 %v899, %v958
  %v971 = vadd.f32 %v900, %v958
  %v972 = vadd.f32 %v901, %v958
  %v973 = vadd.f32 %v902, %v958
  %v974 = vadd.f32 %v903, %v958
  %v975 = vadd.f32 %v904, %v958
  %v976 = vadd.f32 %v905, %v958
  %v977 = vadd.f32 %v906, %v958
  %v978 = vadd.f32 %v907, %v958
  %v979 = vadd.f32 %v908, %v958
  %v980 = vadd.f32 %v909, %v958
  %v981 = vadd.f32 %v910, %v958
  %v982 = vadd.f32 %v911, %v958
  %v983 = vadd.f32 %v912, %v958
  %v984 = vadd.f32 %v913, %v958
  %v985 = vadd.f32 %v914, %v958
  %v986 = vadd.f32 %v915, %v958
  %v987 = vadd.f32 %v916, %v958
  %v988 = vadd.f32 %v917, %v958
  %v989 = vadd.f32 %v918, %v958
  %v990 = vadd.f32 %v919, %v958
  %v991 = vadd.f32 %v920, %v958
  %v992 = vadd.f32 %v921, %v958
  %v993 = vadd.f32 %v922, %v958
  %v994 = vadd.f32 %v923, %v958
  %v995 = vadd.f32 %v924, %v958
  %v996 = vadd.f32 %v925, %v958
  %v997 = vadd.f32 %v926, %v958
  %v998 = vadd.f32 %v927, %v958
  %v999 = vadd.f32 %v928, %v958
  %v1000 = vadd.f32 %v929, %v958
  %v1001 = vadd.f32 %v930, %v958
  %v1002 = vadd.f32 %v931, %v958
  %v1003 = vadd.f32 %v932, %v958
  %v1004 = vadd.f32 %v933, %v958
  %v1005 = vadd.f32 %v934, %v958
  %v1006 = vadd.f32 %v935, %v958
  %v1007 = vadd.f32 %v936, %v958
  %v1008 = vadd.f32 %v937, %v958
  %v1009 = vadd.f32 %v938, %v958
  %v1010 = vadd.f32 %v939, %v958
  %v1011 = vadd.f32 %v940, %v958
  %v1012 = vadd.f32 %v941, %v958
  %v1013 = vadd.f32 %v942, %v958
  %v1014 = vadd.f32 %v943, %v958
  %v1015 = vadd.f32 %v944, %v958
  %v1016 = vadd.f32 %v945, %v958
  %v1017 = vadd.f32 %v946, %v958
  %v1018 = vadd.f32 %v947, %v958
  %v1019 = vadd.f32 %v948, %v958
  %v1020 = vadd.f32 %v949, %v958
  %v1021 = vadd.f32 %v950, %v958
  %v1022 = vadd.f32 %v951, %v958
  %v1023 = vadd.f32 %v952, %v958
  %vm1024 = vcmp.gt.f32.partialorder %v960, 0.0
  %vm1025 = vcmp.gt.f32.partialorder %v961, 0.0
  %vm1026 = vcmp.gt.f32.partialorder %v962, 0.0
  %vm1027 = vcmp.gt.f32.partialorder %v963, 0.0
  %vm1028 = vcmp.gt.f32.partialorder %v964, 0.0
  %vm1029 = vcmp.gt.f32.partialorder %v965, 0.0
  %vm1030 = vcmp.gt.f32.partialorder %v966, 0.0
  %vm1031 = vcmp.gt.f32.partialorder %v967, 0.0
  %vm1032 = vcmp.gt.f32.partialorder %v968, 0.0
  %vm1033 = vcmp.gt.f32.partialorder %v969, 0.0
  %vm1034 = vcmp.gt.f32.partialorder %v970, 0.0
  %vm1035 = vcmp.gt.f32.partialorder %v971, 0.0
  %vm1036 = vcmp.gt.f32.partialorder %v972, 0.0
  %vm1037 = vcmp.gt.f32.partialorder %v973, 0.0
  %vm1038 = vcmp.gt.f32.partialorder %v974, 0.0
  %vm1039 = vcmp.gt.f32.partialorder %v975, 0.0
  %vm1040 = vcmp.gt.f32.partialorder %v976, 0.0
  %vm1041 = vcmp.gt.f32.partialorder %v977, 0.0
  %vm1042 = vcmp.gt.f32.partialorder %v978, 0.0
  %vm1043 = vcmp.gt.f32.partialorder %v979, 0.0
  %vm1044 = vcmp.gt.f32.partialorder %v980, 0.0
  %vm1045 = vcmp.gt.f32.partialorder %v981, 0.0
  %vm1046 = vcmp.gt.f32.partialorder %v982, 0.0
  %vm1047 = vcmp.gt.f32.partialorder %v983, 0.0
  %vm1048 = vcmp.gt.f32.partialorder %v984, 0.0
  %vm1049 = vcmp.gt.f32.partialorder %v985, 0.0
  %vm1050 = vcmp.gt.f32.partialorder %v986, 0.0
  %vm1051 = vcmp.gt.f32.partialorder %v987, 0.0
  %vm1052 = vcmp.gt.f32.partialorder %v988, 0.0
  %vm1053 = vcmp.gt.f32.partialorder %v989, 0.0
  %vm1054 = vcmp.gt.f32.partialorder %v990, 0.0
  %vm1055 = vcmp.gt.f32.partialorder %v991, 0.0
  %vm1056 = vcmp.gt.f32.partialorder %v992, 0.0
  %vm1057 = vcmp.gt.f32.partialorder %v993, 0.0
  %vm1058 = vcmp.gt.f32.partialorder %v994, 0.0
  %vm1059 = vcmp.gt.f32.partialorder %v995, 0.0
  %vm1060 = vcmp.gt.f32.partialorder %v996, 0.0
  %vm1061 = vcmp.gt.f32.partialorder %v997, 0.0
  %vm1062 = vcmp.gt.f32.partialorder %v998, 0.0
  %vm1063 = vcmp.gt.f32.partialorder %v999, 0.0
  %vm1064 = vcmp.gt.f32.partialorder %v1000, 0.0
  %vm1065 = vcmp.gt.f32.partialorder %v1001, 0.0
  %vm1066 = vcmp.gt.f32.partialorder %v1002, 0.0
  %vm1067 = vcmp.gt.f32.partialorder %v1003, 0.0
  %vm1068 = vcmp.gt.f32.partialorder %v1004, 0.0
  %vm1069 = vcmp.gt.f32.partialorder %v1005, 0.0
  %vm1070 = vcmp.gt.f32.partialorder %v1006, 0.0
  %vm1071 = vcmp.gt.f32.partialorder %v1007, 0.0
  %vm1072 = vcmp.gt.f32.partialorder %v1008, 0.0
  %vm1073 = vcmp.gt.f32.partialorder %v1009, 0.0
  %vm1074 = vcmp.gt.f32.partialorder %v1010, 0.0
  %vm1075 = vcmp.gt.f32.partialorder %v1011, 0.0
  %vm1076 = vcmp.gt.f32.partialorder %v1012, 0.0
  %vm1077 = vcmp.gt.f32.partialorder %v1013, 0.0
  %vm1078 = vcmp.gt.f32.partialorder %v1014, 0.0
  %vm1079 = vcmp.gt.f32.partialorder %v1015, 0.0
  %vm1080 = vcmp.gt.f32.partialorder %v1016, 0.0
  %vm1081 = vcmp.gt.f32.partialorder %v1017, 0.0
  %vm1082 = vcmp.gt.f32.partialorder %v1018, 0.0
  %vm1083 = vcmp.gt.f32.partialorder %v1019, 0.0
  %vm1084 = vcmp.gt.f32.partialorder %v1020, 0.0
  %vm1085 = vcmp.gt.f32.partialorder %v1021, 0.0
  %vm1086 = vcmp.gt.f32.partialorder %v1022, 0.0
  %vm1087 = vcmp.gt.f32.partialorder %v1023, 0.0
  %v1088 = vmul.f32 %v960, 0.2
  %v1089 = vmul.f32 %v961, 0.2
  %v1090 = vmul.f32 %v962, 0.2
  %v1091 = vmul.f32 %v963, 0.2
  %v1092 = vmul.f32 %v964, 0.2
  %v1093 = vmul.f32 %v965, 0.2
  %v1094 = vmul.f32 %v966, 0.2
  %v1095 = vmul.f32 %v967, 0.2
  %v1096 = vmul.f32 %v968, 0.2
  %v1097 = vmul.f32 %v969, 0.2
  %v1098 = vmul.f32 %v970, 0.2
  %v1099 = vmul.f32 %v971, 0.2
  %v1100 = vmul.f32 %v972, 0.2
  %v1101 = vmul.f32 %v973, 0.2
  %v1102 = vmul.f32 %v974, 0.2
  %v1103 = vmul.f32 %v975, 0.2
  %v1104 = vmul.f32 %v976, 0.2
  %v1105 = vmul.f32 %v977, 0.2
  %v1106 = vmul.f32 %v978, 0.2
  %v1107 = vmul.f32 %v979, 0.2
  %v1108 = vmul.f32 %v980, 0.2
  %v1109 = vmul.f32 %v981, 0.2
  %v1110 = vmul.f32 %v982, 0.2
  %v1111 = vmul.f32 %v983, 0.2
  %v1112 = vmul.f32 %v984, 0.2
  %v1113 = vmul.f32 %v985, 0.2
  %v1114 = vmul.f32 %v986, 0.2
  %v1115 = vmul.f32 %v987, 0.2
  %v1116 = vmul.f32 %v988, 0.2
  %v1117 = vmul.f32 %v989, 0.2
  %v1118 = vmul.f32 %v990, 0.2
  %v1119 = vmul.f32 %v991, 0.2
  %v1120 = vmul.f32 %v992, 0.2
  %v1121 = vmul.f32 %v993, 0.2
  %v1122 = vmul.f32 %v994, 0.2
  %v1123 = vmul.f32 %v995, 0.2
  %v1124 = vmul.f32 %v996, 0.2
  %v1125 = vmul.f32 %v997, 0.2
  %v1126 = vmul.f32 %v998, 0.2
  %v1127 = vmul.f32 %v999, 0.2
  %v1128 = vmul.f32 %v1000, 0.2
  %v1129 = vmul.f32 %v1001, 0.2
  %v1130 = vmul.f32 %v1002, 0.2
  %v1131 = vmul.f32 %v1003, 0.2
  %v1132 = vmul.f32 %v1004, 0.2
  %v1133 = vmul.f32 %v1005, 0.2
  %v1134 = vmul.f32 %v1006, 0.2
  %v1135 = vmul.f32 %v1007, 0.2
  %v1136 = vmul.f32 %v1008, 0.2
  %v1137 = vmul.f32 %v1009, 0.2
  %v1138 = vmul.f32 %v1010, 0.2
  %v1139 = vmul.f32 %v1011, 0.2
  %v1140 = vmul.f32 %v1012, 0.2
  %v1141 = vmul.f32 %v1013, 0.2
  %v1142 = vmul.f32 %v1014, 0.2
  %v1143 = vmul.f32 %v1015, 0.2
  %v1144 = vmul.f32 %v1016, 0.2
  %v1145 = vmul.f32 %v1017, 0.2
  %v1146 = vmul.f32 %v1018, 0.2
  %v1147 = vmul.f32 %v1019, 0.2
  %v1148 = vmul.f32 %v1020, 0.2
  %v1149 = vmul.f32 %v1021, 0.2
  %v1150 = vmul.f32 %v1022, 0.2
  %v1151 = vmul.f32 %v1023, 0.2
  %v1152 = vsel %vm1024, %v960, %v1088
  %v1153 = vsel %vm1025, %v961, %v1089
  %v1154 = vsel %vm1026, %v962, %v1090
  %v1155 = vsel %vm1027, %v963, %v1091
  %v1156 = vsel %vm1028, %v964, %v1092
  %v1157 = vsel %vm1029, %v965, %v1093
  %v1158 = vsel %vm1030, %v966, %v1094
  %v1159 = vsel %vm1031, %v967, %v1095
  %v1160 = vsel %vm1032, %v968, %v1096
  %v1161 = vsel %vm1033, %v969, %v1097
  %v1162 = vsel %vm1034, %v970, %v1098
  %v1163 = vsel %vm1035, %v971, %v1099
  %v1164 = vsel %vm1036, %v972, %v1100
  %v1165 = vsel %vm1037, %v973, %v1101
  %v1166 = vsel %vm1038, %v974, %v1102
  %v1167 = vsel %vm1039, %v975, %v1103
  %v1168 = vsel %vm1040, %v976, %v1104
  %v1169 = vsel %vm1041, %v977, %v1105
  %v1170 = vsel %vm1042, %v978, %v1106
  %v1171 = vsel %vm1043, %v979, %v1107
  %v1172 = vsel %vm1044, %v980, %v1108
  %v1173 = vsel %vm1045, %v981, %v1109
  %v1174 = vsel %vm1046, %v982, %v1110
  %v1175 = vsel %vm1047, %v983, %v1111
  %v1176 = vsel %vm1048, %v984, %v1112
  %v1177 = vsel %vm1049, %v985, %v1113
  %v1178 = vsel %vm1050, %v986, %v1114
  %v1179 = vsel %vm1051, %v987, %v1115
  %v1180 = vsel %vm1052, %v988, %v1116
  %v1181 = vsel %vm1053, %v989, %v1117
  %v1182 = vsel %vm1054, %v990, %v1118
  %v1183 = vsel %vm1055, %v991, %v1119
  %v1184 = vsel %vm1056, %v992, %v1120
  %v1185 = vsel %vm1057, %v993, %v1121
  %v1186 = vsel %vm1058, %v994, %v1122
  %v1187 = vsel %vm1059, %v995, %v1123
  %v1188 = vsel %vm1060, %v996, %v1124
  %v1189 = vsel %vm1061, %v997, %v1125
  %v1190 = vsel %vm1062, %v998, %v1126
  %v1191 = vsel %vm1063, %v999, %v1127
  %v1192 = vsel %vm1064, %v1000, %v1128
  %v1193 = vsel %vm1065, %v1001, %v1129
  %v1194 = vsel %vm1066, %v1002, %v1130
  %v1195 = vsel %vm1067, %v1003, %v1131
  %v1196 = vsel %vm1068, %v1004, %v1132
  %v1197 = vsel %vm1069, %v1005, %v1133
  %v1198 = vsel %vm1070, %v1006, %v1134
  %v1199 = vsel %vm1071, %v1007, %v1135
  %v1200 = vsel %vm1072, %v1008, %v1136
  %v1201 = vsel %vm1073, %v1009, %v1137
  %v1202 = vsel %vm1074, %v1010, %v1138
  %v1203 = vsel %vm1075, %v1011, %v1139
  %v1204 = vsel %vm1076, %v1012, %v1140
  %v1205 = vsel %vm1077, %v1013, %v1141
  %v1206 = vsel %vm1078, %v1014, %v1142
  %v1207 = vsel %vm1079, %v1015, %v1143
  %v1208 = vsel %vm1080, %v1016, %v1144
  %v1209 = vsel %vm1081, %v1017, %v1145
  %v1210 = vsel %vm1082, %v1018, %v1146
  %v1211 = vsel %vm1083, %v1019, %v1147
  %v1212 = vsel %vm1084, %v1020, %v1148
  %v1213 = vsel %vm1085, %v1021, %v1149
  %v1214 = vsel %vm1086, %v1022, %v1150
  %v1215 = vsel %vm1087, %v1023, %v1151
  %1216 = vst.msk [vmem:[%s4] sm:$0xff] %vm482, %v1152
  %1217 = vst.msk [vmem:[%s4 + $0x8] sm:$0xff] %vm482, %v1153
  %1218 = vst.msk [vmem:[%s4 + $0x10] sm:$0xff] %vm482, %v1154
  %1219 = vst.msk [vmem:[%s4 + $0x18] sm:$0xff] %vm482, %v1155
  %1220 = vst.msk [vmem:[%s4 + $0x20] sm:$0xff] %vm482, %v1156
  %1221 = vst.msk [vmem:[%s4 + $0x28] sm:$0xff] %vm482, %v1157
  %1222 = vst.msk [vmem:[%s4 + $0x30] sm:$0xff] %vm482, %v1158
  %1223 = vst.msk [vmem:[%s4 + $0x38] sm:$0xff] %vm482, %v1159
  %1224 = vst.msk [vmem:[%s4 + $0x40] sm:$0xff] %vm482, %v1160
  %1225 = vst.msk [vmem:[%s4 + $0x48] sm:$0xff] %vm482, %v1161
  %1226 = vst.msk [vmem:[%s4 + $0x50] sm:$0xff] %vm482, %v1162
  %1227 = vst.msk [vmem:[%s4 + $0x58] sm:$0xff] %vm482, %v1163
  %1228 = vst.msk [vmem:[%s4 + $0x60] sm:$0xff] %vm482, %v1164
  %1229 = vst.msk [vmem:[%s4 + $0x68] sm:$0xff] %vm482, %v1165
  %1230 = vst.msk [vmem:[%s4 + $0x70] sm:$0xff] %vm482, %v1166
  %1231 = vst.msk [vmem:[%s4 + $0x78] sm:$0xff] %vm482, %v1167
  %1232 = vst.msk [vmem:[%s4 + $0x80] sm:$0xff] %vm482, %v1168
  %1233 = vst.msk [vmem:[%s4 + $0x88] sm:$0xff] %vm482, %v1169
  %1234 = vst.msk [vmem:[%s4 + $0x90] sm:$0xff] %vm482, %v1170
  %1235 = vst.msk [vmem:[%s4 + $0x98] sm:$0xff] %vm482, %v1171
  %1236 = vst.msk [vmem:[%s4 + $0xa0] sm:$0xff] %vm482, %v1172
  %1237 = vst.msk [vmem:[%s4 + $0xa8] sm:$0xff] %vm482, %v1173
  %1238 = vst.msk [vmem:[%s4 + $0xb0] sm:$0xff] %vm482, %v1174
  %1239 = vst.msk [vmem:[%s4 + $0xb8] sm:$0xff] %vm482, %v1175
  %1240 = vst.msk [vmem:[%s4 + $0xc0] sm:$0xff] %vm482, %v1176
  %1241 = vst.msk [vmem:[%s4 + $0xc8] sm:$0xff] %vm482, %v1177
  %1242 = vst.msk [vmem:[%s4 + $0xd0] sm:$0xff] %vm482, %v1178
  %1243 = vst.msk [vmem:[%s4 + $0xd8] sm:$0xff] %vm482, %v1179
  %1244 = vst.msk [vmem:[%s4 + $0xe0] sm:$0xff] %vm482, %v1180
  %1245 = vst.msk [vmem:[%s4 + $0xe8] sm:$0xff] %vm482, %v1181
  %1246 = vst.msk [vmem:[%s4 + $0xf0] sm:$0xff] %vm482, %v1182
  %1247 = vst.msk [vmem:[%s4 + $0xf8] sm:$0xff] %vm482, %v1183
  %1248 = vst.msk [vmem:[%s4 + $0x100] sm:$0xff] %vm482, %v1184
  %1249 = vst.msk [vmem:[%s4 + $0x108] sm:$0xff] %vm482, %v1185
  %1250 = vst.msk [vmem:[%s4 + $0x110] sm:$0xff] %vm482, %v1186
  %1251 = vst.msk [vmem:[%s4 + $0x118] sm:$0xff] %vm482, %v1187
  %1252 = vst.msk [vmem:[%s4 + $0x120] sm:$0xff] %vm482, %v1188
  %1253 = vst.msk [vmem:[%s4 + $0x128] sm:$0xff] %vm482, %v1189
  %1254 = vst.msk [vmem:[%s4 + $0x130] sm:$0xff] %vm482, %v1190
  %1255 = vst.msk [vmem:[%s4 + $0x138] sm:$0xff] %vm482, %v1191
  %1256 = vst.msk [vmem:[%s4 + $0x140] sm:$0xff] %vm482, %v1192
  %1257 = vst.msk [vmem:[%s4 + $0x148] sm:$0xff] %vm482, %v1193
  %1258 = vst.msk [vmem:[%s4 + $0x150] sm:$0xff] %vm482, %v1194
  %1259 = vst.msk [vmem:[%s4 + $0x158] sm:$0xff] %vm482, %v1195
  %1260 = vst.msk [vmem:[%s4 + $0x160] sm:$0xff] %vm482, %v1196
  %1261 = vst.msk [vmem:[%s4 + $0x168] sm:$0xff] %vm482, %v1197
  %1262 = vst.msk [vmem:[%s4 + $0x170] sm:$0xff] %vm482, %v1198
  %1263 = vst.msk [vmem:[%s4 + $0x178] sm:$0xff] %vm482, %v1199
  %1264 = vst.msk [vmem:[%s4 + $0x180] sm:$0xff] %vm482, %v1200
  %1265 = vst.msk [vmem:[%s4 + $0x188] sm:$0xff] %vm482, %v1201
  %1266 = vst.msk [vmem:[%s4 + $0x190] sm:$0xff] %vm482, %v1202
  %1267 = vst.msk [vmem:[%s4 + $0x198] sm:$0xff] %vm482, %v1203
  %1268 = vst.msk [vmem:[%s4 + $0x1a0] sm:$0xff] %vm482, %v1204
  %1269 = vst.msk [vmem:[%s4 + $0x1a8] sm:$0xff] %vm482, %v1205
  %1270 = vst.msk [vmem:[%s4 + $0x1b0] sm:$0xff] %vm482, %v1206
  %1271 = vst.msk [vmem:[%s4 + $0x1b8] sm:$0xff] %vm482, %v1207
  %1272 = vst.msk [vmem:[%s4 + $0x1c0] sm:$0xff] %vm482, %v1208
  %1273 = vst.msk [vmem:[%s4 + $0x1c8] sm:$0xff] %vm482, %v1209
  %1274 = vst.msk [vmem:[%s4 + $0x1d0] sm:$0xff] %vm482, %v1210
  %1275 = vst.msk [vmem:[%s4 + $0x1d8] sm:$0xff] %vm482, %v1211
  %1276 = vst.msk [vmem:[%s4 + $0x1e0] sm:$0xff] %vm482, %v1212
  %1277 = vst.msk [vmem:[%s4 + $0x1e8] sm:$0xff] %vm482, %v1213
  %1278 = vst.msk [vmem:[%s4 + $0x1f0] sm:$0xff] %vm482, %v1214
  %1279 = vst.msk [vmem:[%s4 + $0x1f8] sm:$0xff] %vm482, %v1215
  // Predicated region
  $region18: #{discriminator_forward.6} parent=0 // pred_check
    _
  $region19: #{discriminator_forward.6} parent=0 // pred_check_branch
    %1281 = sbr.rel (0) target = $region21
  $region20: #{discriminator_forward.6} parent=0 // pred_region
    _
  $region21: #{discriminator_forward.6} parent=0 // pred_fallthru
    _
  // Predicated region
  $region22: #{discriminator_forward.6} parent=0 // pred_check
    _
  $region23: #{discriminator_forward.6} parent=0 // pred_check_branch
    %1283 = sbr.rel (0) target = $region25
  $region24: #{discriminator_forward.6} parent=0 // pred_region
    _
  $region25: #{discriminator_forward.6} parent=0 // pred_fallthru
    _

// kernel: discriminator_forward.7
$region0: #{discriminator_forward.7}
  #allocation0 [shape = 'u32[]', space=smem, size = 0x4, offset = 0x4, fixed_abs, tag = 'smem constant byte address 0x4 - core index']
  #allocation1 [shape = 'u32[144,128]{1,0:T(1,128)}', space=vmem, size = 0x12000, scoped, tag = 'internal scratch']
  %s0 = inlined_call_operand.vmem [shape: f32[128,256], index: 0, kind: input, shape index: {}]
  %s1 = inlined_call_operand.vmem [shape: f32[256,32], index: 1, kind: input, shape index: {}]
  %s2 = inlined_call_operand.vmem [shape: f32[1,32], index: 2, kind: input, shape index: {}]
  %s3 = inlined_call_operand.vmem [shape: f32[1,32], index: 3, kind: input, shape index: {}]
  %s4 = inlined_call_operand.vmem [shape: f32[128,32], index: 4, kind: output, shape index: {}]
  %s5 = sld [smem:[#allocation0]]
  $region26: #{discriminator_forward.7} parent=0
    _
  %s7 = ssub.s32 1, %s5
  %s8 = scalar_select 0, %s7, %s5
  // Predicated region
  $region2: #{discriminator_forward.7} parent=0 // pred_check
    _
  $region3: #{discriminator_forward.7} parent=0 // pred_check_branch
    %10 = sbr.rel (0) target = $region5
  $region4: #{discriminator_forward.7} parent=0 // pred_region
    _
  $region5: #{discriminator_forward.7} parent=0 // pred_fallthru
    _
  // Predicated region
  $region6: #{discriminator_forward.7} parent=0 // pred_check
    _
  $region7: #{discriminator_forward.7} parent=0 // pred_check_branch
    %12 = sbr.rel (0) target = $region9
  $region8: #{discriminator_forward.7} parent=0 // pred_region
    _
  $region9: #{discriminator_forward.7} parent=0 // pred_fallthru
    _
  // Predicated region
  $region10: #{discriminator_forward.7} parent=0 // pred_check
    _
  $region11: #{discriminator_forward.7} parent=0 // pred_check_branch
    %14 = sbr.rel (0) target = $region13
  $region12: #{discriminator_forward.7} parent=0 // pred_region
    _
  $region13: #{discriminator_forward.7} parent=0 // pred_fallthru
    _
  // Predicated region
  $region14: #{discriminator_forward.7} parent=0 // pred_check
    _
  $region15: #{discriminator_forward.7} parent=0 // pred_check_branch
    %16 = sbr.rel (0) target = $region17
  $region16: #{discriminator_forward.7} parent=0 // pred_region
    _
  $region17: #{discriminator_forward.7} parent=0 // pred_fallthru
    _
  %v17 = vld [vmem:[%s0] sm:$0xff]
  %v18 = vld [vmem:[%s0 + $0x8] sm:$0xff]
  %v19 = vld [vmem:[%s0 + $0x10] sm:$0xff]
  %v20 = vld [vmem:[%s0 + $0x18] sm:$0xff]
  %v21 = vld [vmem:[%s0 + $0x20] sm:$0xff]
  %v22 = vld [vmem:[%s0 + $0x28] sm:$0xff]
  %v23 = vld [vmem:[%s0 + $0x30] sm:$0xff]
  %v24 = vld [vmem:[%s0 + $0x38] sm:$0xff]
  %v25 = vld [vmem:[%s0 + $0x40] sm:$0xff]
  %v26 = vld [vmem:[%s0 + $0x48] sm:$0xff]
  %v27 = vld [vmem:[%s0 + $0x50] sm:$0xff]
  %v28 = vld [vmem:[%s0 + $0x58] sm:$0xff]
  %v29 = vld [vmem:[%s0 + $0x60] sm:$0xff]
  %v30 = vld [vmem:[%s0 + $0x68] sm:$0xff]
  %v31 = vld [vmem:[%s0 + $0x70] sm:$0xff]
  %v32 = vld [vmem:[%s0 + $0x78] sm:$0xff]
  %v33 = vld [vmem:[%s0 + $0x80] sm:$0xff]
  %v34 = vld [vmem:[%s0 + $0x88] sm:$0xff]
  %v35 = vld [vmem:[%s0 + $0x90] sm:$0xff]
  %v36 = vld [vmem:[%s0 + $0x98] sm:$0xff]
  %v37 = vld [vmem:[%s0 + $0xa0] sm:$0xff]
  %v38 = vld [vmem:[%s0 + $0xa8] sm:$0xff]
  %v39 = vld [vmem:[%s0 + $0xb0] sm:$0xff]
  %v40 = vld [vmem:[%s0 + $0xb8] sm:$0xff]
  %v41 = vld [vmem:[%s0 + $0xc0] sm:$0xff]
  %v42 = vld [vmem:[%s0 + $0xc8] sm:$0xff]
  %v43 = vld [vmem:[%s0 + $0xd0] sm:$0xff]
  %v44 = vld [vmem:[%s0 + $0xd8] sm:$0xff]
  %v45 = vld [vmem:[%s0 + $0xe0] sm:$0xff]
  %v46 = vld [vmem:[%s0 + $0xe8] sm:$0xff]
  %v47 = vld [vmem:[%s0 + $0xf0] sm:$0xff]
  %v48 = vld [vmem:[%s0 + $0xf8] sm:$0xff]
  %v49 = vld [vmem:[%s1] sm:$0xff]
  %v50 = vld [vmem:[%s1 + $0x8] sm:$0xff]
  %v51 = vld [vmem:[%s1 + $0x10] sm:$0xff]
  %v52 = vld [vmem:[%s1 + $0x18] sm:$0xff]
  %v53 = vld [vmem:[%s1 + $0x20] sm:$0xff]
  %v54 = vld [vmem:[%s1 + $0x28] sm:$0xff]
  %v55 = vld [vmem:[%s1 + $0x30] sm:$0xff]
  %v56 = vld [vmem:[%s1 + $0x38] sm:$0xff]
  %v57 = vld [vmem:[%s1 + $0x40] sm:$0xff]
  %v58 = vld [vmem:[%s1 + $0x48] sm:$0xff]
  %v59 = vld [vmem:[%s1 + $0x50] sm:$0xff]
  %v60 = vld [vmem:[%s1 + $0x58] sm:$0xff]
  %v61 = vld [vmem:[%s1 + $0x60] sm:$0xff]
  %v62 = vld [vmem:[%s1 + $0x68] sm:$0xff]
  %v63 = vld [vmem:[%s1 + $0x70] sm:$0xff]
  %v64 = vld [vmem:[%s1 + $0x78] sm:$0xff]
  %v65 = vld [vmem:[%s1 + $0x80] sm:$0xff]
  %v66 = vld [vmem:[%s1 + $0x88] sm:$0xff]
  %v67 = vld [vmem:[%s1 + $0x90] sm:$0xff]
  %v68 = vld [vmem:[%s1 + $0x98] sm:$0xff]
  %v69 = vld [vmem:[%s1 + $0xa0] sm:$0xff]
  %v70 = vld [vmem:[%s1 + $0xa8] sm:$0xff]
  %v71 = vld [vmem:[%s1 + $0xb0] sm:$0xff]
  %v72 = vld [vmem:[%s1 + $0xb8] sm:$0xff]
  %v73 = vld [vmem:[%s1 + $0xc0] sm:$0xff]
  %v74 = vld [vmem:[%s1 + $0xc8] sm:$0xff]
  %v75 = vld [vmem:[%s1 + $0xd0] sm:$0xff]
  %v76 = vld [vmem:[%s1 + $0xd8] sm:$0xff]
  %v77 = vld [vmem:[%s1 + $0xe0] sm:$0xff]
  %v78 = vld [vmem:[%s1 + $0xe8] sm:$0xff]
  %v79 = vld [vmem:[%s1 + $0xf0] sm:$0xff]
  %v80 = vld [vmem:[%s1 + $0xf8] sm:$0xff]
  %81 = vmatprep.subr.mxu0 0.0
  %82 = vmatpush1.msra.mxu0 %v49
  %83 = vmatprep.subr.mxu0 0.0
  %84 = vmatpush1.msra.mxu0 %v50
  %85 = vmatprep.subr.mxu0 0.0
  %86 = vmatpush1.msra.mxu0 %v51
  %87 = vmatprep.subr.mxu0 0.0
  %88 = vmatpush1.msra.mxu0 %v52
  %89 = vmatprep.subr.mxu0 0.0
  %90 = vmatpush1.msra.mxu0 %v53
  %91 = vmatprep.subr.mxu0 0.0
  %92 = vmatpush1.msra.mxu0 %v54
  %93 = vmatprep.subr.mxu0 0.0
  %94 = vmatpush1.msra.mxu0 %v55
  %95 = vmatprep.subr.mxu0 0.0
  %96 = vmatpush1.msra.mxu0 %v56
  %97 = vmatprep.subr.mxu0 0.0
  %98 = vmatpush1.msra.mxu0 %v57
  %99 = vmatprep.subr.mxu0 0.0
  %100 = vmatpush1.msra.mxu0 %v58
  %101 = vmatprep.subr.mxu0 0.0
  %102 = vmatpush1.msra.mxu0 %v59
  %103 = vmatprep.subr.mxu0 0.0
  %104 = vmatpush1.msra.mxu0 %v60
  %105 = vmatprep.subr.mxu0 0.0
  %106 = vmatpush1.msra.mxu0 %v61
  %107 = vmatprep.subr.mxu0 0.0
  %108 = vmatpush1.msra.mxu0 %v62
  %109 = vmatprep.subr.mxu0 0.0
  %110 = vmatpush1.msra.mxu0 %v63
  %111 = vmatprep.subr.mxu0 0.0
  %112 = vmatpush1.msra.mxu0 %v64
  %113 = vmatprep.subr.mxu0 0.0
  %114 = vmatpush1.msra.mxu0 %v65
  %115 = vmatprep.subr.mxu0 0.0
  %116 = vmatpush1.msra.mxu0 %v66
  %117 = vmatprep.subr.mxu0 0.0
  %118 = vmatpush1.msra.mxu0 %v67
  %119 = vmatprep.subr.mxu0 0.0
  %120 = vmatpush1.msra.mxu0 %v68
  %121 = vmatprep.subr.mxu0 0.0
  %122 = vmatpush1.msra.mxu0 %v69
  %123 = vmatprep.subr.mxu0 0.0
  %124 = vmatpush1.msra.mxu0 %v70
  %125 = vmatprep.subr.mxu0 0.0
  %126 = vmatpush1.msra.mxu0 %v71
  %127 = vmatprep.subr.mxu0 0.0
  %128 = vmatpush1.msra.mxu0 %v72
  %129 = vmatprep.subr.mxu0 0.0
  %130 = vmatpush1.msra.mxu0 %v73
  %131 = vmatprep.subr.mxu0 0.0
  %132 = vmatpush1.msra.mxu0 %v74
  %133 = vmatprep.subr.mxu0 0.0
  %134 = vmatpush1.msra.mxu0 %v75
  %135 = vmatprep.subr.mxu0 0.0
  %136 = vmatpush1.msra.mxu0 %v76
  %137 = vmatprep.subr.mxu0 0.0
  %138 = vmatpush1.msra.mxu0 %v77
  %139 = vmatprep.subr.mxu0 0.0
  %140 = vmatpush1.msra.mxu0 %v78
  %141 = vmatprep.subr.mxu0 0.0
  %142 = vmatpush1.msra.mxu0 %v79
  %143 = vmatprep.subr.mxu0 0.0
  %144 = vmatpush1.msra.mxu0 %v80
  %145 = vmatprep.mubr.f32.mxu0 %v18
  %146 = vmatmul.mubr.f32.gmra.mrb[0].mxu0 %v17
  %v147 = vpop.f32.mrb[0].mxu0
  %v148 = vadd.f32 0.0, %v147
  %v149 = vpop.f32.mrb[0].mxu0
  %150 = vmatprep.mubr.f32.mxu0 %v20
  %151 = vmatmul.mubr.f32.gmra.mrb[0].mxu0 %v19
  %v152 = vpop.f32.mrb[0].mxu0
  %v153 = vadd.f32 0.0, %v152
  %v154 = vpop.f32.mrb[0].mxu0
  %155 = vmatprep.mubr.f32.mxu0 %v22
  %156 = vmatmul.mubr.f32.gmra.mrb[0].mxu0 %v21
  %v157 = vpop.f32.mrb[0].mxu0
  %v158 = vadd.f32 0.0, %v157
  %v159 = vpop.f32.mrb[0].mxu0
  %160 = vmatprep.mubr.f32.mxu0 %v24
  %161 = vmatmul.mubr.f32.gmra.mrb[0].mxu0 %v23
  %v162 = vpop.f32.mrb[0].mxu0
  %v163 = vadd.f32 0.0, %v162
  %v164 = vpop.f32.mrb[0].mxu0
  %165 = vmatprep.mubr.f32.mxu0 %v26
  %166 = vmatmul.mubr.f32.gmra.mrb[0].mxu0 %v25
  %v167 = vpop.f32.mrb[0].mxu0
  %v168 = vadd.f32 0.0, %v167
  %v169 = vpop.f32.mrb[0].mxu0
  %170 = vmatprep.mubr.f32.mxu0 %v28
  %171 = vmatmul.mubr.f32.gmra.mrb[0].mxu0 %v27
  %v172 = vpop.f32.mrb[0].mxu0
  %v173 = vadd.f32 0.0, %v172
  %v174 = vpop.f32.mrb[0].mxu0
  %175 = vmatprep.mubr.f32.mxu0 %v30
  %176 = vmatmul.mubr.f32.gmra.mrb[0].mxu0 %v29
  %v177 = vpop.f32.mrb[0].mxu0
  %v178 = vadd.f32 0.0, %v177
  %v179 = vpop.f32.mrb[0].mxu0
  %180 = vmatprep.mubr.f32.mxu0 %v32
  %181 = vmatmul.mubr.f32.gmra.mrb[0].mxu0 %v31
  %v182 = vpop.f32.mrb[0].mxu0
  %v183 = vadd.f32 0.0, %v182
  %v184 = vpop.f32.mrb[0].mxu0
  %185 = vmatprep.mubr.f32.mxu0 %v34
  %186 = vmatmul.mubr.f32.gmra.mrb[0].mxu0 %v33
  %v187 = vpop.f32.mrb[0].mxu0
  %v188 = vadd.f32 0.0, %v187
  %v189 = vpop.f32.mrb[0].mxu0
  %190 = vmatprep.mubr.f32.mxu0 %v36
  %191 = vmatmul.mubr.f32.gmra.mrb[0].mxu0 %v35
  %v192 = vpop.f32.mrb[0].mxu0
  %v193 = vadd.f32 0.0, %v192
  %v194 = vpop.f32.mrb[0].mxu0
  %195 = vmatprep.mubr.f32.mxu0 %v38
  %196 = vmatmul.mubr.f32.gmra.mrb[0].mxu0 %v37
  %v197 = vpop.f32.mrb[0].mxu0
  %v198 = vadd.f32 0.0, %v197
  %v199 = vpop.f32.mrb[0].mxu0
  %200 = vmatprep.mubr.f32.mxu0 %v40
  %201 = vmatmul.mubr.f32.gmra.mrb[0].mxu0 %v39
  %v202 = vpop.f32.mrb[0].mxu0
  %v203 = vadd.f32 0.0, %v202
  %v204 = vpop.f32.mrb[0].mxu0
  %205 = vmatprep.mubr.f32.mxu0 %v42
  %206 = vmatmul.mubr.f32.gmra.mrb[0].mxu0 %v41
  %v207 = vpop.f32.mrb[0].mxu0
  %v208 = vadd.f32 0.0, %v207
  %v209 = vpop.f32.mrb[0].mxu0
  %210 = vmatprep.mubr.f32.mxu0 %v44
  %211 = vmatmul.mubr.f32.gmra.mrb[0].mxu0 %v43
  %v212 = vpop.f32.mrb[0].mxu0
  %v213 = vadd.f32 0.0, %v212
  %v214 = vpop.f32.mrb[0].mxu0
  %215 = vmatprep.mubr.f32.mxu0 %v46
  %216 = vmatmul.mubr.f32.gmra.mrb[0].mxu0 %v45
  %v217 = vpop.f32.mrb[0].mxu0
  %v218 = vadd.f32 0.0, %v217
  %v219 = vpop.f32.mrb[0].mxu0
  %220 = vmatprep.mubr.f32.mxu0 %v48
  %221 = vmatmul.mubr.f32.gmra.mrb[0].mxu0 %v47
  %v222 = vpop.f32.mrb[0].mxu0
  %v223 = vadd.f32 0.0, %v222
  %v224 = vpop.f32.mrb[0].mxu0
  %225 = vdwg.mxu0
  %vm226 = vcmask 261120
  %v227 = vsel %vm226, %v148, 0.0
  %v228 = vsel %vm226, %v153, 0.0
  %v229 = vadd.f32 %v227, %v228
  %v230 = vsel %vm226, %v158, 0.0
  %v231 = vadd.f32 %v229, %v230
  %v232 = vsel %vm226, %v163, 0.0
  %v233 = vadd.f32 %v231, %v232
  %v234 = vsel %vm226, %v168, 0.0
  %v235 = vadd.f32 %v233, %v234
  %v236 = vsel %vm226, %v173, 0.0
  %v237 = vadd.f32 %v235, %v236
  %v238 = vsel %vm226, %v178, 0.0
  %v239 = vadd.f32 %v237, %v238
  %v240 = vsel %vm226, %v183, 0.0
  %v241 = vadd.f32 %v239, %v240
  %v242 = vsel %vm226, %v188, 0.0
  %v243 = vadd.f32 %v241, %v242
  %v244 = vsel %vm226, %v193, 0.0
  %v245 = vadd.f32 %v243, %v244
  %v246 = vsel %vm226, %v198, 0.0
  %v247 = vadd.f32 %v245, %v246
  %v248 = vsel %vm226, %v203, 0.0
  %v249 = vadd.f32 %v247, %v248
  %v250 = vsel %vm226, %v208, 0.0
  %v251 = vadd.f32 %v249, %v250
  %v252 = vsel %vm226, %v213, 0.0
  %v253 = vadd.f32 %v251, %v252
  %v254 = vsel %vm226, %v218, 0.0
  %v255 = vadd.f32 %v253, %v254
  %v256 = vsel %vm226, %v223, 0.0
  %v257 = vadd.f32 %v255, %v256
  %v258 = vrot.slane %v257, 4
  %v259 = vadd.f32 %v257, %v258
  %v260 = vrot.slane %v259, 2
  %v261 = vadd.f32 %v259, %v260
  %v262 = vrot.slane %v261, 1
  %v263 = vadd.f32 %v261, %v262
  %v264 = vmul.f32 %v263, 0.0078125
  %v265 = vsub.f32 %v148, %v264
  %v266 = vsub.f32 %v153, %v264
  %v267 = vsub.f32 %v158, %v264
  %v268 = vsub.f32 %v163, %v264
  %v269 = vsub.f32 %v168, %v264
  %v270 = vsub.f32 %v173, %v264
  %v271 = vsub.f32 %v178, %v264
  %v272 = vsub.f32 %v183, %v264
  %v273 = vsub.f32 %v188, %v264
  %v274 = vsub.f32 %v193, %v264
  %v275 = vsub.f32 %v198, %v264
  %v276 = vsub.f32 %v203, %v264
  %v277 = vsub.f32 %v208, %v264
  %v278 = vsub.f32 %v213, %v264
  %v279 = vsub.f32 %v218, %v264
  %v280 = vsub.f32 %v223, %v264
  %v281 = vmul.f32 %v265, %v265
  %v282 = vmul.f32 %v266, %v266
  %v283 = vmul.f32 %v267, %v267
  %v284 = vmul.f32 %v268, %v268
  %v285 = vmul.f32 %v269, %v269
  %v286 = vmul.f32 %v270, %v270
  %v287 = vmul.f32 %v271, %v271
  %v288 = vmul.f32 %v272, %v272
  %v289 = vmul.f32 %v273, %v273
  %v290 = vmul.f32 %v274, %v274
  %v291 = vmul.f32 %v275, %v275
  %v292 = vmul.f32 %v276, %v276
  %v293 = vmul.f32 %v277, %v277
  %v294 = vmul.f32 %v278, %v278
  %v295 = vmul.f32 %v279, %v279
  %v296 = vmul.f32 %v280, %v280
  %v297 = vsel %vm226, %v281, 0.0
  %v298 = vsel %vm226, %v282, 0.0
  %v299 = vadd.f32 %v297, %v298
  %v300 = vsel %vm226, %v283, 0.0
  %v301 = vadd.f32 %v299, %v300
  %v302 = vsel %vm226, %v284, 0.0
  %v303 = vadd.f32 %v301, %v302
  %v304 = vsel %vm226, %v285, 0.0
  %v305 = vadd.f32 %v303, %v304
  %v306 = vsel %vm226, %v286, 0.0
  %v307 = vadd.f32 %v305, %v306
  %v308 = vsel %vm226, %v287, 0.0
  %v309 = vadd.f32 %v307, %v308
  %v310 = vsel %vm226, %v288, 0.0
  %v311 = vadd.f32 %v309, %v310
  %v312 = vsel %vm226, %v289, 0.0
  %v313 = vadd.f32 %v311, %v312
  %v314 = vsel %vm226, %v290, 0.0
  %v315 = vadd.f32 %v313, %v314
  %v316 = vsel %vm226, %v291, 0.0
  %v317 = vadd.f32 %v315, %v316
  %v318 = vsel %vm226, %v292, 0.0
  %v319 = vadd.f32 %v317, %v318
  %v320 = vsel %vm226, %v293, 0.0
  %v321 = vadd.f32 %v319, %v320
  %v322 = vsel %vm226, %v294, 0.0
  %v323 = vadd.f32 %v321, %v322
  %v324 = vsel %vm226, %v295, 0.0
  %v325 = vadd.f32 %v323, %v324
  %v326 = vsel %vm226, %v296, 0.0
  %v327 = vadd.f32 %v325, %v326
  %v328 = vrot.slane %v327, 4
  %v329 = vadd.f32 %v327, %v328
  %v330 = vrot.slane %v329, 2
  %v331 = vadd.f32 %v329, %v330
  %v332 = vrot.slane %v331, 1
  %v333 = vadd.f32 %v331, %v332
  %v334 = vmul.f32 %v333, 0.0078125
  %v335 = vld [vmem:[%s2] sm:$0x1]
  %v336 = vadd.f32 %v334, 1e-05
  %v337 = vrsqrt.pop %v336
  %v338 = vmul.f32 %v335, %v337
  %v340 = vlaneseq
  %v341 = vshrl.u32 %v340, 7
  %v342 = vsub.s32 0, %v341
  %v343 = vrot.slane %v338, %v342
  %v345 = vmul.f32 %v265, %v343
  %v346 = vmul.f32 %v266, %v343
  %v347 = vmul.f32 %v267, %v343
  %v348 = vmul.f32 %v268, %v343
  %v349 = vmul.f32 %v269, %v343
  %v350 = vmul.f32 %v270, %v343
  %v351 = vmul.f32 %v271, %v343
  %v352 = vmul.f32 %v272, %v343
  %v353 = vmul.f32 %v273, %v343
  %v354 = vmul.f32 %v274, %v343
  %v355 = vmul.f32 %v275, %v343
  %v356 = vmul.f32 %v276, %v343
  %v357 = vmul.f32 %v277, %v343
  %v358 = vmul.f32 %v278, %v343
  %v359 = vmul.f32 %v279, %v343
  %v360 = vmul.f32 %v280, %v343
  %v361 = vld [vmem:[%s3] sm:$0x1]
  %v363 = vlaneseq
  %v364 = vshrl.u32 %v363, 7
  %v365 = vsub.s32 0, %v364
  %v366 = vrot.slane %v361, %v365
  %v368 = vadd.f32 %v345, %v366
  %v369 = vadd.f32 %v346, %v366
  %v370 = vadd.f32 %v347, %v366
  %v371 = vadd.f32 %v348, %v366
  %v372 = vadd.f32 %v349, %v366
  %v373 = vadd.f32 %v350, %v366
  %v374 = vadd.f32 %v351, %v366
  %v375 = vadd.f32 %v352, %v366
  %v376 = vadd.f32 %v353, %v366
  %v377 = vadd.f32 %v354, %v366
  %v378 = vadd.f32 %v355, %v366
  %v379 = vadd.f32 %v356, %v366
  %v380 = vadd.f32 %v357, %v366
  %v381 = vadd.f32 %v358, %v366
  %v382 = vadd.f32 %v359, %v366
  %v383 = vadd.f32 %v360, %v366
  %vm384 = vcmp.gt.f32.partialorder %v368, 0.0
  %vm385 = vcmp.gt.f32.partialorder %v369, 0.0
  %vm386 = vcmp.gt.f32.partialorder %v370, 0.0
  %vm387 = vcmp.gt.f32.partialorder %v371, 0.0
  %vm388 = vcmp.gt.f32.partialorder %v372, 0.0
  %vm389 = vcmp.gt.f32.partialorder %v373, 0.0
  %vm390 = vcmp.gt.f32.partialorder %v374, 0.0
  %vm391 = vcmp.gt.f32.partialorder %v375, 0.0
  %vm392 = vcmp.gt.f32.partialorder %v376, 0.0
  %vm393 = vcmp.gt.f32.partialorder %v377, 0.0
  %vm394 = vcmp.gt.f32.partialorder %v378, 0.0
  %vm395 = vcmp.gt.f32.partialorder %v379, 0.0
  %vm396 = vcmp.gt.f32.partialorder %v380, 0.0
  %vm397 = vcmp.gt.f32.partialorder %v381, 0.0
  %vm398 = vcmp.gt.f32.partialorder %v382, 0.0
  %vm399 = vcmp.gt.f32.partialorder %v383, 0.0
  %v400 = vmul.f32 %v368, 0.2
  %v401 = vmul.f32 %v369, 0.2
  %v402 = vmul.f32 %v370, 0.2
  %v403 = vmul.f32 %v371, 0.2
  %v404 = vmul.f32 %v372, 0.2
  %v405 = vmul.f32 %v373, 0.2
  %v406 = vmul.f32 %v374, 0.2
  %v407 = vmul.f32 %v375, 0.2
  %v408 = vmul.f32 %v376, 0.2
  %v409 = vmul.f32 %v377, 0.2
  %v410 = vmul.f32 %v378, 0.2
  %v411 = vmul.f32 %v379, 0.2
  %v412 = vmul.f32 %v380, 0.2
  %v413 = vmul.f32 %v381, 0.2
  %v414 = vmul.f32 %v382, 0.2
  %v415 = vmul.f32 %v383, 0.2
  %v416 = vsel %vm384, %v368, %v400
  %v417 = vsel %vm385, %v369, %v401
  %v418 = vsel %vm386, %v370, %v402
  %v419 = vsel %vm387, %v371, %v403
  %v420 = vsel %vm388, %v372, %v404
  %v421 = vsel %vm389, %v373, %v405
  %v422 = vsel %vm390, %v374, %v406
  %v423 = vsel %vm391, %v375, %v407
  %v424 = vsel %vm392, %v376, %v408
  %v425 = vsel %vm393, %v377, %v409
  %v426 = vsel %vm394, %v378, %v410
  %v427 = vsel %vm395, %v379, %v411
  %v428 = vsel %vm396, %v380, %v412
  %v429 = vsel %vm397, %v381, %v413
  %v430 = vsel %vm398, %v382, %v414
  %v431 = vsel %vm399, %v383, %v415
  %432 = vst.msk [vmem:[%s4] sm:$0xff] %vm226, %v416
  %433 = vst.msk [vmem:[%s4 + $0x8] sm:$0xff] %vm226, %v417
  %434 = vst.msk [vmem:[%s4 + $0x10] sm:$0xff] %vm226, %v418
  %435 = vst.msk [vmem:[%s4 + $0x18] sm:$0xff] %vm226, %v419
  %436 = vst.msk [vmem:[%s4 + $0x20] sm:$0xff] %vm226, %v420
  %437 = vst.msk [vmem:[%s4 + $0x28] sm:$0xff] %vm226, %v421
  %438 = vst.msk [vmem:[%s4 + $0x30] sm:$0xff] %vm226, %v422
  %439 = vst.msk [vmem:[%s4 + $0x38] sm:$0xff] %vm226, %v423
  %440 = vst.msk [vmem:[%s4 + $0x40] sm:$0xff] %vm226, %v424
  %441 = vst.msk [vmem:[%s4 + $0x48] sm:$0xff] %vm226, %v425
  %442 = vst.msk [vmem:[%s4 + $0x50] sm:$0xff] %vm226, %v426
  %443 = vst.msk [vmem:[%s4 + $0x58] sm:$0xff] %vm226, %v427
  %444 = vst.msk [vmem:[%s4 + $0x60] sm:$0xff] %vm226, %v428
  %445 = vst.msk [vmem:[%s4 + $0x68] sm:$0xff] %vm226, %v429
  %446 = vst.msk [vmem:[%s4 + $0x70] sm:$0xff] %vm226, %v430
  %447 = vst.msk [vmem:[%s4 + $0x78] sm:$0xff] %vm226, %v431
  // Predicated region
  $region18: #{discriminator_forward.7} parent=0 // pred_check
    _
  $region19: #{discriminator_forward.7} parent=0 // pred_check_branch
    %449 = sbr.rel (0) target = $region21
  $region20: #{discriminator_forward.7} parent=0 // pred_region
    _
  $region21: #{discriminator_forward.7} parent=0 // pred_fallthru
    _
  // Predicated region
  $region22: #{discriminator_forward.7} parent=0 // pred_check
    _
  $region23: #{discriminator_forward.7} parent=0 // pred_check_branch
    %451 = sbr.rel (0) target = $region25
  $region24: #{discriminator_forward.7} parent=0 // pred_region
    _
  $region25: #{discriminator_forward.7} parent=0 // pred_fallthru
    _

// kernel: discriminator_forward.8
$region0: #{discriminator_forward.8}
  #allocation0 [shape = 'u32[]', space=smem, size = 0x4, offset = 0x4, fixed_abs, tag = 'smem constant byte address 0x4 - core index']
  #allocation1 [shape = 'u32[144,128]{1,0:T(1,128)}', space=vmem, size = 0x12000, scoped, tag = 'internal scratch']
  %s0 = inlined_call_operand.vmem [shape: f32[32,512], index: 0, kind: input, shape index: {}]
  %s1 = inlined_call_operand.vmem [shape: f32[512,64], index: 1, kind: input, shape index: {}]
  %s2 = inlined_call_operand.vmem [shape: f32[1,64], index: 2, kind: input, shape index: {}]
  %s3 = inlined_call_operand.vmem [shape: f32[1,64], index: 3, kind: input, shape index: {}]
  %s4 = inlined_call_operand.vmem [shape: f32[32,64], index: 4, kind: output, shape index: {}]
  %s5 = sld [smem:[#allocation0]]
  $region26: #{discriminator_forward.8} parent=0
    _
  %s7 = ssub.s32 1, %s5
  %s8 = scalar_select 0, %s7, %s5
  // Predicated region
  $region2: #{discriminator_forward.8} parent=0 // pred_check
    _
  $region3: #{discriminator_forward.8} parent=0 // pred_check_branch
    %10 = sbr.rel (0) target = $region5
  $region4: #{discriminator_forward.8} parent=0 // pred_region
    _
  $region5: #{discriminator_forward.8} parent=0 // pred_fallthru
    _
  // Predicated region
  $region6: #{discriminator_forward.8} parent=0 // pred_check
    _
  $region7: #{discriminator_forward.8} parent=0 // pred_check_branch
    %12 = sbr.rel (0) target = $region9
  $region8: #{discriminator_forward.8} parent=0 // pred_region
    _
  $region9: #{discriminator_forward.8} parent=0 // pred_fallthru
    _
  // Predicated region
  $region10: #{discriminator_forward.8} parent=0 // pred_check
    _
  $region11: #{discriminator_forward.8} parent=0 // pred_check_branch
    %14 = sbr.rel (0) target = $region13
  $region12: #{discriminator_forward.8} parent=0 // pred_region
    _
  $region13: #{discriminator_forward.8} parent=0 // pred_fallthru
    _
  // Predicated region
  $region14: #{discriminator_forward.8} parent=0 // pred_check
    _
  $region15: #{discriminator_forward.8} parent=0 // pred_check_branch
    %16 = sbr.rel (0) target = $region17
  $region16: #{discriminator_forward.8} parent=0 // pred_region
    _
  $region17: #{discriminator_forward.8} parent=0 // pred_fallthru
    _
  %v17 = vld [vmem:[%s0] sm:$0xff]
  %v18 = vld [vmem:[%s0 + $0x8] sm:$0xff]
  %v19 = vld [vmem:[%s0 + $0x10] sm:$0xff]
  %v20 = vld [vmem:[%s0 + $0x18] sm:$0xff]
  %v21 = vld [vmem:[%s0 + $0x20] sm:$0xff]
  %v22 = vld [vmem:[%s0 + $0x28] sm:$0xff]
  %v23 = vld [vmem:[%s0 + $0x30] sm:$0xff]
  %v24 = vld [vmem:[%s0 + $0x38] sm:$0xff]
  %v25 = vld [vmem:[%s0 + $0x40] sm:$0xff]
  %v26 = vld [vmem:[%s0 + $0x48] sm:$0xff]
  %v27 = vld [vmem:[%s0 + $0x50] sm:$0xff]
  %v28 = vld [vmem:[%s0 + $0x58] sm:$0xff]
  %v29 = vld [vmem:[%s0 + $0x60] sm:$0xff]
  %v30 = vld [vmem:[%s0 + $0x68] sm:$0xff]
  %v31 = vld [vmem:[%s0 + $0x70] sm:$0xff]
  %v32 = vld [vmem:[%s0 + $0x78] sm:$0xff]
  %v33 = vld [vmem:[%s1] sm:$0xff]
  %v34 = vld [vmem:[%s1 + $0x8] sm:$0xff]
  %v35 = vld [vmem:[%s1 + $0x10] sm:$0xff]
  %v36 = vld [vmem:[%s1 + $0x18] sm:$0xff]
  %v37 = vld [vmem:[%s1 + $0x20] sm:$0xff]
  %v38 = vld [vmem:[%s1 + $0x28] sm:$0xff]
  %v39 = vld [vmem:[%s1 + $0x30] sm:$0xff]
  %v40 = vld [vmem:[%s1 + $0x38] sm:$0xff]
  %v41 = vld [vmem:[%s1 + $0x40] sm:$0xff]
  %v42 = vld [vmem:[%s1 + $0x48] sm:$0xff]
  %v43 = vld [vmem:[%s1 + $0x50] sm:$0xff]
  %v44 = vld [vmem:[%s1 + $0x58] sm:$0xff]
  %v45 = vld [vmem:[%s1 + $0x60] sm:$0xff]
  %v46 = vld [vmem:[%s1 + $0x68] sm:$0xff]
  %v47 = vld [vmem:[%s1 + $0x70] sm:$0xff]
  %v48 = vld [vmem:[%s1 + $0x78] sm:$0xff]
  %v49 = vld [vmem:[%s1 + $0x80] sm:$0xff]
  %v50 = vld [vmem:[%s1 + $0x88] sm:$0xff]
  %v51 = vld [vmem:[%s1 + $0x90] sm:$0xff]
  %v52 = vld [vmem:[%s1 + $0x98] sm:$0xff]
  %v53 = vld [vmem:[%s1 + $0xa0] sm:$0xff]
  %v54 = vld [vmem:[%s1 + $0xa8] sm:$0xff]
  %v55 = vld [vmem:[%s1 + $0xb0] sm:$0xff]
  %v56 = vld [vmem:[%s1 + $0xb8] sm:$0xff]
  %v57 = vld [vmem:[%s1 + $0xc0] sm:$0xff]
  %v58 = vld [vmem:[%s1 + $0xc8] sm:$0xff]
  %v59 = vld [vmem:[%s1 + $0xd0] sm:$0xff]
  %v60 = vld [vmem:[%s1 + $0xd8] sm:$0xff]
  %v61 = vld [vmem:[%s1 + $0xe0] sm:$0xff]
  %v62 = vld [vmem:[%s1 + $0xe8] sm:$0xff]
  %v63 = vld [vmem:[%s1 + $0xf0] sm:$0xff]
  %v64 = vld [vmem:[%s1 + $0xf8] sm:$0xff]
  %v65 = vld [vmem:[%s1 + $0x100] sm:$0xff]
  %v66 = vld [vmem:[%s1 + $0x108] sm:$0xff]
  %v67 = vld [vmem:[%s1 + $0x110] sm:$0xff]
  %v68 = vld [vmem:[%s1 + $0x118] sm:$0xff]
  %v69 = vld [vmem:[%s1 + $0x120] sm:$0xff]
  %v70 = vld [vmem:[%s1 + $0x128] sm:$0xff]
  %v71 = vld [vmem:[%s1 + $0x130] sm:$0xff]
  %v72 = vld [vmem:[%s1 + $0x138] sm:$0xff]
  %v73 = vld [vmem:[%s1 + $0x140] sm:$0xff]
  %v74 = vld [vmem:[%s1 + $0x148] sm:$0xff]
  %v75 = vld [vmem:[%s1 + $0x150] sm:$0xff]
  %v76 = vld [vmem:[%s1 + $0x158] sm:$0xff]
  %v77 = vld [vmem:[%s1 + $0x160] sm:$0xff]
  %v78 = vld [vmem:[%s1 + $0x168] sm:$0xff]
  %v79 = vld [vmem:[%s1 + $0x170] sm:$0xff]
  %v80 = vld [vmem:[%s1 + $0x178] sm:$0xff]
  %v81 = vld [vmem:[%s1 + $0x180] sm:$0xff]
  %v82 = vld [vmem:[%s1 + $0x188] sm:$0xff]
  %v83 = vld [vmem:[%s1 + $0x190] sm:$0xff]
  %v84 = vld [vmem:[%s1 + $0x198] sm:$0xff]
  %v85 = vld [vmem:[%s1 + $0x1a0] sm:$0xff]
  %v86 = vld [vmem:[%s1 + $0x1a8] sm:$0xff]
  %v87 = vld [vmem:[%s1 + $0x1b0] sm:$0xff]
  %v88 = vld [vmem:[%s1 + $0x1b8] sm:$0xff]
  %v89 = vld [vmem:[%s1 + $0x1c0] sm:$0xff]
  %v90 = vld [vmem:[%s1 + $0x1c8] sm:$0xff]
  %v91 = vld [vmem:[%s1 + $0x1d0] sm:$0xff]
  %v92 = vld [vmem:[%s1 + $0x1d8] sm:$0xff]
  %v93 = vld [vmem:[%s1 + $0x1e0] sm:$0xff]
  %v94 = vld [vmem:[%s1 + $0x1e8] sm:$0xff]
  %v95 = vld [vmem:[%s1 + $0x1f0] sm:$0xff]
  %v96 = vld [vmem:[%s1 + $0x1f8] sm:$0xff]
  %97 = vmatprep.subr.mxu0 0.0
  %98 = vmatpush1.msra.mxu0 %v33
  %99 = vmatprep.subr.mxu0 0.0
  %100 = vmatpush1.msra.mxu0 %v34
  %101 = vmatprep.subr.mxu0 0.0
  %102 = vmatpush1.msra.mxu0 %v35
  %103 = vmatprep.subr.mxu0 0.0
  %104 = vmatpush1.msra.mxu0 %v36
  %105 = vmatprep.subr.mxu0 0.0
  %106 = vmatpush1.msra.mxu0 %v37
  %107 = vmatprep.subr.mxu0 0.0
  %108 = vmatpush1.msra.mxu0 %v38
  %109 = vmatprep.subr.mxu0 0.0
  %110 = vmatpush1.msra.mxu0 %v39
  %111 = vmatprep.subr.mxu0 0.0
  %112 = vmatpush1.msra.mxu0 %v40
  %113 = vmatprep.subr.mxu0 0.0
  %114 = vmatpush1.msra.mxu0 %v41
  %115 = vmatprep.subr.mxu0 0.0
  %116 = vmatpush1.msra.mxu0 %v42
  %117 = vmatprep.subr.mxu0 0.0
  %118 = vmatpush1.msra.mxu0 %v43
  %119 = vmatprep.subr.mxu0 0.0
  %120 = vmatpush1.msra.mxu0 %v44
  %121 = vmatprep.subr.mxu0 0.0
  %122 = vmatpush1.msra.mxu0 %v45
  %123 = vmatprep.subr.mxu0 0.0
  %124 = vmatpush1.msra.mxu0 %v46
  %125 = vmatprep.subr.mxu0 0.0
  %126 = vmatpush1.msra.mxu0 %v47
  %127 = vmatprep.subr.mxu0 0.0
  %128 = vmatpush1.msra.mxu0 %v48
  %129 = vmatprep.subr.mxu0 0.0
  %130 = vmatpush1.msra.mxu0 %v49
  %131 = vmatprep.subr.mxu0 0.0
  %132 = vmatpush1.msra.mxu0 %v50
  %133 = vmatprep.subr.mxu0 0.0
  %134 = vmatpush1.msra.mxu0 %v51
  %135 = vmatprep.subr.mxu0 0.0
  %136 = vmatpush1.msra.mxu0 %v52
  %137 = vmatprep.subr.mxu0 0.0
  %138 = vmatpush1.msra.mxu0 %v53
  %139 = vmatprep.subr.mxu0 0.0
  %140 = vmatpush1.msra.mxu0 %v54
  %141 = vmatprep.subr.mxu0 0.0
  %142 = vmatpush1.msra.mxu0 %v55
  %143 = vmatprep.subr.mxu0 0.0
  %144 = vmatpush1.msra.mxu0 %v56
  %145 = vmatprep.subr.mxu0 0.0
  %146 = vmatpush1.msra.mxu0 %v57
  %147 = vmatprep.subr.mxu0 0.0
  %148 = vmatpush1.msra.mxu0 %v58
  %149 = vmatprep.subr.mxu0 0.0
  %150 = vmatpush1.msra.mxu0 %v59
  %151 = vmatprep.subr.mxu0 0.0
  %152 = vmatpush1.msra.mxu0 %v60
  %153 = vmatprep.subr.mxu0 0.0
  %154 = vmatpush1.msra.mxu0 %v61
  %155 = vmatprep.subr.mxu0 0.0
  %156 = vmatpush1.msra.mxu0 %v62
  %157 = vmatprep.subr.mxu0 0.0
  %158 = vmatpush1.msra.mxu0 %v63
  %159 = vmatprep.subr.mxu0 0.0
  %160 = vmatpush1.msra.mxu0 %v64
  %161 = vmatprep.mubr.f32.mxu0 %v18
  %162 = vmatmul.mubr.f32.gmra.mrb[0].mxu0 %v17
  %v163 = vpop.f32.mrb[0].mxu0
  %v164 = vadd.f32 0.0, %v163
  %v165 = vpop.f32.mrb[0].mxu0
  %166 = vmatprep.mubr.f32.mxu0 %v22
  %167 = vmatmul.mubr.f32.gmra.mrb[0].mxu0 %v21
  %v168 = vpop.f32.mrb[0].mxu0
  %v169 = vadd.f32 0.0, %v168
  %v170 = vpop.f32.mrb[0].mxu0
  %171 = vmatprep.mubr.f32.mxu0 %v26
  %172 = vmatmul.mubr.f32.gmra.mrb[0].mxu0 %v25
  %v173 = vpop.f32.mrb[0].mxu0
  %v174 = vadd.f32 0.0, %v173
  %v175 = vpop.f32.mrb[0].mxu0
  %176 = vmatprep.mubr.f32.mxu0 %v30
  %177 = vmatmul.mubr.f32.gmra.mrb[0].mxu0 %v29
  %v178 = vpop.f32.mrb[0].mxu0
  %v179 = vadd.f32 0.0, %v178
  %v180 = vpop.f32.mrb[0].mxu0
  %181 = vdwg.mxu0
  %182 = vmatprep.subr.mxu0 0.0
  %183 = vmatpush1.msra.mxu0 %v65
  %184 = vmatprep.subr.mxu0 0.0
  %185 = vmatpush1.msra.mxu0 %v66
  %186 = vmatprep.subr.mxu0 0.0
  %187 = vmatpush1.msra.mxu0 %v67
  %188 = vmatprep.subr.mxu0 0.0
  %189 = vmatpush1.msra.mxu0 %v68
  %190 = vmatprep.subr.mxu0 0.0
  %191 = vmatpush1.msra.mxu0 %v69
  %192 = vmatprep.subr.mxu0 0.0
  %193 = vmatpush1.msra.mxu0 %v70
  %194 = vmatprep.subr.mxu0 0.0
  %195 = vmatpush1.msra.mxu0 %v71
  %196 = vmatprep.subr.mxu0 0.0
  %197 = vmatpush1.msra.mxu0 %v72
  %198 = vmatprep.subr.mxu0 0.0
  %199 = vmatpush1.msra.mxu0 %v73
  %200 = vmatprep.subr.mxu0 0.0
  %201 = vmatpush1.msra.mxu0 %v74
  %202 = vmatprep.subr.mxu0 0.0
  %203 = vmatpush1.msra.mxu0 %v75
  %204 = vmatprep.subr.mxu0 0.0
  %205 = vmatpush1.msra.mxu0 %v76
  %206 = vmatprep.subr.mxu0 0.0
  %207 = vmatpush1.msra.mxu0 %v77
  %208 = vmatprep.subr.mxu0 0.0
  %209 = vmatpush1.msra.mxu0 %v78
  %210 = vmatprep.subr.mxu0 0.0
  %211 = vmatpush1.msra.mxu0 %v79
  %212 = vmatprep.subr.mxu0 0.0
  %213 = vmatpush1.msra.mxu0 %v80
  %214 = vmatprep.subr.mxu0 0.0
  %215 = vmatpush1.msra.mxu0 %v81
  %216 = vmatprep.subr.mxu0 0.0
  %217 = vmatpush1.msra.mxu0 %v82
  %218 = vmatprep.subr.mxu0 0.0
  %219 = vmatpush1.msra.mxu0 %v83
  %220 = vmatprep.subr.mxu0 0.0
  %221 = vmatpush1.msra.mxu0 %v84
  %222 = vmatprep.subr.mxu0 0.0
  %223 = vmatpush1.msra.mxu0 %v85
  %224 = vmatprep.subr.mxu0 0.0
  %225 = vmatpush1.msra.mxu0 %v86
  %226 = vmatprep.subr.mxu0 0.0
  %227 = vmatpush1.msra.mxu0 %v87
  %228 = vmatprep.subr.mxu0 0.0
  %229 = vmatpush1.msra.mxu0 %v88
  %230 = vmatprep.subr.mxu0 0.0
  %231 = vmatpush1.msra.mxu0 %v89
  %232 = vmatprep.subr.mxu0 0.0
  %233 = vmatpush1.msra.mxu0 %v90
  %234 = vmatprep.subr.mxu0 0.0
  %235 = vmatpush1.msra.mxu0 %v91
  %236 = vmatprep.subr.mxu0 0.0
  %237 = vmatpush1.msra.mxu0 %v92
  %238 = vmatprep.subr.mxu0 0.0
  %239 = vmatpush1.msra.mxu0 %v93
  %240 = vmatprep.subr.mxu0 0.0
  %241 = vmatpush1.msra.mxu0 %v94
  %242 = vmatprep.subr.mxu0 0.0
  %243 = vmatpush1.msra.mxu0 %v95
  %244 = vmatprep.subr.mxu0 0.0
  %245 = vmatpush1.msra.mxu0 %v96
  %246 = vmatprep.mubr.f32.mxu0 %v20
  %247 = vmatmul.mubr.f32.gmra.mrb[0].mxu0 %v19
  %v248 = vpop.f32.mrb[0].mxu0
  %v249 = vadd.f32 %v164, %v248
  %v250 = vpop.f32.mrb[0].mxu0
  %251 = vmatprep.mubr.f32.mxu0 %v24
  %252 = vmatmul.mubr.f32.gmra.mrb[0].mxu0 %v23
  %v253 = vpop.f32.mrb[0].mxu0
  %v254 = vadd.f32 %v169, %v253
  %v255 = vpop.f32.mrb[0].mxu0
  %256 = vmatprep.mubr.f32.mxu0 %v28
  %257 = vmatmul.mubr.f32.gmra.mrb[0].mxu0 %v27
  %v258 = vpop.f32.mrb[0].mxu0
  %v259 = vadd.f32 %v174, %v258
  %v260 = vpop.f32.mrb[0].mxu0
  %261 = vmatprep.mubr.f32.mxu0 %v32
  %262 = vmatmul.mubr.f32.gmra.mrb[0].mxu0 %v31
  %v263 = vpop.f32.mrb[0].mxu0
  %v264 = vadd.f32 %v179, %v263
  %v265 = vpop.f32.mrb[0].mxu0
  %266 = vdwg.mxu0
  %vm267 = vcmask 523264
  %v268 = vsel %vm267, %v249, 0.0
  %v269 = vsel %vm267, %v254, 0.0
  %v270 = vadd.f32 %v268, %v269
  %v271 = vsel %vm267, %v259, 0.0
  %v272 = vadd.f32 %v270, %v271
  %v273 = vsel %vm267, %v264, 0.0
  %v274 = vadd.f32 %v272, %v273
  %v275 = vrot.slane %v274, 4
  %v276 = vadd.f32 %v274, %v275
  %v277 = vrot.slane %v276, 2
  %v278 = vadd.f32 %v276, %v277
  %v279 = vrot.slane %v278, 1
  %v280 = vadd.f32 %v278, %v279
  %v281 = vmul.f32 %v280, 0.03125
  %v282 = vsub.f32 %v249, %v281
  %v283 = vsub.f32 %v254, %v281
  %v284 = vsub.f32 %v259, %v281
  %v285 = vsub.f32 %v264, %v281
  %v286 = vmul.f32 %v282, %v282
  %v287 = vmul.f32 %v283, %v283
  %v288 = vmul.f32 %v284, %v284
  %v289 = vmul.f32 %v285, %v285
  %v290 = vsel %vm267, %v286, 0.0
  %v291 = vsel %vm267, %v287, 0.0
  %v292 = vadd.f32 %v290, %v291
  %v293 = vsel %vm267, %v288, 0.0
  %v294 = vadd.f32 %v292, %v293
  %v295 = vsel %vm267, %v289, 0.0
  %v296 = vadd.f32 %v294, %v295
  %v297 = vrot.slane %v296, 4
  %v298 = vadd.f32 %v296, %v297
  %v299 = vrot.slane %v298, 2
  %v300 = vadd.f32 %v298, %v299
  %v301 = vrot.slane %v300, 1
  %v302 = vadd.f32 %v300, %v301
  %v303 = vmul.f32 %v302, 0.03125
  %v304 = vld [vmem:[%s2] sm:$0x1]
  %v305 = vadd.f32 %v303, 1e-05
  %v306 = vrsqrt.pop %v305
  %v307 = vmul.f32 %v304, %v306
  %v309 = vlaneseq
  %v310 = vshrl.u32 %v309, 7
  %v311 = vsub.s32 0, %v310
  %v312 = vrot.slane %v307, %v311
  %v314 = vmul.f32 %v282, %v312
  %v315 = vmul.f32 %v283, %v312
  %v316 = vmul.f32 %v284, %v312
  %v317 = vmul.f32 %v285, %v312
  %v318 = vld [vmem:[%s3] sm:$0x1]
  %v320 = vlaneseq
  %v321 = vshrl.u32 %v320, 7
  %v322 = vsub.s32 0, %v321
  %v323 = vrot.slane %v318, %v322
  %v325 = vadd.f32 %v314, %v323
  %v326 = vadd.f32 %v315, %v323
  %v327 = vadd.f32 %v316, %v323
  %v328 = vadd.f32 %v317, %v323
  %vm329 = vcmp.gt.f32.partialorder %v325, 0.0
  %vm330 = vcmp.gt.f32.partialorder %v326, 0.0
  %vm331 = vcmp.gt.f32.partialorder %v327, 0.0
  %vm332 = vcmp.gt.f32.partialorder %v328, 0.0
  %v333 = vmul.f32 %v325, 0.2
  %v334 = vmul.f32 %v326, 0.2
  %v335 = vmul.f32 %v327, 0.2
  %v336 = vmul.f32 %v328, 0.2
  %v337 = vsel %vm329, %v325, %v333
  %v338 = vsel %vm330, %v326, %v334
  %v339 = vsel %vm331, %v327, %v335
  %v340 = vsel %vm332, %v328, %v336
  %341 = vst.msk [vmem:[%s4] sm:$0xff] %vm267, %v337
  %342 = vst.msk [vmem:[%s4 + $0x8] sm:$0xff] %vm267, %v338
  %343 = vst.msk [vmem:[%s4 + $0x10] sm:$0xff] %vm267, %v339
  %344 = vst.msk [vmem:[%s4 + $0x18] sm:$0xff] %vm267, %v340
  // Predicated region
  $region18: #{discriminator_forward.8} parent=0 // pred_check
    _
  $region19: #{discriminator_forward.8} parent=0 // pred_check_branch
    %346 = sbr.rel (0) target = $region21
  $region20: #{discriminator_forward.8} parent=0 // pred_region
    _
  $region21: #{discriminator_forward.8} parent=0 // pred_fallthru
    _
  // Predicated region
  $region22: #{discriminator_forward.8} parent=0 // pred_check
    _
  $region23: #{discriminator_forward.8} parent=0 // pred_check_branch
    %348 = sbr.rel (0) target = $region25
  $region24: #{discriminator_forward.8} parent=0 // pred_region
    _
  $region25: #{discriminator_forward.8} parent=0 // pred_fallthru
    _

// kernel: discriminator_forward.9
$region0: #{discriminator_forward.9}
  #allocation0 [shape = 'u32[]', space=smem, size = 0x4, offset = 0x4, fixed_abs, tag = 'smem constant byte address 0x4 - core index']
  #allocation1 [shape = 'u32[144,128]{1,0:T(1,128)}', space=vmem, size = 0x12000, scoped, tag = 'internal scratch']
  #allocation2 [shape = 'f32[1,1]{1,0:T(1,128)S(1)}', space=vmem, size = 0x200, scoped, tag = 'scoped memory for discriminator_forward.9']
  %s0 = inlined_call_operand.vmem [shape: f32[2,1024], index: 0, kind: input, shape index: {}]
  %s1 = inlined_call_operand.vmem [shape: f32[1024,1], index: 1, kind: input, shape index: {}]
  %s2 = inlined_call_operand.<no memory space> [shape: f32[1,1], index: 2, kind: input, shape index: {}]
  %s3 = inlined_call_operand.vmem [shape: f32[2,1], index: 3, kind: output, shape index: {}]
  %s4 = sld [smem:[#allocation0]]
  $region22: #{discriminator_forward.9} parent=0
    _
  %s6 = ssub.s32 1, %s4
  %s7 = scalar_select 0, %s6, %s4
  %v8 = vstv %s2
  %9 = vst [vmem:[#allocation2] sm:$0x1] %v8
  // Predicated region
  $region2: #{discriminator_forward.9} parent=0 // pred_check
    _
  $region3: #{discriminator_forward.9} parent=0 // pred_check_branch
    %11 = sbr.rel (0) target = $region5
  $region4: #{discriminator_forward.9} parent=0 // pred_region
    _
  $region5: #{discriminator_forward.9} parent=0 // pred_fallthru
    _
  // Predicated region
  $region6: #{discriminator_forward.9} parent=0 // pred_check
    _
  $region7: #{discriminator_forward.9} parent=0 // pred_check_branch
    %13 = sbr.rel (0) target = $region9
  $region8: #{discriminator_forward.9} parent=0 // pred_region
    _
  $region9: #{discriminator_forward.9} parent=0 // pred_fallthru
    _
  // Predicated region
  $region10: #{discriminator_forward.9} parent=0 // pred_check
    _
  $region11: #{discriminator_forward.9} parent=0 // pred_check_branch
    %15 = sbr.rel (0) target = $region13
  $region12: #{discriminator_forward.9} parent=0 // pred_region
    _
  $region13: #{discriminator_forward.9} parent=0 // pred_fallthru
    _
  %v16 = vld [vmem:[%s0] sm:$0xff]
  %v17 = vld [vmem:[%s0 + $0x8] sm:$0xff]
  %v18 = vld [vmem:[%s1] sm:$0xff]
  %v19 = vld [vmem:[%s1 + $0x8] sm:$0xff]
  %v20 = vld [vmem:[%s1 + $0x10] sm:$0xff]
  %v21 = vld [vmem:[%s1 + $0x18] sm:$0xff]
  %v22 = vld [vmem:[%s1 + $0x20] sm:$0xff]
  %v23 = vld [vmem:[%s1 + $0x28] sm:$0xff]
  %v24 = vld [vmem:[%s1 + $0x30] sm:$0xff]
  %v25 = vld [vmem:[%s1 + $0x38] sm:$0xff]
  %v26 = vld [vmem:[%s1 + $0x40] sm:$0xff]
  %v27 = vld [vmem:[%s1 + $0x48] sm:$0xff]
  %v28 = vld [vmem:[%s1 + $0x50] sm:$0xff]
  %v29 = vld [vmem:[%s1 + $0x58] sm:$0xff]
  %v30 = vld [vmem:[%s1 + $0x60] sm:$0xff]
  %v31 = vld [vmem:[%s1 + $0x68] sm:$0xff]
  %v32 = vld [vmem:[%s1 + $0x70] sm:$0xff]
  %v33 = vld [vmem:[%s1 + $0x78] sm:$0xff]
  %v34 = vld [vmem:[%s1 + $0x80] sm:$0xff]
  %v35 = vld [vmem:[%s1 + $0x88] sm:$0xff]
  %v36 = vld [vmem:[%s1 + $0x90] sm:$0xff]
  %v37 = vld [vmem:[%s1 + $0x98] sm:$0xff]
  %v38 = vld [vmem:[%s1 + $0xa0] sm:$0xff]
  %v39 = vld [vmem:[%s1 + $0xa8] sm:$0xff]
  %v40 = vld [vmem:[%s1 + $0xb0] sm:$0xff]
  %v41 = vld [vmem:[%s1 + $0xb8] sm:$0xff]
  %v42 = vld [vmem:[%s1 + $0xc0] sm:$0xff]
  %v43 = vld [vmem:[%s1 + $0xc8] sm:$0xff]
  %v44 = vld [vmem:[%s1 + $0xd0] sm:$0xff]
  %v45 = vld [vmem:[%s1 + $0xd8] sm:$0xff]
  %v46 = vld [vmem:[%s1 + $0xe0] sm:$0xff]
  %v47 = vld [vmem:[%s1 + $0xe8] sm:$0xff]
  %v48 = vld [vmem:[%s1 + $0xf0] sm:$0xff]
  %v49 = vld [vmem:[%s1 + $0xf8] sm:$0xff]
  %v50 = vld [vmem:[%s1 + $0x100] sm:$0xff]
  %v51 = vld [vmem:[%s1 + $0x108] sm:$0xff]
  %v52 = vld [vmem:[%s1 + $0x110] sm:$0xff]
  %v53 = vld [vmem:[%s1 + $0x118] sm:$0xff]
  %v54 = vld [vmem:[%s1 + $0x120] sm:$0xff]
  %v55 = vld [vmem:[%s1 + $0x128] sm:$0xff]
  %v56 = vld [vmem:[%s1 + $0x130] sm:$0xff]
  %v57 = vld [vmem:[%s1 + $0x138] sm:$0xff]
  %v58 = vld [vmem:[%s1 + $0x140] sm:$0xff]
  %v59 = vld [vmem:[%s1 + $0x148] sm:$0xff]
  %v60 = vld [vmem:[%s1 + $0x150] sm:$0xff]
  %v61 = vld [vmem:[%s1 + $0x158] sm:$0xff]
  %v62 = vld [vmem:[%s1 + $0x160] sm:$0xff]
  %v63 = vld [vmem:[%s1 + $0x168] sm:$0xff]
  %v64 = vld [vmem:[%s1 + $0x170] sm:$0xff]
  %v65 = vld [vmem:[%s1 + $0x178] sm:$0xff]
  %v66 = vld [vmem:[%s1 + $0x180] sm:$0xff]
  %v67 = vld [vmem:[%s1 + $0x188] sm:$0xff]
  %v68 = vld [vmem:[%s1 + $0x190] sm:$0xff]
  %v69 = vld [vmem:[%s1 + $0x198] sm:$0xff]
  %v70 = vld [vmem:[%s1 + $0x1a0] sm:$0xff]
  %v71 = vld [vmem:[%s1 + $0x1a8] sm:$0xff]
  %v72 = vld [vmem:[%s1 + $0x1b0] sm:$0xff]
  %v73 = vld [vmem:[%s1 + $0x1b8] sm:$0xff]
  %v74 = vld [vmem:[%s1 + $0x1c0] sm:$0xff]
  %v75 = vld [vmem:[%s1 + $0x1c8] sm:$0xff]
  %v76 = vld [vmem:[%s1 + $0x1d0] sm:$0xff]
  %v77 = vld [vmem:[%s1 + $0x1d8] sm:$0xff]
  %v78 = vld [vmem:[%s1 + $0x1e0] sm:$0xff]
  %v79 = vld [vmem:[%s1 + $0x1e8] sm:$0xff]
  %v80 = vld [vmem:[%s1 + $0x1f0] sm:$0xff]
  %v81 = vld [vmem:[%s1 + $0x1f8] sm:$0xff]
  %v82 = vld [vmem:[%s1 + $0x200] sm:$0xff]
  %v83 = vld [vmem:[%s1 + $0x208] sm:$0xff]
  %v84 = vld [vmem:[%s1 + $0x210] sm:$0xff]
  %v85 = vld [vmem:[%s1 + $0x218] sm:$0xff]
  %v86 = vld [vmem:[%s1 + $0x220] sm:$0xff]
  %v87 = vld [vmem:[%s1 + $0x228] sm:$0xff]
  %v88 = vld [vmem:[%s1 + $0x230] sm:$0xff]
  %v89 = vld [vmem:[%s1 + $0x238] sm:$0xff]
  %v90 = vld [vmem:[%s1 + $0x240] sm:$0xff]
  %v91 = vld [vmem:[%s1 + $0x248] sm:$0xff]
  %v92 = vld [vmem:[%s1 + $0x250] sm:$0xff]
  %v93 = vld [vmem:[%s1 + $0x258] sm:$0xff]
  %v94 = vld [vmem:[%s1 + $0x260] sm:$0xff]
  %v95 = vld [vmem:[%s1 + $0x268] sm:$0xff]
  %v96 = vld [vmem:[%s1 + $0x270] sm:$0xff]
  %v97 = vld [vmem:[%s1 + $0x278] sm:$0xff]
  %v98 = vld [vmem:[%s1 + $0x280] sm:$0xff]
  %v99 = vld [vmem:[%s1 + $0x288] sm:$0xff]
  %v100 = vld [vmem:[%s1 + $0x290] sm:$0xff]
  %v101 = vld [vmem:[%s1 + $0x298] sm:$0xff]
  %v102 = vld [vmem:[%s1 + $0x2a0] sm:$0xff]
  %v103 = vld [vmem:[%s1 + $0x2a8] sm:$0xff]
  %v104 = vld [vmem:[%s1 + $0x2b0] sm:$0xff]
  %v105 = vld [vmem:[%s1 + $0x2b8] sm:$0xff]
  %v106 = vld [vmem:[%s1 + $0x2c0] sm:$0xff]
  %v107 = vld [vmem:[%s1 + $0x2c8] sm:$0xff]
  %v108 = vld [vmem:[%s1 + $0x2d0] sm:$0xff]
  %v109 = vld [vmem:[%s1 + $0x2d8] sm:$0xff]
  %v110 = vld [vmem:[%s1 + $0x2e0] sm:$0xff]
  %v111 = vld [vmem:[%s1 + $0x2e8] sm:$0xff]
  %v112 = vld [vmem:[%s1 + $0x2f0] sm:$0xff]
  %v113 = vld [vmem:[%s1 + $0x2f8] sm:$0xff]
  %v114 = vld [vmem:[%s1 + $0x300] sm:$0xff]
  %v115 = vld [vmem:[%s1 + $0x308] sm:$0xff]
  %v116 = vld [vmem:[%s1 + $0x310] sm:$0xff]
  %v117 = vld [vmem:[%s1 + $0x318] sm:$0xff]
  %v118 = vld [vmem:[%s1 + $0x320] sm:$0xff]
  %v119 = vld [vmem:[%s1 + $0x328] sm:$0xff]
  %v120 = vld [vmem:[%s1 + $0x330] sm:$0xff]
  %v121 = vld [vmem:[%s1 + $0x338] sm:$0xff]
  %v122 = vld [vmem:[%s1 + $0x340] sm:$0xff]
  %v123 = vld [vmem:[%s1 + $0x348] sm:$0xff]
  %v124 = vld [vmem:[%s1 + $0x350] sm:$0xff]
  %v125 = vld [vmem:[%s1 + $0x358] sm:$0xff]
  %v126 = vld [vmem:[%s1 + $0x360] sm:$0xff]
  %v127 = vld [vmem:[%s1 + $0x368] sm:$0xff]
  %v128 = vld [vmem:[%s1 + $0x370] sm:$0xff]
  %v129 = vld [vmem:[%s1 + $0x378] sm:$0xff]
  %v130 = vld [vmem:[%s1 + $0x380] sm:$0xff]
  %v131 = vld [vmem:[%s1 + $0x388] sm:$0xff]
  %v132 = vld [vmem:[%s1 + $0x390] sm:$0xff]
  %v133 = vld [vmem:[%s1 + $0x398] sm:$0xff]
  %v134 = vld [vmem:[%s1 + $0x3a0] sm:$0xff]
  %v135 = vld [vmem:[%s1 + $0x3a8] sm:$0xff]
  %v136 = vld [vmem:[%s1 + $0x3b0] sm:$0xff]
  %v137 = vld [vmem:[%s1 + $0x3b8] sm:$0xff]
  %v138 = vld [vmem:[%s1 + $0x3c0] sm:$0xff]
  %v139 = vld [vmem:[%s1 + $0x3c8] sm:$0xff]
  %v140 = vld [vmem:[%s1 + $0x3d0] sm:$0xff]
  %v141 = vld [vmem:[%s1 + $0x3d8] sm:$0xff]
  %v142 = vld [vmem:[%s1 + $0x3e0] sm:$0xff]
  %v143 = vld [vmem:[%s1 + $0x3e8] sm:$0xff]
  %v144 = vld [vmem:[%s1 + $0x3f0] sm:$0xff]
  %v145 = vld [vmem:[%s1 + $0x3f8] sm:$0xff]
  %v146 = vld [vmem:[#allocation2] sm:$0x1]
  %v148 = vlaneseq
  %v149 = vshrl.u32 %v148, 7
  %v150 = vsub.s32 0, %v149
  %v151 = vrot.slane %v146, %v150
  %v155 = vcombine.high %v16, %v16
  %v157 = vunpack.c.l.s4 1983009808
  %v158 = vunpack.c.0.s8 %v157
  %v159 = vlaneseq
  %v160 = vshrl.u32 %v159, 7
  %v161 = vsub.s32 %v158, %v160
  %v162 = vrot.slane %v16, %v161
  %v164 = vunpack.c.l.s4 1983009808
  %v165 = vunpack.c.0.s8 %v164
  %v166 = vlaneseq
  %v167 = vshrl.u32 %v166, 7
  %v168 = vsub.s32 %v165, %v167
  %v169 = vrot.slane %v155, %v168
  %v170 = vcombine.high %v162, %v162
  %v171 = vcombine.high %v169, %v169
  %v172 = vcombine.high %v17, %v17
  %v174 = vunpack.c.l.s4 1983009808
  %v175 = vunpack.c.0.s8 %v174
  %v176 = vlaneseq
  %v177 = vshrl.u32 %v176, 7
  %v178 = vsub.s32 %v175, %v177
  %v179 = vrot.slane %v17, %v178
  %v181 = vunpack.c.l.s4 1983009808
  %v182 = vunpack.c.0.s8 %v181
  %v183 = vlaneseq
  %v184 = vshrl.u32 %v183, 7
  %v185 = vsub.s32 %v182, %v184
  %v186 = vrot.slane %v172, %v185
  %v187 = vcombine.high %v179, %v179
  %v188 = vcombine.high %v186, %v186
  %197 = vmatprep.subr.mxu0 0.0
  %198 = vmatpush1.msra.mxu0 %v18
  %199 = vmatprep.subr.mxu0 0.0
  %200 = vmatpush1.msra.mxu0 %v19
  %201 = vmatprep.subr.mxu0 0.0
  %202 = vmatpush1.msra.mxu0 %v20
  %203 = vmatprep.subr.mxu0 0.0
  %204 = vmatpush1.msra.mxu0 %v21
  %205 = vmatprep.subr.mxu0 0.0
  %206 = vmatpush1.msra.mxu0 %v22
  %207 = vmatprep.subr.mxu0 0.0
  %208 = vmatpush1.msra.mxu0 %v23
  %209 = vmatprep.subr.mxu0 0.0
  %210 = vmatpush1.msra.mxu0 %v24
  %211 = vmatprep.subr.mxu0 0.0
  %212 = vmatpush1.msra.mxu0 %v25
  %213 = vmatprep.subr.mxu0 0.0
  %214 = vmatpush1.msra.mxu0 %v26
  %215 = vmatprep.subr.mxu0 0.0
  %216 = vmatpush1.msra.mxu0 %v27
  %217 = vmatprep.subr.mxu0 0.0
  %218 = vmatpush1.msra.mxu0 %v28
  %219 = vmatprep.subr.mxu0 0.0
  %220 = vmatpush1.msra.mxu0 %v29
  %221 = vmatprep.subr.mxu0 0.0
  %222 = vmatpush1.msra.mxu0 %v30
  %223 = vmatprep.subr.mxu0 0.0
  %224 = vmatpush1.msra.mxu0 %v31
  %225 = vmatprep.subr.mxu0 0.0
  %226 = vmatpush1.msra.mxu0 %v32
  %227 = vmatprep.subr.mxu0 0.0
  %228 = vmatpush1.msra.mxu0 %v33
  %229 = vmatprep.subr.mxu0 0.0
  %230 = vmatpush1.msra.mxu0 %v34
  %231 = vmatprep.subr.mxu0 0.0
  %232 = vmatpush1.msra.mxu0 %v35
  %233 = vmatprep.subr.mxu0 0.0
  %234 = vmatpush1.msra.mxu0 %v36
  %235 = vmatprep.subr.mxu0 0.0
  %236 = vmatpush1.msra.mxu0 %v37
  %237 = vmatprep.subr.mxu0 0.0
  %238 = vmatpush1.msra.mxu0 %v38
  %239 = vmatprep.subr.mxu0 0.0
  %240 = vmatpush1.msra.mxu0 %v39
  %241 = vmatprep.subr.mxu0 0.0
  %242 = vmatpush1.msra.mxu0 %v40
  %243 = vmatprep.subr.mxu0 0.0
  %244 = vmatpush1.msra.mxu0 %v41
  %245 = vmatprep.subr.mxu0 0.0
  %246 = vmatpush1.msra.mxu0 %v42
  %247 = vmatprep.subr.mxu0 0.0
  %248 = vmatpush1.msra.mxu0 %v43
  %249 = vmatprep.subr.mxu0 0.0
  %250 = vmatpush1.msra.mxu0 %v44
  %251 = vmatprep.subr.mxu0 0.0
  %252 = vmatpush1.msra.mxu0 %v45
  %253 = vmatprep.subr.mxu0 0.0
  %254 = vmatpush1.msra.mxu0 %v46
  %255 = vmatprep.subr.mxu0 0.0
  %256 = vmatpush1.msra.mxu0 %v47
  %257 = vmatprep.subr.mxu0 0.0
  %258 = vmatpush1.msra.mxu0 %v48
  %259 = vmatprep.subr.mxu0 0.0
  %260 = vmatpush1.msra.mxu0 %v49
  %261 = vmatprep.mubr.f32.mxu0 %v170
  %262 = vmatmul.mubr.f32.gmra.mrb[0].mxu0 %v162
  %v263 = vpop.f32.mrb[0].mxu0
  %v264 = vadd.f32 %v151, %v263
  %v265 = vpop.f32.mrb[0].mxu0
  %266 = vdwg.mxu0
  %267 = vmatprep.subr.mxu0 0.0
  %268 = vmatpush1.msra.mxu0 %v50
  %269 = vmatprep.subr.mxu0 0.0
  %270 = vmatpush1.msra.mxu0 %v51
  %271 = vmatprep.subr.mxu0 0.0
  %272 = vmatpush1.msra.mxu0 %v52
  %273 = vmatprep.subr.mxu0 0.0
  %274 = vmatpush1.msra.mxu0 %v53
  %275 = vmatprep.subr.mxu0 0.0
  %276 = vmatpush1.msra.mxu0 %v54
  %277 = vmatprep.subr.mxu0 0.0
  %278 = vmatpush1.msra.mxu0 %v55
  %279 = vmatprep.subr.mxu0 0.0
  %280 = vmatpush1.msra.mxu0 %v56
  %281 = vmatprep.subr.mxu0 0.0
  %282 = vmatpush1.msra.mxu0 %v57
  %283 = vmatprep.subr.mxu0 0.0
  %284 = vmatpush1.msra.mxu0 %v58
  %285 = vmatprep.subr.mxu0 0.0
  %286 = vmatpush1.msra.mxu0 %v59
  %287 = vmatprep.subr.mxu0 0.0
  %288 = vmatpush1.msra.mxu0 %v60
  %289 = vmatprep.subr.mxu0 0.0
  %290 = vmatpush1.msra.mxu0 %v61
  %291 = vmatprep.subr.mxu0 0.0
  %292 = vmatpush1.msra.mxu0 %v62
  %293 = vmatprep.subr.mxu0 0.0
  %294 = vmatpush1.msra.mxu0 %v63
  %295 = vmatprep.subr.mxu0 0.0
  %296 = vmatpush1.msra.mxu0 %v64
  %297 = vmatprep.subr.mxu0 0.0
  %298 = vmatpush1.msra.mxu0 %v65
  %299 = vmatprep.subr.mxu0 0.0
  %300 = vmatpush1.msra.mxu0 %v66
  %301 = vmatprep.subr.mxu0 0.0
  %302 = vmatpush1.msra.mxu0 %v67
  %303 = vmatprep.subr.mxu0 0.0
  %304 = vmatpush1.msra.mxu0 %v68
  %305 = vmatprep.subr.mxu0 0.0
  %306 = vmatpush1.msra.mxu0 %v69
  %307 = vmatprep.subr.mxu0 0.0
  %308 = vmatpush1.msra.mxu0 %v70
  %309 = vmatprep.subr.mxu0 0.0
  %310 = vmatpush1.msra.mxu0 %v71
  %311 = vmatprep.subr.mxu0 0.0
  %312 = vmatpush1.msra.mxu0 %v72
  %313 = vmatprep.subr.mxu0 0.0
  %314 = vmatpush1.msra.mxu0 %v73
  %315 = vmatprep.subr.mxu0 0.0
  %316 = vmatpush1.msra.mxu0 %v74
  %317 = vmatprep.subr.mxu0 0.0
  %318 = vmatpush1.msra.mxu0 %v75
  %319 = vmatprep.subr.mxu0 0.0
  %320 = vmatpush1.msra.mxu0 %v76
  %321 = vmatprep.subr.mxu0 0.0
  %322 = vmatpush1.msra.mxu0 %v77
  %323 = vmatprep.subr.mxu0 0.0
  %324 = vmatpush1.msra.mxu0 %v78
  %325 = vmatprep.subr.mxu0 0.0
  %326 = vmatpush1.msra.mxu0 %v79
  %327 = vmatprep.subr.mxu0 0.0
  %328 = vmatpush1.msra.mxu0 %v80
  %329 = vmatprep.subr.mxu0 0.0
  %330 = vmatpush1.msra.mxu0 %v81
  %331 = vmatprep.mubr.f32.mxu0 %v171
  %332 = vmatmul.mubr.f32.gmra.mrb[0].mxu0 %v169
  %v333 = vpop.f32.mrb[0].mxu0
  %v334 = vadd.f32 %v264, %v333
  %v335 = vpop.f32.mrb[0].mxu0
  %336 = vdwg.mxu0
  %337 = vmatprep.subr.mxu0 0.0
  %338 = vmatpush1.msra.mxu0 %v82
  %339 = vmatprep.subr.mxu0 0.0
  %340 = vmatpush1.msra.mxu0 %v83
  %341 = vmatprep.subr.mxu0 0.0
  %342 = vmatpush1.msra.mxu0 %v84
  %343 = vmatprep.subr.mxu0 0.0
  %344 = vmatpush1.msra.mxu0 %v85
  %345 = vmatprep.subr.mxu0 0.0
  %346 = vmatpush1.msra.mxu0 %v86
  %347 = vmatprep.subr.mxu0 0.0
  %348 = vmatpush1.msra.mxu0 %v87
  %349 = vmatprep.subr.mxu0 0.0
  %350 = vmatpush1.msra.mxu0 %v88
  %351 = vmatprep.subr.mxu0 0.0
  %352 = vmatpush1.msra.mxu0 %v89
  %353 = vmatprep.subr.mxu0 0.0
  %354 = vmatpush1.msra.mxu0 %v90
  %355 = vmatprep.subr.mxu0 0.0
  %356 = vmatpush1.msra.mxu0 %v91
  %357 = vmatprep.subr.mxu0 0.0
  %358 = vmatpush1.msra.mxu0 %v92
  %359 = vmatprep.subr.mxu0 0.0
  %360 = vmatpush1.msra.mxu0 %v93
  %361 = vmatprep.subr.mxu0 0.0
  %362 = vmatpush1.msra.mxu0 %v94
  %363 = vmatprep.subr.mxu0 0.0
  %364 = vmatpush1.msra.mxu0 %v95
  %365 = vmatprep.subr.mxu0 0.0
  %366 = vmatpush1.msra.mxu0 %v96
  %367 = vmatprep.subr.mxu0 0.0
  %368 = vmatpush1.msra.mxu0 %v97
  %369 = vmatprep.subr.mxu0 0.0
  %370 = vmatpush1.msra.mxu0 %v98
  %371 = vmatprep.subr.mxu0 0.0
  %372 = vmatpush1.msra.mxu0 %v99
  %373 = vmatprep.subr.mxu0 0.0
  %374 = vmatpush1.msra.mxu0 %v100
  %375 = vmatprep.subr.mxu0 0.0
  %376 = vmatpush1.msra.mxu0 %v101
  %377 = vmatprep.subr.mxu0 0.0
  %378 = vmatpush1.msra.mxu0 %v102
  %379 = vmatprep.subr.mxu0 0.0
  %380 = vmatpush1.msra.mxu0 %v103
  %381 = vmatprep.subr.mxu0 0.0
  %382 = vmatpush1.msra.mxu0 %v104
  %383 = vmatprep.subr.mxu0 0.0
  %384 = vmatpush1.msra.mxu0 %v105
  %385 = vmatprep.subr.mxu0 0.0
  %386 = vmatpush1.msra.mxu0 %v106
  %387 = vmatprep.subr.mxu0 0.0
  %388 = vmatpush1.msra.mxu0 %v107
  %389 = vmatprep.subr.mxu0 0.0
  %390 = vmatpush1.msra.mxu0 %v108
  %391 = vmatprep.subr.mxu0 0.0
  %392 = vmatpush1.msra.mxu0 %v109
  %393 = vmatprep.subr.mxu0 0.0
  %394 = vmatpush1.msra.mxu0 %v110
  %395 = vmatprep.subr.mxu0 0.0
  %396 = vmatpush1.msra.mxu0 %v111
  %397 = vmatprep.subr.mxu0 0.0
  %398 = vmatpush1.msra.mxu0 %v112
  %399 = vmatprep.subr.mxu0 0.0
  %400 = vmatpush1.msra.mxu0 %v113
  %401 = vmatprep.mubr.f32.mxu0 %v187
  %402 = vmatmul.mubr.f32.gmra.mrb[0].mxu0 %v179
  %v403 = vpop.f32.mrb[0].mxu0
  %v404 = vadd.f32 %v334, %v403
  %v405 = vpop.f32.mrb[0].mxu0
  %406 = vdwg.mxu0
  %407 = vmatprep.subr.mxu0 0.0
  %408 = vmatpush1.msra.mxu0 %v114
  %409 = vmatprep.subr.mxu0 0.0
  %410 = vmatpush1.msra.mxu0 %v115
  %411 = vmatprep.subr.mxu0 0.0
  %412 = vmatpush1.msra.mxu0 %v116
  %413 = vmatprep.subr.mxu0 0.0
  %414 = vmatpush1.msra.mxu0 %v117
  %415 = vmatprep.subr.mxu0 0.0
  %416 = vmatpush1.msra.mxu0 %v118
  %417 = vmatprep.subr.mxu0 0.0
  %418 = vmatpush1.msra.mxu0 %v119
  %419 = vmatprep.subr.mxu0 0.0
  %420 = vmatpush1.msra.mxu0 %v120
  %421 = vmatprep.subr.mxu0 0.0
  %422 = vmatpush1.msra.mxu0 %v121
  %423 = vmatprep.subr.mxu0 0.0
  %424 = vmatpush1.msra.mxu0 %v122
  %425 = vmatprep.subr.mxu0 0.0
  %426 = vmatpush1.msra.mxu0 %v123
  %427 = vmatprep.subr.mxu0 0.0
  %428 = vmatpush1.msra.mxu0 %v124
  %429 = vmatprep.subr.mxu0 0.0
  %430 = vmatpush1.msra.mxu0 %v125
  %431 = vmatprep.subr.mxu0 0.0
  %432 = vmatpush1.msra.mxu0 %v126
  %433 = vmatprep.subr.mxu0 0.0
  %434 = vmatpush1.msra.mxu0 %v127
  %435 = vmatprep.subr.mxu0 0.0
  %436 = vmatpush1.msra.mxu0 %v128
  %437 = vmatprep.subr.mxu0 0.0
  %438 = vmatpush1.msra.mxu0 %v129
  %439 = vmatprep.subr.mxu0 0.0
  %440 = vmatpush1.msra.mxu0 %v130
  %441 = vmatprep.subr.mxu0 0.0
  %442 = vmatpush1.msra.mxu0 %v131
  %443 = vmatprep.subr.mxu0 0.0
  %444 = vmatpush1.msra.mxu0 %v132
  %445 = vmatprep.subr.mxu0 0.0
  %446 = vmatpush1.msra.mxu0 %v133
  %447 = vmatprep.subr.mxu0 0.0
  %448 = vmatpush1.msra.mxu0 %v134
  %449 = vmatprep.subr.mxu0 0.0
  %450 = vmatpush1.msra.mxu0 %v135
  %451 = vmatprep.subr.mxu0 0.0
  %452 = vmatpush1.msra.mxu0 %v136
  %453 = vmatprep.subr.mxu0 0.0
  %454 = vmatpush1.msra.mxu0 %v137
  %455 = vmatprep.subr.mxu0 0.0
  %456 = vmatpush1.msra.mxu0 %v138
  %457 = vmatprep.subr.mxu0 0.0
  %458 = vmatpush1.msra.mxu0 %v139
  %459 = vmatprep.subr.mxu0 0.0
  %460 = vmatpush1.msra.mxu0 %v140
  %461 = vmatprep.subr.mxu0 0.0
  %462 = vmatpush1.msra.mxu0 %v141
  %463 = vmatprep.subr.mxu0 0.0
  %464 = vmatpush1.msra.mxu0 %v142
  %465 = vmatprep.subr.mxu0 0.0
  %466 = vmatpush1.msra.mxu0 %v143
  %467 = vmatprep.subr.mxu0 0.0
  %468 = vmatpush1.msra.mxu0 %v144
  %469 = vmatprep.subr.mxu0 0.0
  %470 = vmatpush1.msra.mxu0 %v145
  %471 = vmatprep.mubr.f32.mxu0 %v188
  %472 = vmatmul.mubr.f32.gmra.mrb[0].mxu0 %v186
  %v473 = vpop.f32.mrb[0].mxu0
  %v474 = vadd.f32 %v404, %v473
  %v475 = vpop.f32.mrb[0].mxu0
  %476 = vdwg.mxu0
  %v477 = vsub.f32 0.0, %v474
  %v478 = vmul.f32 %v477, 1.442695
  %v479 = vpow.pop %v478
  %v480 = vadd.f32 %v479, 1.0
  %v481 = vrcp.pop %v480
  %v482 = vmul.f32 1.0, %v481
  %vm483 = vcmask 1024
  %484 = vst.msk [vmem:[%s3] sm:$0x3] %vm483, %v482
  // Predicated region
  $region14: #{discriminator_forward.9} parent=0 // pred_check
    _
  $region15: #{discriminator_forward.9} parent=0 // pred_check_branch
    %486 = sbr.rel (0) target = $region17
  $region16: #{discriminator_forward.9} parent=0 // pred_region
    _
  $region17: #{discriminator_forward.9} parent=0 // pred_fallthru
    _
  // Predicated region
  $region18: #{discriminator_forward.9} parent=0 // pred_check
    _
  $region19: #{discriminator_forward.9} parent=0 // pred_check_branch
    %488 = sbr.rel (0) target = $region21
  $region20: #{discriminator_forward.9} parent=0 // pred_region
    _
  $region21: #{discriminator_forward.9} parent=0 // pred_fallthru
    _

</llo_original>
